<compile_context>
chip_gen: v7x
topology: tpu7x:2x2x1
jax: 0.10.0
libtpu: 0.0.40
codegen_flags: <defaults>
</compile_context>

<pallas_src>
import functools
import math

import jax
import jax.numpy as jnp
from jax.experimental import pallas as pl
from jax.experimental.pallas import tpu as pltpu

_EPS = 1e-5
_NEG_INF = -1e9


# ----------------------------- in-kernel helpers ---------------------------------

def _layer_norm(x, g, b):
    # x: (S, D) f32 ; g, b: (1, D) f32
    mu = jnp.mean(x, axis=-1, keepdims=True)
    xc = x - mu
    var = jnp.mean(xc * xc, axis=-1, keepdims=True)
    return xc * jax.lax.rsqrt(var + _EPS) * g + b


def _mha(q, k, v, add_mask, nhead):
    """Multi-head attention with lane-masked heads (no lane slicing / concat).

    q: (Sq, D) f32 ; k, v: (Sk, D) f32 ; add_mask: (1, Sk) f32 additive or None.
    For head h, q and v are zeroed outside lanes [h*dh, (h+1)*dh); the score
    matmul then contracts the full K=D lanes (identical result since off-head
    lanes are zero) and the per-head contexts occupy disjoint lanes, so summing
    them reconstructs the concatenated (Sq, D) context with no relayouts.
    """
    Sq, D = q.shape
    Sk = k.shape[0]
    dh = D // nhead
    q = q * (1.0 / math.sqrt(dh))                       # one full-width scale
    kb = k.astype(jnp.bfloat16)
    lane = jax.lax.broadcasted_iota(jnp.int32, (1, D), 1)
    if add_mask is not None:
        add_mask = jnp.broadcast_to(add_mask, (Sq, Sk))  # hoisted out of head loop
    ctx = jnp.zeros((Sq, D), jnp.float32)
    for h in range(nhead):                               # static unrolled head loop
        sel = (lane >= h * dh) & (lane < (h + 1) * dh)
        qh = jnp.where(sel, q, 0.0).astype(jnp.bfloat16)
        # scores: full K=D contraction on the MXU (native form, last dims)
        s = jax.lax.dot_general(qh, kb, (((1,), (1,)), ((), ())),
                                preferred_element_type=jnp.float32)
        if add_mask is not None:
            s = s + add_mask
        m = jnp.max(s, axis=-1, keepdims=True)
        p = jnp.exp(s - m)
        p = p * pl.reciprocal(jnp.sum(p, axis=-1, keepdims=True), approx=True)
        vh = jnp.where(sel, v, 0.0).astype(jnp.bfloat16)
        ctx = ctx + jnp.dot(p.astype(jnp.bfloat16), vh,
                            preferred_element_type=jnp.float32)
    return ctx                                           # (Sq, D) f32


# ----------------------------- fused decoder kernel ------------------------------
# Grid = (batch, layer).  Per-layer weights indexed by the layer axis; the
# residual stream is carried across layers in a VMEM scratch; the output block
# (constant in the layer axis) is only written at the last layer.
#
# Packed per-layer parameter layout:
#   ln_gb  (NL, 10, D) f32 : [norm1 g,b | self_attn_norm g,b | norm2 g,b |
#                             cross_attn_norm g,b | norm3 g,b]
#   attn_w (NL, 8, D, D) bf16 : [self: wq wk wv wo | cross: wq wk wv wo]
#   attn_b (NL, 8, D)   f32  : matching biases
#   ffn_w1 (NL, D, F) bf16, ffn_w2 (NL, F, D) bf16
#   ffn_vf (NL, 3, F) f32 : [b1 | ffn-LN g | ffn-LN b],  ffn_b2 (NL, 1, D) f32

def _decoder_kernel(x_ref, txt_ref, mask_ref, vpos_ref, tpos_ref,
                    fing_ref, finb_ref,
                    ln_ref, aw_ref, ab_ref, w1_ref, w2_ref, fvf_ref, fb2_ref,
                    o_ref, x_scr, *, nhead):
    layer = pl.program_id(1)

    @pl.when(layer == 0)
    def _():                                             # load residual stream once
        x_scr[...] = x_ref[0]

    x = x_scr[...]                                       # (S, D) f32
    txt = txt_ref[0]                                     # (L, D) f32
    vpos = vpos_ref[...]                                 # (S, D)
    tpos = tpos_ref[...]                                 # (L, D)
    addm = mask_ref[0]                                   # (1, L) additive

    ln = ln_ref[0]                                       # (10, D) f32
    ab = ab_ref[0]                                       # (8, D)  f32
    fvf = fvf_ref[0]                                     # (3, F)  f32

    # ---------------- self-attention block ----------------
    xn = _layer_norm(x, ln[0:1], ln[1:2])                # norm1
    qk_in = (xn + vpos).astype(jnp.bfloat16)             # q = k = vis2 + vis_pos
    v_in = xn.astype(jnp.bfloat16)                       # value = vis2
    q = jnp.dot(qk_in, aw_ref[0, 0], preferred_element_type=jnp.float32) + ab[0:1]
    k = jnp.dot(qk_in, aw_ref[0, 1], preferred_element_type=jnp.float32) + ab[1:2]
    v = jnp.dot(v_in, aw_ref[0, 2], preferred_element_type=jnp.float32) + ab[2:3]
    ctx = _mha(q, k, v, None, nhead)
    attn = jnp.dot(ctx.astype(jnp.bfloat16), aw_ref[0, 3],
                   preferred_element_type=jnp.float32) + ab[3:4]
    x = x + _layer_norm(attn, ln[2:3], ln[3:4])          # self_attn_norm + residual

    # ---------------- cross-attention block ----------------
    xn = _layer_norm(x, ln[4:5], ln[5:6])                # norm2
    q_in = (xn + vpos).astype(jnp.bfloat16)              # query = vis2 + vis_pos
    k_in = (txt + tpos).astype(jnp.bfloat16)             # key   = txt + txt_pos
    v_in = txt.astype(jnp.bfloat16)                      # value = txt
    q = jnp.dot(q_in, aw_ref[0, 4], preferred_element_type=jnp.float32) + ab[4:5]
    k = jnp.dot(k_in, aw_ref[0, 5], preferred_element_type=jnp.float32) + ab[5:6]
    v = jnp.dot(v_in, aw_ref[0, 6], preferred_element_type=jnp.float32) + ab[6:7]
    ctx = _mha(q, k, v, addm, nhead)
    attn = jnp.dot(ctx.astype(jnp.bfloat16), aw_ref[0, 7],
                   preferred_element_type=jnp.float32) + ab[7:8]
    x = x + _layer_norm(attn, ln[6:7], ln[7:8])          # cross_attn_norm + residual

    # ---------------- FFN block ----------------
    h = _layer_norm(x, ln[8:9], ln[9:10])                # norm3
    a = jnp.dot(h.astype(jnp.bfloat16), w1_ref[0],
                preferred_element_type=jnp.float32) + fvf[0:1]
    a = jnp.maximum(a, 0.0)                              # ReLU (dropout = identity)
    a = _layer_norm(a, fvf[1:2], fvf[2:3])               # LayerNorm(dim_ffn)
    y = jnp.dot(a.astype(jnp.bfloat16), w2_ref[0],
                preferred_element_type=jnp.float32) + fb2_ref[0]
    x = x + y                                            # residual

    x_scr[...] = x                                       # carry to next layer

    @pl.when(layer == pl.num_programs(1) - 1)
    def _():                                             # final LayerNorm, single write
        o_ref[0] = _layer_norm(x, fing_ref[...], finb_ref[...])


# ----------------------------- pallas_call wrapper -------------------------------

def transformer_decoder_forward(params, vis, txt, pad_mask, *, nhead):
    """vis: (B, C, H, W)  txt: (B, L, D)  pad_mask: (B, L) bool (True = padded)."""
    B, C, H, W = vis.shape
    _, L, D = txt.shape
    assert C == D and D % nhead == 0
    S = H * W
    NL = params["ln_gb"].shape[0]
    F = params["ffn_w1"].shape[2]

    vis_pos = _pos2d(C, H, W)                            # (S, C)
    txt_pos = _pos1d(D, L)                               # (L, D)
    x = jnp.transpose(vis.reshape(B, C, S), (0, 2, 1)).astype(jnp.float32)
    add_mask = jnp.where(pad_mask, _NEG_INF, 0.0).astype(jnp.float32).reshape(B, 1, L)

    flops = 2 * B * NL * (4 * S * D * D            # self-attn projections
                          + 2 * 2 * S * S * D      # self-attn scores + ctx
                          + (2 * S + 2 * L) * D * D  # cross-attn projections
                          + 2 * 2 * S * L * D      # cross-attn scores + ctx
                          + 2 * S * D * F)         # FFN
    bytes_acc = (4 * B * S * D * 2 + 4 * B * L * D
                 + NL * (2 * 8 * D * D + 2 * 2 * D * F + 4 * 22 * D + 4 * 3 * F))

    kernel = functools.partial(_decoder_kernel, nhead=nhead)
    out = pl.pallas_call(
        kernel,
        out_shape=jax.ShapeDtypeStruct((B, S, D), jnp.float32),
        grid=(B, NL),
        in_specs=[
            pl.BlockSpec((1, S, D), lambda b, l: (b, 0, 0)),        # x (read once per b)
            pl.BlockSpec((1, L, D), lambda b, l: (b, 0, 0)),        # txt
            pl.BlockSpec((1, 1, L), lambda b, l: (b, 0, 0)),        # additive pad mask
            pl.BlockSpec((S, D), lambda b, l: (0, 0)),              # vis_pos
            pl.BlockSpec((L, D), lambda b, l: (0, 0)),              # txt_pos
            pl.BlockSpec((1, D), lambda b, l: (0, 0)),              # final norm gamma
            pl.BlockSpec((1, D), lambda b, l: (0, 0)),              # final norm beta
            pl.BlockSpec((1, 10, D), lambda b, l: (l, 0, 0)),       # per-layer LN params
            pl.BlockSpec((1, 8, D, D), lambda b, l: (l, 0, 0, 0)),  # attn weights (bf16)
            pl.BlockSpec((1, 8, D), lambda b, l: (l, 0, 0)),        # attn biases
            pl.BlockSpec((1, D, F), lambda b, l: (l, 0, 0)),        # ffn w1 (bf16)
            pl.BlockSpec((1, F, D), lambda b, l: (l, 0, 0)),        # ffn w2 (bf16)
            pl.BlockSpec((1, 3, F), lambda b, l: (l, 0, 0)),        # ffn b1 / LN params
            pl.BlockSpec((1, 1, D), lambda b, l: (l, 0, 0)),        # ffn b2
        ],
        out_specs=pl.BlockSpec((1, S, D), lambda b, l: (b, 0, 0)),  # resident across l
        scratch_shapes=[pltpu.VMEM((S, D), jnp.float32)],           # residual stream
        compiler_params=pltpu.CompilerParams(
            dimension_semantics=("parallel", "arbitrary")),
        cost_estimate=pl.CostEstimate(
            flops=int(flops),
            transcendentals=int(B * NL * nhead * (S * S + S * L)),
            bytes_accessed=int(bytes_acc)),
    )(x, txt, add_mask, vis_pos, txt_pos,
      params["fin_g"], params["fin_b"],
      params["ln_gb"], params["attn_w"], params["attn_b"],
      params["ffn_w1"], params["ffn_w2"], params["ffn_vf"], params["ffn_b2"])

    return jnp.transpose(out, (0, 2, 1))                 # (B, C, H*W)


# ----------------------------- positional encodings (JAX glue) -------------------

def _pos2d(d_model, height, width):
    assert d_model % 4 == 0
    dm = d_model // 2
    div_term = jnp.exp(jnp.arange(0, dm, 2, dtype=jnp.float32)
                       * -(math.log(10000.0) / dm))                  # (dm//2,)
    pos_w = jnp.arange(width, dtype=jnp.float32)[:, None]            # (W, 1)
    pos_h = jnp.arange(height, dtype=jnp.float32)[:, None]           # (H, 1)
    sw = jnp.sin(pos_w * div_term).T                                  # (dm//2, W)
    cw = jnp.cos(pos_w * div_term).T
    sh = jnp.sin(pos_h * div_term).T                                  # (dm//2, H)
    ch = jnp.cos(pos_h * div_term).T
    half_w = jnp.stack([sw, cw], axis=1).reshape(dm, width)           # interleave sin/cos
    half_h = jnp.stack([sh, ch], axis=1).reshape(dm, height)
    pe_w = jnp.broadcast_to(half_w[:, None, :], (dm, height, width))
    pe_h = jnp.broadcast_to(half_h[:, :, None], (dm, height, width))
    pe = jnp.concatenate([pe_w, pe_h], axis=0)                        # (C, H, W)
    return pe.reshape(d_model, height * width).T                      # (H*W, C)


def _pos1d(d_model, length):
    assert d_model % 2 == 0
    position = jnp.arange(length, dtype=jnp.float32)[:, None]
    div_term = jnp.exp(jnp.arange(0, d_model, 2, dtype=jnp.float32)
                       * -(math.log(10000.0) / d_model))
    return jnp.stack([jnp.sin(position * div_term),
                      jnp.cos(position * div_term)],
                     axis=2).reshape(length, d_model)                 # (L, D)


# ----------------------------- deterministic packed params -----------------------

def init_params(key, num_layers, d_model, dim_ffn):
    NL, D, F = num_layers, d_model, dim_ffn
    ks = jax.random.split(key, 12)

    gam = 1.0 + 0.1 * jax.random.normal(ks[0], (NL, 5, D), jnp.float32)
    bet = 0.1 * jax.random.normal(ks[1], (NL, 5, D), jnp.float32)
    ln_gb = jnp.stack([gam, bet], axis=2).reshape(NL, 10, D)          # g/b interleaved

    attn_w = (jax.random.normal(ks[2], (NL, 8, D, D), jnp.float32)
              / math.sqrt(D)).astype(jnp.bfloat16)
    attn_b = 0.01 * jax.random.normal(ks[3], (NL, 8, D), jnp.float32)

    ffn_w1 = (jax.random.normal(ks[4], (NL, D, F), jnp.float32)
              / math.sqrt(D)).astype(jnp.bfloat16)
    ffn_w2 = (jax.random.normal(ks[5], (NL, F, D), jnp.float32)
              / math.sqrt(F)).astype(jnp.bfloat16)
    b1 = 0.01 * jax.random.normal(ks[6], (NL, F), jnp.float32)
    fln_g = 1.0 + 0.1 * jax.random.normal(ks[7], (NL, F), jnp.float32)
    fln_b = 0.1 * jax.random.normal(ks[8], (NL, F), jnp.float32)
    ffn_vf = jnp.stack([b1, fln_g, fln_b], axis=1)                    # (NL, 3, F)
    ffn_b2 = 0.01 * jax.random.normal(ks[9], (NL, 1, D), jnp.float32)

    fin_g = 1.0 + 0.1 * jax.random.normal(ks[10], (1, D), jnp.float32)
    fin_b = 0.1 * jax.random.normal(ks[11], (1, D), jnp.float32)

    return dict(ln_gb=ln_gb, attn_w=attn_w, attn_b=attn_b,
                ffn_w1=ffn_w1, ffn_w2=ffn_w2, ffn_vf=ffn_vf, ffn_b2=ffn_b2,
                fin_g=fin_g, fin_b=fin_b)


# ----------------------------- main ----------------------------------------------

if __name__ == "__main__":
    B = 2
    D_MODEL = 128       # lane-dense (multiple of 128)
    NHEAD = 4           # head_dim = 32
    DIM_FFN = 256       # lane-dense
    NUM_LAYERS = 2
    H = W = 8           # vis tokens = 64
    L = 16              # txt tokens

    root = jax.random.PRNGKey(0)
    kp, k1, k2 = jax.random.split(root, 3)
    params = init_params(kp, NUM_LAYERS, D_MODEL, DIM_FFN)

    vis = jax.random.normal(k1, (B, D_MODEL, H, W), jnp.float32)
    txt = jax.random.normal(k2, (B, L, D_MODEL), jnp.float32)
    # batch 0: no padding; batch 1: last 4 text tokens padded
    pad_mask = jnp.arange(L)[None, :] >= jnp.array([[L], [L - 4]])   # (B, L) bool

    fwd = jax.jit(functools.partial(transformer_decoder_forward, nhead=NHEAD))
    out = jax.block_until_ready(fwd(params, vis, txt, pad_mask))

    assert out.shape == (B, D_MODEL, H * W), out.shape
    assert out.dtype == jnp.float32
    assert bool(jnp.all(jnp.isfinite(out)))
    print("KERNEL_OK")
</pallas_src>

<mosaic_0001>
module attributes {stable_mosaic.version = 11 : i64} {
  func.func @_decoder_kernel(%arg0: i32, %arg1: i32, %arg2: memref<1x64x128xf32, #tpu.memory_space<vmem>>, %arg3: memref<1x16x128xf32, #tpu.memory_space<vmem>>, %arg4: memref<1x1x16xf32, #tpu.memory_space<vmem>>, %arg5: memref<64x128xf32, #tpu.memory_space<vmem>>, %arg6: memref<16x128xf32, #tpu.memory_space<vmem>>, %arg7: memref<1x128xf32, #tpu.memory_space<vmem>>, %arg8: memref<1x128xf32, #tpu.memory_space<vmem>>, %arg9: memref<1x10x128xf32, #tpu.memory_space<vmem>>, %arg10: memref<1x8x128x128xbf16, #tpu.memory_space<vmem>>, %arg11: memref<1x8x128xf32, #tpu.memory_space<vmem>>, %arg12: memref<1x128x256xbf16, #tpu.memory_space<vmem>>, %arg13: memref<1x256x128xbf16, #tpu.memory_space<vmem>>, %arg14: memref<1x3x256xf32, #tpu.memory_space<vmem>>, %arg15: memref<1x1x128xf32, #tpu.memory_space<vmem>>, %arg16: memref<1x64x128xf32, #tpu.memory_space<vmem>>, %arg17: memref<64x128xf32, #tpu.memory_space<vmem>>) attributes {dimension_semantics = [#tpu.dimension_semantics<parallel>, #tpu.dimension_semantics<arbitrary>], iteration_bounds = array<i64: 2, 2>, scalar_prefetch = 0 : i64, scratch_operands = 1 : i64, tpu.core_type = #tpu.core_type<tc>, window_params = [{transform_indices = @transform_0, window_bounds = array<i64: 1, 64, 128>}, {transform_indices = @transform_1, window_bounds = array<i64: 1, 16, 128>}, {transform_indices = @transform_2, window_bounds = array<i64: 1, 1, 16>}, {pipeline_mode = #tpu.pipeline_mode<synchronous>, transform_indices = @transform_3, window_bounds = array<i64: 64, 128>}, {pipeline_mode = #tpu.pipeline_mode<synchronous>, transform_indices = @transform_4, window_bounds = array<i64: 16, 128>}, {pipeline_mode = #tpu.pipeline_mode<synchronous>, transform_indices = @transform_5, window_bounds = array<i64: 1, 128>}, {pipeline_mode = #tpu.pipeline_mode<synchronous>, transform_indices = @transform_6, window_bounds = array<i64: 1, 128>}, {transform_indices = @transform_7, window_bounds = array<i64: 1, 10, 128>}, {transform_indices = @transform_8, window_bounds = array<i64: 1, 8, 128, 128>}, {transform_indices = @transform_9, window_bounds = array<i64: 1, 8, 128>}, {transform_indices = @transform_10, window_bounds = array<i64: 1, 128, 256>}, {transform_indices = @transform_11, window_bounds = array<i64: 1, 256, 128>}, {transform_indices = @transform_12, window_bounds = array<i64: 1, 3, 256>}, {transform_indices = @transform_13, window_bounds = array<i64: 1, 1, 128>}, {transform_indices = @transform_14, window_bounds = array<i64: 1, 64, 128>}]} {
    %c0_i32 = arith.constant 0 : i32
    %0 = arith.cmpi eq, %arg1, %c0_i32 : i32
    %1 = arith.extui %0 : i1 to i32
    %c0_i32_0 = arith.constant 0 : i32
    %2 = arith.cmpi ne, %1, %c0_i32_0 : i32
    scf.if %2 {
      %c0_162 = arith.constant 0 : index
      %c0_163 = arith.constant 0 : index
      %c0_164 = arith.constant 0 : index
      %478 = vector.load %arg2[%c0_162, %c0_163, %c0_164] : memref<1x64x128xf32, #tpu.memory_space<vmem>>, vector<1x64x128xf32>
      %479 = vector.shape_cast %478 : vector<1x64x128xf32> to vector<64x128xf32>
      %c0_165 = arith.constant 0 : index
      %c0_166 = arith.constant 0 : index
      %480 = vector.load %arg17[%c0_165, %c0_166] : memref<64x128xf32, #tpu.memory_space<vmem>>, vector<64x128xf32>
      tpu.vector_store %arg17[%c0_165, %c0_166], %479 {strides = array<i32>} : memref<64x128xf32, #tpu.memory_space<vmem>>, vector<64x128xf32>,
    } else {
    }
    %c0 = arith.constant 0 : index
    %c0_1 = arith.constant 0 : index
    %3 = vector.load %arg17[%c0, %c0_1] : memref<64x128xf32, #tpu.memory_space<vmem>>, vector<64x128xf32>
    %c0_2 = arith.constant 0 : index
    %c0_3 = arith.constant 0 : index
    %c0_4 = arith.constant 0 : index
    %4 = vector.load %arg3[%c0_2, %c0_3, %c0_4] : memref<1x16x128xf32, #tpu.memory_space<vmem>>, vector<1x16x128xf32>
    %5 = vector.shape_cast %4 : vector<1x16x128xf32> to vector<16x128xf32>
    %c0_5 = arith.constant 0 : index
    %c0_6 = arith.constant 0 : index
    %6 = vector.load %arg5[%c0_5, %c0_6] : memref<64x128xf32, #tpu.memory_space<vmem>>, vector<64x128xf32>
    %c0_7 = arith.constant 0 : index
    %c0_8 = arith.constant 0 : index
    %7 = vector.load %arg6[%c0_7, %c0_8] : memref<16x128xf32, #tpu.memory_space<vmem>>, vector<16x128xf32>
    %c0_9 = arith.constant 0 : index
    %c0_10 = arith.constant 0 : index
    %c0_11 = arith.constant 0 : index
    %8 = vector.load %arg4[%c0_9, %c0_10, %c0_11] : memref<1x1x16xf32, #tpu.memory_space<vmem>>, vector<1x1x16xf32>
    %9 = vector.shape_cast %8 : vector<1x1x16xf32> to vector<1x16xf32>
    %c0_12 = arith.constant 0 : index
    %c0_13 = arith.constant 0 : index
    %c0_14 = arith.constant 0 : index
    %10 = vector.load %arg9[%c0_12, %c0_13, %c0_14] : memref<1x10x128xf32, #tpu.memory_space<vmem>>, vector<1x10x128xf32>
    %11 = vector.shape_cast %10 : vector<1x10x128xf32> to vector<10x128xf32>
    %c0_15 = arith.constant 0 : index
    %c0_16 = arith.constant 0 : index
    %c0_17 = arith.constant 0 : index
    %12 = vector.load %arg11[%c0_15, %c0_16, %c0_17] : memref<1x8x128xf32, #tpu.memory_space<vmem>>, vector<1x8x128xf32>
    %13 = vector.shape_cast %12 : vector<1x8x128xf32> to vector<8x128xf32>
    %c0_18 = arith.constant 0 : index
    %c0_19 = arith.constant 0 : index
    %c0_20 = arith.constant 0 : index
    %14 = vector.load %arg14[%c0_18, %c0_19, %c0_20] : memref<1x3x256xf32, #tpu.memory_space<vmem>>, vector<1x3x256xf32>
    %15 = vector.shape_cast %14 : vector<1x3x256xf32> to vector<3x256xf32>
    %16 = vector.extract_strided_slice %11 {offsets = [0, 0], sizes = [1, 128], strides = [1, 1]} : vector<10x128xf32> to vector<1x128xf32>
    %17 = vector.extract_strided_slice %11 {offsets = [1, 0], sizes = [1, 128], strides = [1, 1]} : vector<10x128xf32> to vector<1x128xf32>
    %cst = arith.constant dense<0.000000e+00> : vector<64xf32>
    %18 = vector.multi_reduction <add>, %3, %cst [1] : vector<64x128xf32> to vector<64xf32>
    %19 = vector.shape_cast %18 : vector<64xf32> to vector<64x1xf32>
    %cst_21 = arith.constant 1.280000e+02 : f32
    %20 = vector.broadcast %cst_21 : f32 to vector<64x1xf32>
    %21 = arith.divf %19, %20 : vector<64x1xf32>
    %22 = vector.broadcast %21 : vector<64x1xf32> to vector<64x128xf32>
    %23 = arith.subf %3, %22 : vector<64x128xf32>
    %24 = arith.mulf %23, %23 : vector<64x128xf32>
    %cst_22 = arith.constant dense<0.000000e+00> : vector<64xf32>
    %25 = vector.multi_reduction <add>, %24, %cst_22 [1] : vector<64x128xf32> to vector<64xf32>
    %26 = vector.shape_cast %25 : vector<64xf32> to vector<64x1xf32>
    %cst_23 = arith.constant 1.280000e+02 : f32
    %27 = vector.broadcast %cst_23 : f32 to vector<64x1xf32>
    %28 = arith.divf %26, %27 : vector<64x1xf32>
    %cst_24 = arith.constant 9.99999974E-6 : f32
    %29 = vector.broadcast %cst_24 : f32 to vector<64x1xf32>
    %30 = arith.addf %28, %29 : vector<64x1xf32>
    %31 = math.rsqrt %30 : vector<64x1xf32>
    %32 = vector.broadcast %31 : vector<64x1xf32> to vector<64x128xf32>
    %33 = arith.mulf %23, %32 : vector<64x128xf32>
    %34 = vector.broadcast %16 : vector<1x128xf32> to vector<64x128xf32>
    %35 = arith.mulf %33, %34 : vector<64x128xf32>
    %36 = vector.broadcast %17 : vector<1x128xf32> to vector<64x128xf32>
    %37 = arith.addf %35, %36 : vector<64x128xf32>
    %38 = arith.addf %37, %6 : vector<64x128xf32>
    %39 = arith.truncf %38 : vector<64x128xf32> to vector<64x128xbf16>
    %40 = arith.truncf %37 : vector<64x128xf32> to vector<64x128xbf16>
    %c0_25 = arith.constant 0 : index
    %c0_26 = arith.constant 0 : index
    %c0_27 = arith.constant 0 : index
    %c0_28 = arith.constant 0 : index
    %41 = vector.load %arg10[%c0_25, %c0_26, %c0_27, %c0_28] : memref<1x8x128x128xbf16, #tpu.memory_space<vmem>>, vector<1x1x128x128xbf16>
    %42 = vector.shape_cast %41 : vector<1x1x128x128xbf16> to vector<128x128xbf16>
    %cst_29 = arith.constant dense<0.000000e+00> : vector<64x128xf32>
    %43 = tpu.matmul %39, %42, %cst_29 {dimension_numbers = #tpu.dot_dimension_numbers<[1], [0], [0], [1], [0, 0, 1, 1], [], []>} : vector<64x128xbf16>, vector<128x128xbf16>, vector<64x128xf32> -> vector<64x128xf32>
    %44 = vector.extract_strided_slice %13 {offsets = [0, 0], sizes = [1, 128], strides = [1, 1]} : vector<8x128xf32> to vector<1x128xf32>
    %45 = vector.broadcast %44 : vector<1x128xf32> to vector<64x128xf32>
    %46 = arith.addf %43, %45 : vector<64x128xf32>
    %c0_30 = arith.constant 0 : index
    %c1 = arith.constant 1 : index
    %c0_31 = arith.constant 0 : index
    %c0_32 = arith.constant 0 : index
    %47 = vector.load %arg10[%c0_30, %c1, %c0_31, %c0_32] : memref<1x8x128x128xbf16, #tpu.memory_space<vmem>>, vector<1x1x128x128xbf16>
    %48 = vector.shape_cast %47 : vector<1x1x128x128xbf16> to vector<128x128xbf16>
    %cst_33 = arith.constant dense<0.000000e+00> : vector<64x128xf32>
    %49 = tpu.matmul %39, %48, %cst_33 {dimension_numbers = #tpu.dot_dimension_numbers<[1], [0], [0], [1], [0, 0, 1, 1], [], []>} : vector<64x128xbf16>, vector<128x128xbf16>, vector<64x128xf32> -> vector<64x128xf32>
    %50 = vector.extract_strided_slice %13 {offsets = [1, 0], sizes = [1, 128], strides = [1, 1]} : vector<8x128xf32> to vector<1x128xf32>
    %51 = vector.broadcast %50 : vector<1x128xf32> to vector<64x128xf32>
    %52 = arith.addf %49, %51 : vector<64x128xf32>
    %c0_34 = arith.constant 0 : index
    %c2 = arith.constant 2 : index
    %c0_35 = arith.constant 0 : index
    %c0_36 = arith.constant 0 : index
    %53 = vector.load %arg10[%c0_34, %c2, %c0_35, %c0_36] : memref<1x8x128x128xbf16, #tpu.memory_space<vmem>>, vector<1x1x128x128xbf16>
    %54 = vector.shape_cast %53 : vector<1x1x128x128xbf16> to vector<128x128xbf16>
    %cst_37 = arith.constant dense<0.000000e+00> : vector<64x128xf32>
    %55 = tpu.matmul %40, %54, %cst_37 {dimension_numbers = #tpu.dot_dimension_numbers<[1], [0], [0], [1], [0, 0, 1, 1], [], []>} : vector<64x128xbf16>, vector<128x128xbf16>, vector<64x128xf32> -> vector<64x128xf32>
    %56 = vector.extract_strided_slice %13 {offsets = [2, 0], sizes = [1, 128], strides = [1, 1]} : vector<8x128xf32> to vector<1x128xf32>
    %57 = vector.broadcast %56 : vector<1x128xf32> to vector<64x128xf32>
    %58 = arith.addf %55, %57 : vector<64x128xf32>
    %cst_38 = arith.constant 0.176776692 : f32
    %59 = vector.broadcast %cst_38 : f32 to vector<64x128xf32>
    %60 = arith.mulf %46, %59 : vector<64x128xf32>
    %61 = arith.truncf %52 : vector<64x128xf32> to vector<64x128xbf16>
    %62 = tpu.iota {dimensions = array<i32: 1>} : vector<1x128xi32>
    %cst_39 = arith.constant 0.000000e+00 : f32
    %63 = vector.broadcast %cst_39 : f32 to vector<64x128xf32>
    %c0_i32_40 = arith.constant 0 : i32
    %64 = vector.broadcast %c0_i32_40 : i32 to vector<1x128xi32>
    %65 = arith.cmpi sge, %62, %64 : vector<1x128xi32>
    %c32_i32 = arith.constant 32 : i32
    %66 = vector.broadcast %c32_i32 : i32 to vector<1x128xi32>
    %67 = arith.cmpi slt, %62, %66 : vector<1x128xi32>
    %68 = arith.andi %65, %67 : vector<1x128xi1>
    %cst_41 = arith.constant 0.000000e+00 : f32
    %69 = vector.shape_cast %68 : vector<1x128xi1> to vector<1x128xi1>
    %70 = vector.broadcast %69 : vector<1x128xi1> to vector<64x128xi1>
    %71 = vector.broadcast %cst_41 : f32 to vector<64x128xf32>
    %72 = arith.select %70, %60, %71 : vector<64x128xi1>, vector<64x128xf32>
    %73 = arith.truncf %72 : vector<64x128xf32> to vector<64x128xbf16>
    %cst_42 = arith.constant dense<0.000000e+00> : vector<64x64xf32>
    %74 = tpu.matmul %73, %61, %cst_42 {dimension_numbers = #tpu.dot_dimension_numbers<[1], [1], [0], [0], [0, 0, 1, 0], [], []>} : vector<64x128xbf16>, vector<64x128xbf16>, vector<64x64xf32> -> vector<64x64xf32>
    %cst_43 = arith.constant dense<0xFF800000> : vector<64xf32>
    %75 = vector.multi_reduction <maximumf>, %74, %cst_43 [1] : vector<64x64xf32> to vector<64xf32>
    %76 = vector.shape_cast %75 : vector<64xf32> to vector<64x1xf32>
    %77 = vector.broadcast %76 : vector<64x1xf32> to vector<64x64xf32>
    %78 = arith.subf %74, %77 : vector<64x64xf32>
    %79 = math.exp %78 : vector<64x64xf32>
    %cst_44 = arith.constant dense<0.000000e+00> : vector<64xf32>
    %80 = vector.multi_reduction <add>, %79, %cst_44 [1] : vector<64x64xf32> to vector<64xf32>
    %81 = vector.shape_cast %80 : vector<64xf32> to vector<64x1xf32>
    %82 = tpu.reciprocal %81 {approx = true} : vector<64x1xf32> -> vector<64x1xf32>
    %83 = vector.broadcast %82 : vector<64x1xf32> to vector<64x64xf32>
    %84 = arith.mulf %79, %83 : vector<64x64xf32>
    %cst_45 = arith.constant 0.000000e+00 : f32
    %85 = vector.shape_cast %68 : vector<1x128xi1> to vector<1x128xi1>
    %86 = vector.broadcast %85 : vector<1x128xi1> to vector<64x128xi1>
    %87 = vector.broadcast %cst_45 : f32 to vector<64x128xf32>
    %88 = arith.select %86, %58, %87 : vector<64x128xi1>, vector<64x128xf32>
    %89 = arith.truncf %88 : vector<64x128xf32> to vector<64x128xbf16>
    %90 = arith.truncf %84 : vector<64x64xf32> to vector<64x64xbf16>
    %cst_46 = arith.constant dense<0.000000e+00> : vector<64x128xf32>
    %91 = tpu.matmul %90, %89, %cst_46 {dimension_numbers = #tpu.dot_dimension_numbers<[1], [0], [0], [1], [0, 0, 1, 1], [], []>} : vector<64x64xbf16>, vector<64x128xbf16>, vector<64x128xf32> -> vector<64x128xf32>
    %92 = arith.addf %63, %91 : vector<64x128xf32>
    %c32_i32_47 = arith.constant 32 : i32
    %93 = vector.broadcast %c32_i32_47 : i32 to vector<1x128xi32>
    %94 = arith.cmpi sge, %62, %93 : vector<1x128xi32>
    %c64_i32 = arith.constant 64 : i32
    %95 = vector.broadcast %c64_i32 : i32 to vector<1x128xi32>
    %96 = arith.cmpi slt, %62, %95 : vector<1x128xi32>
    %97 = arith.andi %94, %96 : vector<1x128xi1>
    %cst_48 = arith.constant 0.000000e+00 : f32
    %98 = vector.shape_cast %97 : vector<1x128xi1> to vector<1x128xi1>
    %99 = vector.broadcast %98 : vector<1x128xi1> to vector<64x128xi1>
    %100 = vector.broadcast %cst_48 : f32 to vector<64x128xf32>
    %101 = arith.select %99, %60, %100 : vector<64x128xi1>, vector<64x128xf32>
    %102 = arith.truncf %101 : vector<64x128xf32> to vector<64x128xbf16>
    %cst_49 = arith.constant dense<0.000000e+00> : vector<64x64xf32>
    %103 = tpu.matmul %102, %61, %cst_49 {dimension_numbers = #tpu.dot_dimension_numbers<[1], [1], [0], [0], [0, 0, 1, 0], [], []>} : vector<64x128xbf16>, vector<64x128xbf16>, vector<64x64xf32> -> vector<64x64xf32>
    %cst_50 = arith.constant dense<0xFF800000> : vector<64xf32>
    %104 = vector.multi_reduction <maximumf>, %103, %cst_50 [1] : vector<64x64xf32> to vector<64xf32>
    %105 = vector.shape_cast %104 : vector<64xf32> to vector<64x1xf32>
    %106 = vector.broadcast %105 : vector<64x1xf32> to vector<64x64xf32>
    %107 = arith.subf %103, %106 : vector<64x64xf32>
    %108 = math.exp %107 : vector<64x64xf32>
    %cst_51 = arith.constant dense<0.000000e+00> : vector<64xf32>
    %109 = vector.multi_reduction <add>, %108, %cst_51 [1] : vector<64x64xf32> to vector<64xf32>
    %110 = vector.shape_cast %109 : vector<64xf32> to vector<64x1xf32>
    %111 = tpu.reciprocal %110 {approx = true} : vector<64x1xf32> -> vector<64x1xf32>
    %112 = vector.broadcast %111 : vector<64x1xf32> to vector<64x64xf32>
    %113 = arith.mulf %108, %112 : vector<64x64xf32>
    %cst_52 = arith.constant 0.000000e+00 : f32
    %114 = vector.shape_cast %97 : vector<1x128xi1> to vector<1x128xi1>
    %115 = vector.broadcast %114 : vector<1x128xi1> to vector<64x128xi1>
    %116 = vector.broadcast %cst_52 : f32 to vector<64x128xf32>
    %117 = arith.select %115, %58, %116 : vector<64x128xi1>, vector<64x128xf32>
    %118 = arith.truncf %117 : vector<64x128xf32> to vector<64x128xbf16>
    %119 = arith.truncf %113 : vector<64x64xf32> to vector<64x64xbf16>
    %cst_53 = arith.constant dense<0.000000e+00> : vector<64x128xf32>
    %120 = tpu.matmul %119, %118, %cst_53 {dimension_numbers = #tpu.dot_dimension_numbers<[1], [0], [0], [1], [0, 0, 1, 1], [], []>} : vector<64x64xbf16>, vector<64x128xbf16>, vector<64x128xf32> -> vector<64x128xf32>
    %121 = arith.addf %92, %120 : vector<64x128xf32>
    %c64_i32_54 = arith.constant 64 : i32
    %122 = vector.broadcast %c64_i32_54 : i32 to vector<1x128xi32>
    %123 = arith.cmpi sge, %62, %122 : vector<1x128xi32>
    %c96_i32 = arith.constant 96 : i32
    %124 = vector.broadcast %c96_i32 : i32 to vector<1x128xi32>
    %125 = arith.cmpi slt, %62, %124 : vector<1x128xi32>
    %126 = arith.andi %123, %125 : vector<1x128xi1>
    %cst_55 = arith.constant 0.000000e+00 : f32
    %127 = vector.shape_cast %126 : vector<1x128xi1> to vector<1x128xi1>
    %128 = vector.broadcast %127 : vector<1x128xi1> to vector<64x128xi1>
    %129 = vector.broadcast %cst_55 : f32 to vector<64x128xf32>
    %130 = arith.select %128, %60, %129 : vector<64x128xi1>, vector<64x128xf32>
    %131 = arith.truncf %130 : vector<64x128xf32> to vector<64x128xbf16>
    %cst_56 = arith.constant dense<0.000000e+00> : vector<64x64xf32>
    %132 = tpu.matmul %131, %61, %cst_56 {dimension_numbers = #tpu.dot_dimension_numbers<[1], [1], [0], [0], [0, 0, 1, 0], [], []>} : vector<64x128xbf16>, vector<64x128xbf16>, vector<64x64xf32> -> vector<64x64xf32>
    %cst_57 = arith.constant dense<0xFF800000> : vector<64xf32>
    %133 = vector.multi_reduction <maximumf>, %132, %cst_57 [1] : vector<64x64xf32> to vector<64xf32>
    %134 = vector.shape_cast %133 : vector<64xf32> to vector<64x1xf32>
    %135 = vector.broadcast %134 : vector<64x1xf32> to vector<64x64xf32>
    %136 = arith.subf %132, %135 : vector<64x64xf32>
    %137 = math.exp %136 : vector<64x64xf32>
    %cst_58 = arith.constant dense<0.000000e+00> : vector<64xf32>
    %138 = vector.multi_reduction <add>, %137, %cst_58 [1] : vector<64x64xf32> to vector<64xf32>
    %139 = vector.shape_cast %138 : vector<64xf32> to vector<64x1xf32>
    %140 = tpu.reciprocal %139 {approx = true} : vector<64x1xf32> -> vector<64x1xf32>
    %141 = vector.broadcast %140 : vector<64x1xf32> to vector<64x64xf32>
    %142 = arith.mulf %137, %141 : vector<64x64xf32>
    %cst_59 = arith.constant 0.000000e+00 : f32
    %143 = vector.shape_cast %126 : vector<1x128xi1> to vector<1x128xi1>
    %144 = vector.broadcast %143 : vector<1x128xi1> to vector<64x128xi1>
    %145 = vector.broadcast %cst_59 : f32 to vector<64x128xf32>
    %146 = arith.select %144, %58, %145 : vector<64x128xi1>, vector<64x128xf32>
    %147 = arith.truncf %146 : vector<64x128xf32> to vector<64x128xbf16>
    %148 = arith.truncf %142 : vector<64x64xf32> to vector<64x64xbf16>
    %cst_60 = arith.constant dense<0.000000e+00> : vector<64x128xf32>
    %149 = tpu.matmul %148, %147, %cst_60 {dimension_numbers = #tpu.dot_dimension_numbers<[1], [0], [0], [1], [0, 0, 1, 1], [], []>} : vector<64x64xbf16>, vector<64x128xbf16>, vector<64x128xf32> -> vector<64x128xf32>
    %150 = arith.addf %121, %149 : vector<64x128xf32>
    %c96_i32_61 = arith.constant 96 : i32
    %151 = vector.broadcast %c96_i32_61 : i32 to vector<1x128xi32>
    %152 = arith.cmpi sge, %62, %151 : vector<1x128xi32>
    %c128_i32 = arith.constant 128 : i32
    %153 = vector.broadcast %c128_i32 : i32 to vector<1x128xi32>
    %154 = arith.cmpi slt, %62, %153 : vector<1x128xi32>
    %155 = arith.andi %152, %154 : vector<1x128xi1>
    %cst_62 = arith.constant 0.000000e+00 : f32
    %156 = vector.shape_cast %155 : vector<1x128xi1> to vector<1x128xi1>
    %157 = vector.broadcast %156 : vector<1x128xi1> to vector<64x128xi1>
    %158 = vector.broadcast %cst_62 : f32 to vector<64x128xf32>
    %159 = arith.select %157, %60, %158 : vector<64x128xi1>, vector<64x128xf32>
    %160 = arith.truncf %159 : vector<64x128xf32> to vector<64x128xbf16>
    %cst_63 = arith.constant dense<0.000000e+00> : vector<64x64xf32>
    %161 = tpu.matmul %160, %61, %cst_63 {dimension_numbers = #tpu.dot_dimension_numbers<[1], [1], [0], [0], [0, 0, 1, 0], [], []>} : vector<64x128xbf16>, vector<64x128xbf16>, vector<64x64xf32> -> vector<64x64xf32>
    %cst_64 = arith.constant dense<0xFF800000> : vector<64xf32>
    %162 = vector.multi_reduction <maximumf>, %161, %cst_64 [1] : vector<64x64xf32> to vector<64xf32>
    %163 = vector.shape_cast %162 : vector<64xf32> to vector<64x1xf32>
    %164 = vector.broadcast %163 : vector<64x1xf32> to vector<64x64xf32>
    %165 = arith.subf %161, %164 : vector<64x64xf32>
    %166 = math.exp %165 : vector<64x64xf32>
    %cst_65 = arith.constant dense<0.000000e+00> : vector<64xf32>
    %167 = vector.multi_reduction <add>, %166, %cst_65 [1] : vector<64x64xf32> to vector<64xf32>
    %168 = vector.shape_cast %167 : vector<64xf32> to vector<64x1xf32>
    %169 = tpu.reciprocal %168 {approx = true} : vector<64x1xf32> -> vector<64x1xf32>
    %170 = vector.broadcast %169 : vector<64x1xf32> to vector<64x64xf32>
    %171 = arith.mulf %166, %170 : vector<64x64xf32>
    %cst_66 = arith.constant 0.000000e+00 : f32
    %172 = vector.shape_cast %155 : vector<1x128xi1> to vector<1x128xi1>
    %173 = vector.broadcast %172 : vector<1x128xi1> to vector<64x128xi1>
    %174 = vector.broadcast %cst_66 : f32 to vector<64x128xf32>
    %175 = arith.select %173, %58, %174 : vector<64x128xi1>, vector<64x128xf32>
    %176 = arith.truncf %175 : vector<64x128xf32> to vector<64x128xbf16>
    %177 = arith.truncf %171 : vector<64x64xf32> to vector<64x64xbf16>
    %cst_67 = arith.constant dense<0.000000e+00> : vector<64x128xf32>
    %178 = tpu.matmul %177, %176, %cst_67 {dimension_numbers = #tpu.dot_dimension_numbers<[1], [0], [0], [1], [0, 0, 1, 1], [], []>} : vector<64x64xbf16>, vector<64x128xbf16>, vector<64x128xf32> -> vector<64x128xf32>
    %179 = arith.addf %150, %178 : vector<64x128xf32>
    %180 = arith.truncf %179 : vector<64x128xf32> to vector<64x128xbf16>
    %c0_68 = arith.constant 0 : index
    %c3 = arith.constant 3 : index
    %c0_69 = arith.constant 0 : index
    %c0_70 = arith.constant 0 : index
    %181 = vector.load %arg10[%c0_68, %c3, %c0_69, %c0_70] : memref<1x8x128x128xbf16, #tpu.memory_space<vmem>>, vector<1x1x128x128xbf16>
    %182 = vector.shape_cast %181 : vector<1x1x128x128xbf16> to vector<128x128xbf16>
    %cst_71 = arith.constant dense<0.000000e+00> : vector<64x128xf32>
    %183 = tpu.matmul %180, %182, %cst_71 {dimension_numbers = #tpu.dot_dimension_numbers<[1], [0], [0], [1], [0, 0, 1, 1], [], []>} : vector<64x128xbf16>, vector<128x128xbf16>, vector<64x128xf32> -> vector<64x128xf32>
    %184 = vector.extract_strided_slice %13 {offsets = [3, 0], sizes = [1, 128], strides = [1, 1]} : vector<8x128xf32> to vector<1x128xf32>
    %185 = vector.broadcast %184 : vector<1x128xf32> to vector<64x128xf32>
    %186 = arith.addf %183, %185 : vector<64x128xf32>
    %187 = vector.extract_strided_slice %11 {offsets = [2, 0], sizes = [1, 128], strides = [1, 1]} : vector<10x128xf32> to vector<1x128xf32>
    %188 = vector.extract_strided_slice %11 {offsets = [3, 0], sizes = [1, 128], strides = [1, 1]} : vector<10x128xf32> to vector<1x128xf32>
    %cst_72 = arith.constant dense<0.000000e+00> : vector<64xf32>
    %189 = vector.multi_reduction <add>, %186, %cst_72 [1] : vector<64x128xf32> to vector<64xf32>
    %190 = vector.shape_cast %189 : vector<64xf32> to vector<64x1xf32>
    %cst_73 = arith.constant 1.280000e+02 : f32
    %191 = vector.broadcast %cst_73 : f32 to vector<64x1xf32>
    %192 = arith.divf %190, %191 : vector<64x1xf32>
    %193 = vector.broadcast %192 : vector<64x1xf32> to vector<64x128xf32>
    %194 = arith.subf %186, %193 : vector<64x128xf32>
    %195 = arith.mulf %194, %194 : vector<64x128xf32>
    %cst_74 = arith.constant dense<0.000000e+00> : vector<64xf32>
    %196 = vector.multi_reduction <add>, %195, %cst_74 [1] : vector<64x128xf32> to vector<64xf32>
    %197 = vector.shape_cast %196 : vector<64xf32> to vector<64x1xf32>
    %cst_75 = arith.constant 1.280000e+02 : f32
    %198 = vector.broadcast %cst_75 : f32 to vector<64x1xf32>
    %199 = arith.divf %197, %198 : vector<64x1xf32>
    %cst_76 = arith.constant 9.99999974E-6 : f32
    %200 = vector.broadcast %cst_76 : f32 to vector<64x1xf32>
    %201 = arith.addf %199, %200 : vector<64x1xf32>
    %202 = math.rsqrt %201 : vector<64x1xf32>
    %203 = vector.broadcast %202 : vector<64x1xf32> to vector<64x128xf32>
    %204 = arith.mulf %194, %203 : vector<64x128xf32>
    %205 = vector.broadcast %187 : vector<1x128xf32> to vector<64x128xf32>
    %206 = arith.mulf %204, %205 : vector<64x128xf32>
    %207 = vector.broadcast %188 : vector<1x128xf32> to vector<64x128xf32>
    %208 = arith.addf %206, %207 : vector<64x128xf32>
    %209 = arith.addf %3, %208 : vector<64x128xf32>
    %210 = vector.extract_strided_slice %11 {offsets = [4, 0], sizes = [1, 128], strides = [1, 1]} : vector<10x128xf32> to vector<1x128xf32>
    %211 = vector.extract_strided_slice %11 {offsets = [5, 0], sizes = [1, 128], strides = [1, 1]} : vector<10x128xf32> to vector<1x128xf32>
    %cst_77 = arith.constant dense<0.000000e+00> : vector<64xf32>
    %212 = vector.multi_reduction <add>, %209, %cst_77 [1] : vector<64x128xf32> to vector<64xf32>
    %213 = vector.shape_cast %212 : vector<64xf32> to vector<64x1xf32>
    %cst_78 = arith.constant 1.280000e+02 : f32
    %214 = vector.broadcast %cst_78 : f32 to vector<64x1xf32>
    %215 = arith.divf %213, %214 : vector<64x1xf32>
    %216 = vector.broadcast %215 : vector<64x1xf32> to vector<64x128xf32>
    %217 = arith.subf %209, %216 : vector<64x128xf32>
    %218 = arith.mulf %217, %217 : vector<64x128xf32>
    %cst_79 = arith.constant dense<0.000000e+00> : vector<64xf32>
    %219 = vector.multi_reduction <add>, %218, %cst_79 [1] : vector<64x128xf32> to vector<64xf32>
    %220 = vector.shape_cast %219 : vector<64xf32> to vector<64x1xf32>
    %cst_80 = arith.constant 1.280000e+02 : f32
    %221 = vector.broadcast %cst_80 : f32 to vector<64x1xf32>
    %222 = arith.divf %220, %221 : vector<64x1xf32>
    %cst_81 = arith.constant 9.99999974E-6 : f32
    %223 = vector.broadcast %cst_81 : f32 to vector<64x1xf32>
    %224 = arith.addf %222, %223 : vector<64x1xf32>
    %225 = math.rsqrt %224 : vector<64x1xf32>
    %226 = vector.broadcast %225 : vector<64x1xf32> to vector<64x128xf32>
    %227 = arith.mulf %217, %226 : vector<64x128xf32>
    %228 = vector.broadcast %210 : vector<1x128xf32> to vector<64x128xf32>
    %229 = arith.mulf %227, %228 : vector<64x128xf32>
    %230 = vector.broadcast %211 : vector<1x128xf32> to vector<64x128xf32>
    %231 = arith.addf %229, %230 : vector<64x128xf32>
    %232 = arith.addf %231, %6 : vector<64x128xf32>
    %233 = arith.truncf %232 : vector<64x128xf32> to vector<64x128xbf16>
    %234 = arith.addf %5, %7 : vector<16x128xf32>
    %235 = arith.truncf %234 : vector<16x128xf32> to vector<16x128xbf16>
    %236 = arith.truncf %5 : vector<16x128xf32> to vector<16x128xbf16>
    %c0_82 = arith.constant 0 : index
    %c4 = arith.constant 4 : index
    %c0_83 = arith.constant 0 : index
    %c0_84 = arith.constant 0 : index
    %237 = vector.load %arg10[%c0_82, %c4, %c0_83, %c0_84] : memref<1x8x128x128xbf16, #tpu.memory_space<vmem>>, vector<1x1x128x128xbf16>
    %238 = vector.shape_cast %237 : vector<1x1x128x128xbf16> to vector<128x128xbf16>
    %cst_85 = arith.constant dense<0.000000e+00> : vector<64x128xf32>
    %239 = tpu.matmul %233, %238, %cst_85 {dimension_numbers = #tpu.dot_dimension_numbers<[1], [0], [0], [1], [0, 0, 1, 1], [], []>} : vector<64x128xbf16>, vector<128x128xbf16>, vector<64x128xf32> -> vector<64x128xf32>
    %240 = vector.extract_strided_slice %13 {offsets = [4, 0], sizes = [1, 128], strides = [1, 1]} : vector<8x128xf32> to vector<1x128xf32>
    %241 = vector.broadcast %240 : vector<1x128xf32> to vector<64x128xf32>
    %242 = arith.addf %239, %241 : vector<64x128xf32>
    %c0_86 = arith.constant 0 : index
    %c5 = arith.constant 5 : index
    %c0_87 = arith.constant 0 : index
    %c0_88 = arith.constant 0 : index
    %243 = vector.load %arg10[%c0_86, %c5, %c0_87, %c0_88] : memref<1x8x128x128xbf16, #tpu.memory_space<vmem>>, vector<1x1x128x128xbf16>
    %244 = vector.shape_cast %243 : vector<1x1x128x128xbf16> to vector<128x128xbf16>
    %cst_89 = arith.constant dense<0.000000e+00> : vector<16x128xf32>
    %245 = tpu.matmul %235, %244, %cst_89 {dimension_numbers = #tpu.dot_dimension_numbers<[1], [0], [0], [1], [0, 0, 1, 1], [], []>} : vector<16x128xbf16>, vector<128x128xbf16>, vector<16x128xf32> -> vector<16x128xf32>
    %246 = vector.extract_strided_slice %13 {offsets = [5, 0], sizes = [1, 128], strides = [1, 1]} : vector<8x128xf32> to vector<1x128xf32>
    %247 = vector.broadcast %246 : vector<1x128xf32> to vector<16x128xf32>
    %248 = arith.addf %245, %247 : vector<16x128xf32>
    %c0_90 = arith.constant 0 : index
    %c6 = arith.constant 6 : index
    %c0_91 = arith.constant 0 : index
    %c0_92 = arith.constant 0 : index
    %249 = vector.load %arg10[%c0_90, %c6, %c0_91, %c0_92] : memref<1x8x128x128xbf16, #tpu.memory_space<vmem>>, vector<1x1x128x128xbf16>
    %250 = vector.shape_cast %249 : vector<1x1x128x128xbf16> to vector<128x128xbf16>
    %cst_93 = arith.constant dense<0.000000e+00> : vector<16x128xf32>
    %251 = tpu.matmul %236, %250, %cst_93 {dimension_numbers = #tpu.dot_dimension_numbers<[1], [0], [0], [1], [0, 0, 1, 1], [], []>} : vector<16x128xbf16>, vector<128x128xbf16>, vector<16x128xf32> -> vector<16x128xf32>
    %252 = vector.extract_strided_slice %13 {offsets = [6, 0], sizes = [1, 128], strides = [1, 1]} : vector<8x128xf32> to vector<1x128xf32>
    %253 = vector.broadcast %252 : vector<1x128xf32> to vector<16x128xf32>
    %254 = arith.addf %251, %253 : vector<16x128xf32>
    %cst_94 = arith.constant 0.176776692 : f32
    %255 = vector.broadcast %cst_94 : f32 to vector<64x128xf32>
    %256 = arith.mulf %242, %255 : vector<64x128xf32>
    %257 = arith.truncf %248 : vector<16x128xf32> to vector<16x128xbf16>
    %258 = tpu.iota {dimensions = array<i32: 1>} : vector<1x128xi32>
    %259 = vector.shape_cast %9 : vector<1x16xf32> to vector<1x16xf32>
    %260 = vector.broadcast %259 : vector<1x16xf32> to vector<64x16xf32>
    %cst_95 = arith.constant 0.000000e+00 : f32
    %261 = vector.broadcast %cst_95 : f32 to vector<64x128xf32>
    %c0_i32_96 = arith.constant 0 : i32
    %262 = vector.broadcast %c0_i32_96 : i32 to vector<1x128xi32>
    %263 = arith.cmpi sge, %258, %262 : vector<1x128xi32>
    %c32_i32_97 = arith.constant 32 : i32
    %264 = vector.broadcast %c32_i32_97 : i32 to vector<1x128xi32>
    %265 = arith.cmpi slt, %258, %264 : vector<1x128xi32>
    %266 = arith.andi %263, %265 : vector<1x128xi1>
    %cst_98 = arith.constant 0.000000e+00 : f32
    %267 = vector.shape_cast %266 : vector<1x128xi1> to vector<1x128xi1>
    %268 = vector.broadcast %267 : vector<1x128xi1> to vector<64x128xi1>
    %269 = vector.broadcast %cst_98 : f32 to vector<64x128xf32>
    %270 = arith.select %268, %256, %269 : vector<64x128xi1>, vector<64x128xf32>
    %271 = arith.truncf %270 : vector<64x128xf32> to vector<64x128xbf16>
    %cst_99 = arith.constant dense<0.000000e+00> : vector<64x16xf32>
    %272 = tpu.matmul %271, %257, %cst_99 {dimension_numbers = #tpu.dot_dimension_numbers<[1], [1], [0], [0], [0, 0, 1, 0], [], []>} : vector<64x128xbf16>, vector<16x128xbf16>, vector<64x16xf32> -> vector<64x16xf32>
    %273 = arith.addf %272, %260 : vector<64x16xf32>
    %cst_100 = arith.constant dense<0xFF800000> : vector<64xf32>
    %274 = vector.multi_reduction <maximumf>, %273, %cst_100 [1] : vector<64x16xf32> to vector<64xf32>
    %275 = vector.shape_cast %274 : vector<64xf32> to vector<64x1xf32>
    %276 = vector.broadcast %275 : vector<64x1xf32> to vector<64x16xf32>
    %277 = arith.subf %273, %276 : vector<64x16xf32>
    %278 = math.exp %277 : vector<64x16xf32>
    %cst_101 = arith.constant dense<0.000000e+00> : vector<64xf32>
    %279 = vector.multi_reduction <add>, %278, %cst_101 [1] : vector<64x16xf32> to vector<64xf32>
    %280 = vector.shape_cast %279 : vector<64xf32> to vector<64x1xf32>
    %281 = tpu.reciprocal %280 {approx = true} : vector<64x1xf32> -> vector<64x1xf32>
    %282 = vector.broadcast %281 : vector<64x1xf32> to vector<64x16xf32>
    %283 = arith.mulf %278, %282 : vector<64x16xf32>
    %cst_102 = arith.constant 0.000000e+00 : f32
    %284 = vector.shape_cast %266 : vector<1x128xi1> to vector<1x128xi1>
    %285 = vector.broadcast %284 : vector<1x128xi1> to vector<16x128xi1>
    %286 = vector.broadcast %cst_102 : f32 to vector<16x128xf32>
    %287 = arith.select %285, %254, %286 : vector<16x128xi1>, vector<16x128xf32>
    %288 = arith.truncf %287 : vector<16x128xf32> to vector<16x128xbf16>
    %289 = arith.truncf %283 : vector<64x16xf32> to vector<64x16xbf16>
    %cst_103 = arith.constant dense<0.000000e+00> : vector<64x128xf32>
    %290 = tpu.matmul %289, %288, %cst_103 {dimension_numbers = #tpu.dot_dimension_numbers<[1], [0], [0], [1], [0, 0, 1, 1], [], []>} : vector<64x16xbf16>, vector<16x128xbf16>, vector<64x128xf32> -> vector<64x128xf32>
    %291 = arith.addf %261, %290 : vector<64x128xf32>
    %c32_i32_104 = arith.constant 32 : i32
    %292 = vector.broadcast %c32_i32_104 : i32 to vector<1x128xi32>
    %293 = arith.cmpi sge, %258, %292 : vector<1x128xi32>
    %c64_i32_105 = arith.constant 64 : i32
    %294 = vector.broadcast %c64_i32_105 : i32 to vector<1x128xi32>
    %295 = arith.cmpi slt, %258, %294 : vector<1x128xi32>
    %296 = arith.andi %293, %295 : vector<1x128xi1>
    %cst_106 = arith.constant 0.000000e+00 : f32
    %297 = vector.shape_cast %296 : vector<1x128xi1> to vector<1x128xi1>
    %298 = vector.broadcast %297 : vector<1x128xi1> to vector<64x128xi1>
    %299 = vector.broadcast %cst_106 : f32 to vector<64x128xf32>
    %300 = arith.select %298, %256, %299 : vector<64x128xi1>, vector<64x128xf32>
    %301 = arith.truncf %300 : vector<64x128xf32> to vector<64x128xbf16>
    %cst_107 = arith.constant dense<0.000000e+00> : vector<64x16xf32>
    %302 = tpu.matmul %301, %257, %cst_107 {dimension_numbers = #tpu.dot_dimension_numbers<[1], [1], [0], [0], [0, 0, 1, 0], [], []>} : vector<64x128xbf16>, vector<16x128xbf16>, vector<64x16xf32> -> vector<64x16xf32>
    %303 = arith.addf %302, %260 : vector<64x16xf32>
    %cst_108 = arith.constant dense<0xFF800000> : vector<64xf32>
    %304 = vector.multi_reduction <maximumf>, %303, %cst_108 [1] : vector<64x16xf32> to vector<64xf32>
    %305 = vector.shape_cast %304 : vector<64xf32> to vector<64x1xf32>
    %306 = vector.broadcast %305 : vector<64x1xf32> to vector<64x16xf32>
    %307 = arith.subf %303, %306 : vector<64x16xf32>
    %308 = math.exp %307 : vector<64x16xf32>
    %cst_109 = arith.constant dense<0.000000e+00> : vector<64xf32>
    %309 = vector.multi_reduction <add>, %308, %cst_109 [1] : vector<64x16xf32> to vector<64xf32>
    %310 = vector.shape_cast %309 : vector<64xf32> to vector<64x1xf32>
    %311 = tpu.reciprocal %310 {approx = true} : vector<64x1xf32> -> vector<64x1xf32>
    %312 = vector.broadcast %311 : vector<64x1xf32> to vector<64x16xf32>
    %313 = arith.mulf %308, %312 : vector<64x16xf32>
    %cst_110 = arith.constant 0.000000e+00 : f32
    %314 = vector.shape_cast %296 : vector<1x128xi1> to vector<1x128xi1>
    %315 = vector.broadcast %314 : vector<1x128xi1> to vector<16x128xi1>
    %316 = vector.broadcast %cst_110 : f32 to vector<16x128xf32>
    %317 = arith.select %315, %254, %316 : vector<16x128xi1>, vector<16x128xf32>
    %318 = arith.truncf %317 : vector<16x128xf32> to vector<16x128xbf16>
    %319 = arith.truncf %313 : vector<64x16xf32> to vector<64x16xbf16>
    %cst_111 = arith.constant dense<0.000000e+00> : vector<64x128xf32>
    %320 = tpu.matmul %319, %318, %cst_111 {dimension_numbers = #tpu.dot_dimension_numbers<[1], [0], [0], [1], [0, 0, 1, 1], [], []>} : vector<64x16xbf16>, vector<16x128xbf16>, vector<64x128xf32> -> vector<64x128xf32>
    %321 = arith.addf %291, %320 : vector<64x128xf32>
    %c64_i32_112 = arith.constant 64 : i32
    %322 = vector.broadcast %c64_i32_112 : i32 to vector<1x128xi32>
    %323 = arith.cmpi sge, %258, %322 : vector<1x128xi32>
    %c96_i32_113 = arith.constant 96 : i32
    %324 = vector.broadcast %c96_i32_113 : i32 to vector<1x128xi32>
    %325 = arith.cmpi slt, %258, %324 : vector<1x128xi32>
    %326 = arith.andi %323, %325 : vector<1x128xi1>
    %cst_114 = arith.constant 0.000000e+00 : f32
    %327 = vector.shape_cast %326 : vector<1x128xi1> to vector<1x128xi1>
    %328 = vector.broadcast %327 : vector<1x128xi1> to vector<64x128xi1>
    %329 = vector.broadcast %cst_114 : f32 to vector<64x128xf32>
    %330 = arith.select %328, %256, %329 : vector<64x128xi1>, vector<64x128xf32>
    %331 = arith.truncf %330 : vector<64x128xf32> to vector<64x128xbf16>
    %cst_115 = arith.constant dense<0.000000e+00> : vector<64x16xf32>
    %332 = tpu.matmul %331, %257, %cst_115 {dimension_numbers = #tpu.dot_dimension_numbers<[1], [1], [0], [0], [0, 0, 1, 0], [], []>} : vector<64x128xbf16>, vector<16x128xbf16>, vector<64x16xf32> -> vector<64x16xf32>
    %333 = arith.addf %332, %260 : vector<64x16xf32>
    %cst_116 = arith.constant dense<0xFF800000> : vector<64xf32>
    %334 = vector.multi_reduction <maximumf>, %333, %cst_116 [1] : vector<64x16xf32> to vector<64xf32>
    %335 = vector.shape_cast %334 : vector<64xf32> to vector<64x1xf32>
    %336 = vector.broadcast %335 : vector<64x1xf32> to vector<64x16xf32>
    %337 = arith.subf %333, %336 : vector<64x16xf32>
    %338 = math.exp %337 : vector<64x16xf32>
    %cst_117 = arith.constant dense<0.000000e+00> : vector<64xf32>
    %339 = vector.multi_reduction <add>, %338, %cst_117 [1] : vector<64x16xf32> to vector<64xf32>
    %340 = vector.shape_cast %339 : vector<64xf32> to vector<64x1xf32>
    %341 = tpu.reciprocal %340 {approx = true} : vector<64x1xf32> -> vector<64x1xf32>
    %342 = vector.broadcast %341 : vector<64x1xf32> to vector<64x16xf32>
    %343 = arith.mulf %338, %342 : vector<64x16xf32>
    %cst_118 = arith.constant 0.000000e+00 : f32
    %344 = vector.shape_cast %326 : vector<1x128xi1> to vector<1x128xi1>
    %345 = vector.broadcast %344 : vector<1x128xi1> to vector<16x128xi1>
    %346 = vector.broadcast %cst_118 : f32 to vector<16x128xf32>
    %347 = arith.select %345, %254, %346 : vector<16x128xi1>, vector<16x128xf32>
    %348 = arith.truncf %347 : vector<16x128xf32> to vector<16x128xbf16>
    %349 = arith.truncf %343 : vector<64x16xf32> to vector<64x16xbf16>
    %cst_119 = arith.constant dense<0.000000e+00> : vector<64x128xf32>
    %350 = tpu.matmul %349, %348, %cst_119 {dimension_numbers = #tpu.dot_dimension_numbers<[1], [0], [0], [1], [0, 0, 1, 1], [], []>} : vector<64x16xbf16>, vector<16x128xbf16>, vector<64x128xf32> -> vector<64x128xf32>
    %351 = arith.addf %321, %350 : vector<64x128xf32>
    %c96_i32_120 = arith.constant 96 : i32
    %352 = vector.broadcast %c96_i32_120 : i32 to vector<1x128xi32>
    %353 = arith.cmpi sge, %258, %352 : vector<1x128xi32>
    %c128_i32_121 = arith.constant 128 : i32
    %354 = vector.broadcast %c128_i32_121 : i32 to vector<1x128xi32>
    %355 = arith.cmpi slt, %258, %354 : vector<1x128xi32>
    %356 = arith.andi %353, %355 : vector<1x128xi1>
    %cst_122 = arith.constant 0.000000e+00 : f32
    %357 = vector.shape_cast %356 : vector<1x128xi1> to vector<1x128xi1>
    %358 = vector.broadcast %357 : vector<1x128xi1> to vector<64x128xi1>
    %359 = vector.broadcast %cst_122 : f32 to vector<64x128xf32>
    %360 = arith.select %358, %256, %359 : vector<64x128xi1>, vector<64x128xf32>
    %361 = arith.truncf %360 : vector<64x128xf32> to vector<64x128xbf16>
    %cst_123 = arith.constant dense<0.000000e+00> : vector<64x16xf32>
    %362 = tpu.matmul %361, %257, %cst_123 {dimension_numbers = #tpu.dot_dimension_numbers<[1], [1], [0], [0], [0, 0, 1, 0], [], []>} : vector<64x128xbf16>, vector<16x128xbf16>, vector<64x16xf32> -> vector<64x16xf32>
    %363 = arith.addf %362, %260 : vector<64x16xf32>
    %cst_124 = arith.constant dense<0xFF800000> : vector<64xf32>
    %364 = vector.multi_reduction <maximumf>, %363, %cst_124 [1] : vector<64x16xf32> to vector<64xf32>
    %365 = vector.shape_cast %364 : vector<64xf32> to vector<64x1xf32>
    %366 = vector.broadcast %365 : vector<64x1xf32> to vector<64x16xf32>
    %367 = arith.subf %363, %366 : vector<64x16xf32>
    %368 = math.exp %367 : vector<64x16xf32>
    %cst_125 = arith.constant dense<0.000000e+00> : vector<64xf32>
    %369 = vector.multi_reduction <add>, %368, %cst_125 [1] : vector<64x16xf32> to vector<64xf32>
    %370 = vector.shape_cast %369 : vector<64xf32> to vector<64x1xf32>
    %371 = tpu.reciprocal %370 {approx = true} : vector<64x1xf32> -> vector<64x1xf32>
    %372 = vector.broadcast %371 : vector<64x1xf32> to vector<64x16xf32>
    %373 = arith.mulf %368, %372 : vector<64x16xf32>
    %cst_126 = arith.constant 0.000000e+00 : f32
    %374 = vector.shape_cast %356 : vector<1x128xi1> to vector<1x128xi1>
    %375 = vector.broadcast %374 : vector<1x128xi1> to vector<16x128xi1>
    %376 = vector.broadcast %cst_126 : f32 to vector<16x128xf32>
    %377 = arith.select %375, %254, %376 : vector<16x128xi1>, vector<16x128xf32>
    %378 = arith.truncf %377 : vector<16x128xf32> to vector<16x128xbf16>
    %379 = arith.truncf %373 : vector<64x16xf32> to vector<64x16xbf16>
    %cst_127 = arith.constant dense<0.000000e+00> : vector<64x128xf32>
    %380 = tpu.matmul %379, %378, %cst_127 {dimension_numbers = #tpu.dot_dimension_numbers<[1], [0], [0], [1], [0, 0, 1, 1], [], []>} : vector<64x16xbf16>, vector<16x128xbf16>, vector<64x128xf32> -> vector<64x128xf32>
    %381 = arith.addf %351, %380 : vector<64x128xf32>
    %382 = arith.truncf %381 : vector<64x128xf32> to vector<64x128xbf16>
    %c0_128 = arith.constant 0 : index
    %c7 = arith.constant 7 : index
    %c0_129 = arith.constant 0 : index
    %c0_130 = arith.constant 0 : index
    %383 = vector.load %arg10[%c0_128, %c7, %c0_129, %c0_130] : memref<1x8x128x128xbf16, #tpu.memory_space<vmem>>, vector<1x1x128x128xbf16>
    %384 = vector.shape_cast %383 : vector<1x1x128x128xbf16> to vector<128x128xbf16>
    %cst_131 = arith.constant dense<0.000000e+00> : vector<64x128xf32>
    %385 = tpu.matmul %382, %384, %cst_131 {dimension_numbers = #tpu.dot_dimension_numbers<[1], [0], [0], [1], [0, 0, 1, 1], [], []>} : vector<64x128xbf16>, vector<128x128xbf16>, vector<64x128xf32> -> vector<64x128xf32>
    %386 = vector.extract_strided_slice %13 {offsets = [7, 0], sizes = [1, 128], strides = [1, 1]} : vector<8x128xf32> to vector<1x128xf32>
    %387 = vector.broadcast %386 : vector<1x128xf32> to vector<64x128xf32>
    %388 = arith.addf %385, %387 : vector<64x128xf32>
    %389 = vector.extract_strided_slice %11 {offsets = [6, 0], sizes = [1, 128], strides = [1, 1]} : vector<10x128xf32> to vector<1x128xf32>
    %390 = vector.extract_strided_slice %11 {offsets = [7, 0], sizes = [1, 128], strides = [1, 1]} : vector<10x128xf32> to vector<1x128xf32>
    %cst_132 = arith.constant dense<0.000000e+00> : vector<64xf32>
    %391 = vector.multi_reduction <add>, %388, %cst_132 [1] : vector<64x128xf32> to vector<64xf32>
    %392 = vector.shape_cast %391 : vector<64xf32> to vector<64x1xf32>
    %cst_133 = arith.constant 1.280000e+02 : f32
    %393 = vector.broadcast %cst_133 : f32 to vector<64x1xf32>
    %394 = arith.divf %392, %393 : vector<64x1xf32>
    %395 = vector.broadcast %394 : vector<64x1xf32> to vector<64x128xf32>
    %396 = arith.subf %388, %395 : vector<64x128xf32>
    %397 = arith.mulf %396, %396 : vector<64x128xf32>
    %cst_134 = arith.constant dense<0.000000e+00> : vector<64xf32>
    %398 = vector.multi_reduction <add>, %397, %cst_134 [1] : vector<64x128xf32> to vector<64xf32>
    %399 = vector.shape_cast %398 : vector<64xf32> to vector<64x1xf32>
    %cst_135 = arith.constant 1.280000e+02 : f32
    %400 = vector.broadcast %cst_135 : f32 to vector<64x1xf32>
    %401 = arith.divf %399, %400 : vector<64x1xf32>
    %cst_136 = arith.constant 9.99999974E-6 : f32
    %402 = vector.broadcast %cst_136 : f32 to vector<64x1xf32>
    %403 = arith.addf %401, %402 : vector<64x1xf32>
    %404 = math.rsqrt %403 : vector<64x1xf32>
    %405 = vector.broadcast %404 : vector<64x1xf32> to vector<64x128xf32>
    %406 = arith.mulf %396, %405 : vector<64x128xf32>
    %407 = vector.broadcast %389 : vector<1x128xf32> to vector<64x128xf32>
    %408 = arith.mulf %406, %407 : vector<64x128xf32>
    %409 = vector.broadcast %390 : vector<1x128xf32> to vector<64x128xf32>
    %410 = arith.addf %408, %409 : vector<64x128xf32>
    %411 = arith.addf %209, %410 : vector<64x128xf32>
    %412 = vector.extract_strided_slice %11 {offsets = [8, 0], sizes = [1, 128], strides = [1, 1]} : vector<10x128xf32> to vector<1x128xf32>
    %413 = vector.extract_strided_slice %11 {offsets = [9, 0], sizes = [1, 128], strides = [1, 1]} : vector<10x128xf32> to vector<1x128xf32>
    %cst_137 = arith.constant dense<0.000000e+00> : vector<64xf32>
    %414 = vector.multi_reduction <add>, %411, %cst_137 [1] : vector<64x128xf32> to vector<64xf32>
    %415 = vector.shape_cast %414 : vector<64xf32> to vector<64x1xf32>
    %cst_138 = arith.constant 1.280000e+02 : f32
    %416 = vector.broadcast %cst_138 : f32 to vector<64x1xf32>
    %417 = arith.divf %415, %416 : vector<64x1xf32>
    %418 = vector.broadcast %417 : vector<64x1xf32> to vector<64x128xf32>
    %419 = arith.subf %411, %418 : vector<64x128xf32>
    %420 = arith.mulf %419, %419 : vector<64x128xf32>
    %cst_139 = arith.constant dense<0.000000e+00> : vector<64xf32>
    %421 = vector.multi_reduction <add>, %420, %cst_139 [1] : vector<64x128xf32> to vector<64xf32>
    %422 = vector.shape_cast %421 : vector<64xf32> to vector<64x1xf32>
    %cst_140 = arith.constant 1.280000e+02 : f32
    %423 = vector.broadcast %cst_140 : f32 to vector<64x1xf32>
    %424 = arith.divf %422, %423 : vector<64x1xf32>
    %cst_141 = arith.constant 9.99999974E-6 : f32
    %425 = vector.broadcast %cst_141 : f32 to vector<64x1xf32>
    %426 = arith.addf %424, %425 : vector<64x1xf32>
    %427 = math.rsqrt %426 : vector<64x1xf32>
    %428 = vector.broadcast %427 : vector<64x1xf32> to vector<64x128xf32>
    %429 = arith.mulf %419, %428 : vector<64x128xf32>
    %430 = vector.broadcast %412 : vector<1x128xf32> to vector<64x128xf32>
    %431 = arith.mulf %429, %430 : vector<64x128xf32>
    %432 = vector.broadcast %413 : vector<1x128xf32> to vector<64x128xf32>
    %433 = arith.addf %431, %432 : vector<64x128xf32>
    %434 = arith.truncf %433 : vector<64x128xf32> to vector<64x128xbf16>
    %c0_142 = arith.constant 0 : index
    %c0_143 = arith.constant 0 : index
    %c0_144 = arith.constant 0 : index
    %435 = vector.load %arg12[%c0_142, %c0_143, %c0_144] : memref<1x128x256xbf16, #tpu.memory_space<vmem>>, vector<1x128x256xbf16>
    %436 = vector.shape_cast %435 : vector<1x128x256xbf16> to vector<128x256xbf16>
    %cst_145 = arith.constant dense<0.000000e+00> : vector<64x256xf32>
    %437 = tpu.matmul %434, %436, %cst_145 {dimension_numbers = #tpu.dot_dimension_numbers<[1], [0], [0], [1], [0, 0, 1, 1], [], []>} : vector<64x128xbf16>, vector<128x256xbf16>, vector<64x256xf32> -> vector<64x256xf32>
    %438 = vector.extract_strided_slice %15 {offsets = [0, 0], sizes = [1, 256], strides = [1, 1]} : vector<3x256xf32> to vector<1x256xf32>
    %439 = vector.broadcast %438 : vector<1x256xf32> to vector<64x256xf32>
    %440 = arith.addf %437, %439 : vector<64x256xf32>
    %cst_146 = arith.constant 0.000000e+00 : f32
    %441 = vector.broadcast %cst_146 : f32 to vector<64x256xf32>
    %442 = arith.maximumf %440, %441 : vector<64x256xf32>
    %443 = vector.extract_strided_slice %15 {offsets = [1, 0], sizes = [1, 256], strides = [1, 1]} : vector<3x256xf32> to vector<1x256xf32>
    %444 = vector.extract_strided_slice %15 {offsets = [2, 0], sizes = [1, 256], strides = [1, 1]} : vector<3x256xf32> to vector<1x256xf32>
    %cst_147 = arith.constant dense<0.000000e+00> : vector<64xf32>
    %445 = vector.multi_reduction <add>, %442, %cst_147 [1] : vector<64x256xf32> to vector<64xf32>
    %446 = vector.shape_cast %445 : vector<64xf32> to vector<64x1xf32>
    %cst_148 = arith.constant 2.560000e+02 : f32
    %447 = vector.broadcast %cst_148 : f32 to vector<64x1xf32>
    %448 = arith.divf %446, %447 : vector<64x1xf32>
    %449 = vector.broadcast %448 : vector<64x1xf32> to vector<64x256xf32>
    %450 = arith.subf %442, %449 : vector<64x256xf32>
    %451 = arith.mulf %450, %450 : vector<64x256xf32>
    %cst_149 = arith.constant dense<0.000000e+00> : vector<64xf32>
    %452 = vector.multi_reduction <add>, %451, %cst_149 [1] : vector<64x256xf32> to vector<64xf32>
    %453 = vector.shape_cast %452 : vector<64xf32> to vector<64x1xf32>
    %cst_150 = arith.constant 2.560000e+02 : f32
    %454 = vector.broadcast %cst_150 : f32 to vector<64x1xf32>
    %455 = arith.divf %453, %454 : vector<64x1xf32>
    %cst_151 = arith.constant 9.99999974E-6 : f32
    %456 = vector.broadcast %cst_151 : f32 to vector<64x1xf32>
    %457 = arith.addf %455, %456 : vector<64x1xf32>
    %458 = math.rsqrt %457 : vector<64x1xf32>
    %459 = vector.broadcast %458 : vector<64x1xf32> to vector<64x256xf32>
    %460 = arith.mulf %450, %459 : vector<64x256xf32>
    %461 = vector.broadcast %443 : vector<1x256xf32> to vector<64x256xf32>
    %462 = arith.mulf %460, %461 : vector<64x256xf32>
    %463 = vector.broadcast %444 : vector<1x256xf32> to vector<64x256xf32>
    %464 = arith.addf %462, %463 : vector<64x256xf32>
    %465 = arith.truncf %464 : vector<64x256xf32> to vector<64x256xbf16>
    %c0_152 = arith.constant 0 : index
    %c0_153 = arith.constant 0 : index
    %c0_154 = arith.constant 0 : index
    %466 = vector.load %arg13[%c0_152, %c0_153, %c0_154] : memref<1x256x128xbf16, #tpu.memory_space<vmem>>, vector<1x256x128xbf16>
    %467 = vector.shape_cast %466 : vector<1x256x128xbf16> to vector<256x128xbf16>
    %cst_155 = arith.constant dense<0.000000e+00> : vector<64x128xf32>
    %468 = tpu.matmul %465, %467, %cst_155 {dimension_numbers = #tpu.dot_dimension_numbers<[1], [0], [0], [1], [0, 0, 1, 1], [], []>} : vector<64x256xbf16>, vector<256x128xbf16>, vector<64x128xf32> -> vector<64x128xf32>
    %c0_156 = arith.constant 0 : index
    %c0_157 = arith.constant 0 : index
    %c0_158 = arith.constant 0 : index
    %469 = vector.load %arg15[%c0_156, %c0_157, %c0_158] : memref<1x1x128xf32, #tpu.memory_space<vmem>>, vector<1x1x128xf32>
    %470 = vector.shape_cast %469 : vector<1x1x128xf32> to vector<1x128xf32>
    %471 = vector.broadcast %470 : vector<1x128xf32> to vector<64x128xf32>
    %472 = arith.addf %468, %471 : vector<64x128xf32>
    %473 = arith.addf %411, %472 : vector<64x128xf32>
    %c0_159 = arith.constant 0 : index
    %c0_160 = arith.constant 0 : index
    %474 = vector.load %arg17[%c0_159, %c0_160] : memref<64x128xf32, #tpu.memory_space<vmem>>, vector<64x128xf32>
    tpu.vector_store %arg17[%c0_159, %c0_160], %473 {strides = array<i32>} : memref<64x128xf32, #tpu.memory_space<vmem>>, vector<64x128xf32>,
    %c1_i32 = arith.constant 1 : i32
    %475 = arith.cmpi eq, %arg1, %c1_i32 : i32
    %476 = arith.extui %475 : i1 to i32
    %c0_i32_161 = arith.constant 0 : i32
    %477 = arith.cmpi ne, %476, %c0_i32_161 : i32
    scf.if %477 {
      %c0_162 = arith.constant 0 : index
      %c0_163 = arith.constant 0 : index
      %478 = vector.load %arg7[%c0_162, %c0_163] : memref<1x128xf32, #tpu.memory_space<vmem>>, vector<1x128xf32>
      %c0_164 = arith.constant 0 : index
      %c0_165 = arith.constant 0 : index
      %479 = vector.load %arg8[%c0_164, %c0_165] : memref<1x128xf32, #tpu.memory_space<vmem>>, vector<1x128xf32>
      %cst_166 = arith.constant dense<0.000000e+00> : vector<64xf32>
      %480 = vector.multi_reduction <add>, %473, %cst_166 [1] : vector<64x128xf32> to vector<64xf32>
      %481 = vector.shape_cast %480 : vector<64xf32> to vector<64x1xf32>
      %cst_167 = arith.constant 1.280000e+02 : f32
      %482 = vector.broadcast %cst_167 : f32 to vector<64x1xf32>
      %483 = arith.divf %481, %482 : vector<64x1xf32>
      %484 = vector.broadcast %483 : vector<64x1xf32> to vector<64x128xf32>
      %485 = arith.subf %473, %484 : vector<64x128xf32>
      %486 = arith.mulf %485, %485 : vector<64x128xf32>
      %cst_168 = arith.constant dense<0.000000e+00> : vector<64xf32>
      %487 = vector.multi_reduction <add>, %486, %cst_168 [1] : vector<64x128xf32> to vector<64xf32>
      %488 = vector.shape_cast %487 : vector<64xf32> to vector<64x1xf32>
      %cst_169 = arith.constant 1.280000e+02 : f32
      %489 = vector.broadcast %cst_169 : f32 to vector<64x1xf32>
      %490 = arith.divf %488, %489 : vector<64x1xf32>
      %cst_170 = arith.constant 9.99999974E-6 : f32
      %491 = vector.broadcast %cst_170 : f32 to vector<64x1xf32>
      %492 = arith.addf %490, %491 : vector<64x1xf32>
      %493 = math.rsqrt %492 : vector<64x1xf32>
      %494 = vector.broadcast %493 : vector<64x1xf32> to vector<64x128xf32>
      %495 = arith.mulf %485, %494 : vector<64x128xf32>
      %496 = vector.broadcast %478 : vector<1x128xf32> to vector<64x128xf32>
      %497 = arith.mulf %495, %496 : vector<64x128xf32>
      %498 = vector.broadcast %479 : vector<1x128xf32> to vector<64x128xf32>
      %499 = arith.addf %497, %498 : vector<64x128xf32>
      %c0_171 = arith.constant 0 : index
      %c0_172 = arith.constant 0 : index
      %c0_173 = arith.constant 0 : index
      %500 = vector.load %arg16[%c0_171, %c0_172, %c0_173] : memref<1x64x128xf32, #tpu.memory_space<vmem>>, vector<1x64x128xf32>
      %501 = vector.shape_cast %500 : vector<1x64x128xf32> to vector<64x128xf32>
      %502 = vector.shape_cast %499 : vector<64x128xf32> to vector<1x64x128xf32>
      tpu.vector_store %arg16[%c0_171, %c0_172, %c0_173], %502 {strides = array<i32>} : memref<1x64x128xf32, #tpu.memory_space<vmem>>, vector<1x64x128xf32>,
    } else {
    }
    return
  }
  func.func @transform_0(%arg0: i32, %arg1: i32) -> (i32, i32, i32) {
    %c0_i32 = arith.constant 0 : i32
    %c0_i32_0 = arith.constant 0 : i32
    %c0_i32_1 = arith.constant 0 : i32
    return %arg0, %c0_i32, %c0_i32_0 : i32, i32, i32
  }
  func.func @transform_1(%arg0: i32, %arg1: i32) -> (i32, i32, i32) {
    %c0_i32 = arith.constant 0 : i32
    %c0_i32_0 = arith.constant 0 : i32
    %c0_i32_1 = arith.constant 0 : i32
    return %arg0, %c0_i32, %c0_i32_0 : i32, i32, i32
  }
  func.func @transform_2(%arg0: i32, %arg1: i32) -> (i32, i32, i32) {
    %c0_i32 = arith.constant 0 : i32
    %c0_i32_0 = arith.constant 0 : i32
    %c0_i32_1 = arith.constant 0 : i32
    return %arg0, %c0_i32, %c0_i32_0 : i32, i32, i32
  }
  func.func @transform_3(%arg0: i32, %arg1: i32) -> (i32, i32) {
    %c0_i32 = arith.constant 0 : i32
    %c0_i32_0 = arith.constant 0 : i32
    %c0_i32_1 = arith.constant 0 : i32
    return %c0_i32, %c0_i32_0 : i32, i32
  }
  func.func @transform_4(%arg0: i32, %arg1: i32) -> (i32, i32) {
    %c0_i32 = arith.constant 0 : i32
    %c0_i32_0 = arith.constant 0 : i32
    %c0_i32_1 = arith.constant 0 : i32
    return %c0_i32, %c0_i32_0 : i32, i32
  }
  func.func @transform_5(%arg0: i32, %arg1: i32) -> (i32, i32) {
    %c0_i32 = arith.constant 0 : i32
    %c0_i32_0 = arith.constant 0 : i32
    %c0_i32_1 = arith.constant 0 : i32
    return %c0_i32, %c0_i32_0 : i32, i32
  }
  func.func @transform_6(%arg0: i32, %arg1: i32) -> (i32, i32) {
    %c0_i32 = arith.constant 0 : i32
    %c0_i32_0 = arith.constant 0 : i32
    %c0_i32_1 = arith.constant 0 : i32
    return %c0_i32, %c0_i32_0 : i32, i32
  }
  func.func @transform_7(%arg0: i32, %arg1: i32) -> (i32, i32, i32) {
    %c0_i32 = arith.constant 0 : i32
    %c0_i32_0 = arith.constant 0 : i32
    %c0_i32_1 = arith.constant 0 : i32
    return %arg1, %c0_i32, %c0_i32_0 : i32, i32, i32
  }
  func.func @transform_8(%arg0: i32, %arg1: i32) -> (i32, i32, i32, i32) {
    %c0_i32 = arith.constant 0 : i32
    %c0_i32_0 = arith.constant 0 : i32
    %c0_i32_1 = arith.constant 0 : i32
    %c0_i32_2 = arith.constant 0 : i32
    return %arg1, %c0_i32, %c0_i32_0, %c0_i32_1 : i32, i32, i32, i32
  }
  func.func @transform_9(%arg0: i32, %arg1: i32) -> (i32, i32, i32) {
    %c0_i32 = arith.constant 0 : i32
    %c0_i32_0 = arith.constant 0 : i32
    %c0_i32_1 = arith.constant 0 : i32
    return %arg1, %c0_i32, %c0_i32_0 : i32, i32, i32
  }
  func.func @transform_10(%arg0: i32, %arg1: i32) -> (i32, i32, i32) {
    %c0_i32 = arith.constant 0 : i32
    %c0_i32_0 = arith.constant 0 : i32
    %c0_i32_1 = arith.constant 0 : i32
    return %arg1, %c0_i32, %c0_i32_0 : i32, i32, i32
  }
  func.func @transform_11(%arg0: i32, %arg1: i32) -> (i32, i32, i32) {
    %c0_i32 = arith.constant 0 : i32
    %c0_i32_0 = arith.constant 0 : i32
    %c0_i32_1 = arith.constant 0 : i32
    return %arg1, %c0_i32, %c0_i32_0 : i32, i32, i32
  }
  func.func @transform_12(%arg0: i32, %arg1: i32) -> (i32, i32, i32) {
    %c0_i32 = arith.constant 0 : i32
    %c0_i32_0 = arith.constant 0 : i32
    %c0_i32_1 = arith.constant 0 : i32
    return %arg1, %c0_i32, %c0_i32_0 : i32, i32, i32
  }
  func.func @transform_13(%arg0: i32, %arg1: i32) -> (i32, i32, i32) {
    %c0_i32 = arith.constant 0 : i32
    %c0_i32_0 = arith.constant 0 : i32
    %c0_i32_1 = arith.constant 0 : i32
    return %arg1, %c0_i32, %c0_i32_0 : i32, i32, i32
  }
  func.func @transform_14(%arg0: i32, %arg1: i32) -> (i32, i32, i32) {
    %c0_i32 = arith.constant 0 : i32
    %c0_i32_0 = arith.constant 0 : i32
    %c0_i32_1 = arith.constant 0 : i32
    return %arg0, %c0_i32, %c0_i32_0 : i32, i32, i32
  }
}

</mosaic_0001>

<llo_original>
// kernel: transformer_decoder_forward.1
$region0: #{transformer_decoder_forward.1}
  #allocation0 [shape = 'u32[]', space=smem, size = 0x4, offset = 0x4, fixed_abs, tag = 'smem constant byte address 0x4 - core index']
  #allocation1 [shape = 'u32[144,128]{1,0:T(1,128)}', space=vmem, size = 0x12000, scoped, tag = 'internal scratch']
  #allocation2 [shape = 'f32[64,128]{1,0:T(8,128)}', space=vmem, size = 0x8000, scoped, tag = 'scratch operand']
  %s0 = inlined_call_operand.hbm [shape: f32[2,64,128], index: 0, kind: input, shape index: {}]
  %s1 = inlined_call_operand.vmem [shape: f32[2,16,128], index: 1, kind: input, shape index: {}]
  %s2 = inlined_call_operand.vmem [shape: f32[2,1,16], index: 2, kind: input, shape index: {}]
  %s3 = inlined_call_operand.vmem [shape: f32[64,128], index: 3, kind: input, shape index: {}]
  %s4 = inlined_call_operand.vmem [shape: f32[16,128], index: 4, kind: input, shape index: {}]
  %s5 = inlined_call_operand.vmem [shape: f32[1,128], index: 5, kind: input, shape index: {}]
  %s6 = inlined_call_operand.hbm [shape: f32[1,128], index: 6, kind: input, shape index: {}]
  %s7 = inlined_call_operand.vmem [shape: f32[2,10,128], index: 7, kind: input, shape index: {}]
  %s8 = inlined_call_operand.vmem [shape: bf16[2,8,128,128], index: 8, kind: input, shape index: {}]
  %s9 = inlined_call_operand.hbm [shape: f32[2,8,128], index: 9, kind: input, shape index: {}]
  %s10 = inlined_call_operand.hbm [shape: bf16[2,128,256], index: 10, kind: input, shape index: {}]
  %s11 = inlined_call_operand.hbm [shape: bf16[2,256,128], index: 11, kind: input, shape index: {}]
  %s12 = inlined_call_operand.vmem [shape: f32[2,3,256], index: 12, kind: input, shape index: {}]
  %s13 = inlined_call_operand.hbm [shape: f32[2,1,128], index: 13, kind: input, shape index: {}]
  %s14 = inlined_call_operand.hbm [shape: f32[2,64,128], index: 14, kind: output, shape index: {}]
  %s15 = sld [smem:[#allocation0]]
  $region121: #{transformer_decoder_forward.1} parent=0
    _
  %s17 = ssub.s32 1, %s15
  %s18 = scalar_select 0, %s17, %s15
  $region1: #{transformer_decoder_forward.1} parent=0
    #allocation3 [shape = 'u8[65536]{0}', space=vmem, size = 0x10000, scoped, tag = 'input window, operand 0']
    #allocation4 [shape = 's32[2]{0}', space=sflag, size = 0x8, scoped, tag = 'scoped memory for transformer_decoder_forward.1']
    #allocation5 [shape = 's32[2]{0}', space=sflag, size = 0x8, scoped, tag = 'scoped memory for transformer_decoder_forward.1']
    #allocation6 [shape = 'u8[512]{0}', space=vmem, size = 0x400, scoped, tag = 'input window, operand 6, single buffered']
    #allocation7 [shape = 's32[1]{0}', space=sflag, size = 0x4, scoped, tag = 'scoped memory for transformer_decoder_forward.1']
    #allocation8 [shape = 'u8[8192]{0}', space=vmem, size = 0x2000, scoped, tag = 'input window, operand 9']
    #allocation9 [shape = 'u8[131072]{0}', space=vmem, size = 0x20000, scoped, tag = 'input window, operand 10']
    #allocation10 [shape = 'u8[131072]{0}', space=vmem, size = 0x20000, scoped, tag = 'input window, operand 11']
    #allocation11 [shape = 'u8[1024]{0}', space=vmem, size = 0x400, scoped, tag = 'input window, operand 13']
    #allocation12 [shape = 'u8[65536]{0}', space=vmem, size = 0x10000, scoped, tag = 'output window, operand 0']
    %19 = vsyncpa [#allocation4], 0
    %s20 = scalar_lea.sflag [#allocation4], 1
    %21 = vsyncpa %s20, 0
    %22 = vsyncpa [#allocation7], 0
    %23 = vsyncpa [#allocation5], 0
    %s24 = scalar_lea.sflag [#allocation5], 1
    %25 = vsyncpa %s24, 0
    loop: start=0, step=1, limit=6
    $region2: #{transformer_decoder_forward.1} parent=1 // loop_pre_header
      _
    $region3: #{transformer_decoder_forward.1} parent=1 // loop_header
      %s27 = sphi 0, %s31
      %p28 = scmp.ge.s32.totalorder %s27, 6
      %s34 = sphi 0, %s46
      %s35 = sphi 0, %s42
      %s36 = sphi 0, %s34
      %s37 = sphi 0, %s35
      %s38 = sphi 0, %s36
      %s39 = sphi 0, %s37
      %s49 = sphi 0, %s51
      %s52 = sphi 0, %s49
      %s53 = sphi 0, %s52
      %s69 = sphi 0, %s53
      %s75 = sphi 0, %s77
      %s78 = sphi 0, %s75
      %s79 = sphi 0, %s78
      %s95 = sphi 0, %s79
      %s101 = sphi 0, %s103
      %s104 = sphi 0, %s101
      %s105 = sphi 0, %s104
      %s121 = sphi 0, %s105
      %s125 = sphi 0, %s125
      %s127 = sphi 0, %s125
      %s128 = sphi 0, %s127
      %s142 = sphi 0, %s128
      %s146 = sphi 0, %s146
      %s148 = sphi 0, %s146
      %s149 = sphi 0, %s148
      %s163 = sphi 0, %s149
      %s167 = sphi 0, %s167
      %s169 = sphi 0, %s167
      %s170 = sphi 0, %s169
      %s184 = sphi 0, %s170
      %s188 = sphi 0, %s188
      %s190 = sphi 0, %s188
      %s191 = sphi 0, %s190
      %s205 = sphi 0, %s191
      %s211 = sphi 0, %s213
      %s214 = sphi 0, %s211
      %s215 = sphi 0, %s214
      %s231 = sphi 0, %s215
      %s237 = sphi 0, %s239
      %s240 = sphi 0, %s237
      %s241 = sphi 0, %s240
      %s257 = sphi 0, %s241
      %s263 = sphi 0, %s265
      %s266 = sphi 0, %s263
      %s267 = sphi 0, %s266
      %s283 = sphi 0, %s267
      %s289 = sphi 0, %s291
      %s292 = sphi 0, %s289
      %s293 = sphi 0, %s292
      %s309 = sphi 0, %s293
      %s315 = sphi 0, %s317
      %s318 = sphi 0, %s315
      %s319 = sphi 0, %s318
      %s335 = sphi 0, %s319
      %s341 = sphi 0, %s343
      %s344 = sphi 0, %s341
      %s345 = sphi 0, %s344
      %s361 = sphi 0, %s345
      %s367 = sphi 0, %s369
      %s370 = sphi 0, %s367
      %s371 = sphi 0, %s370
      %s387 = sphi 0, %s371
      %s393 = sphi 0, %s395
      %s396 = sphi 0, %s393
      %s397 = sphi 0, %s396
      %s413 = sphi 0, %s397
    $region4: #{transformer_decoder_forward.1} parent=1 // loop_header_branch
      %30 = sbr.rel (%p28) target = $region8
    $region5: #{transformer_decoder_forward.1} parent=1 // loop_body
      %s32 = ssub.s32 %s27, 1
      %s33 = ssub.s32 %s27, 2
      %s40 = sadd.s32 1, %s35
      %p41 = scmp.ge.s32.totalorder %s40, 2
      %s42 = scalar_select %p41, 0, %s40
      %s43 = sadd.s32 1, %s34
      %s44 = scalar_select %p41, %s43, %s34
      %p45 = scmp.ge.s32.totalorder %s44, 2
      %s46 = scalar_select %p45, 0, %s44
      %s47 = ssub.s32 %s34, %s46
      %p48 = scmp.eq.s32.totalorder %s47, 0
      %s50 = sadd.s32 %s49, 1
      %s51 = scalar_select %p48, %s49, %s50
      %p54 = pneg %p48
      %p55 = scmp.eq.s32.totalorder %s27, 3
      %p56 = por %p54, %p55
      %p57 = scmp.ne.s32.totalorder %s49, %s52
      %p58 = scmp.eq.s32.totalorder %s27, 0
      %p59 = por %p57, %p58
      %p60 = scmp.ne.s32.totalorder %s49, %s52
      %p61 = scmp.eq.s32.totalorder %s32, 3
      %p62 = por %p60, %p61
      %p63 = scmp.ne.s32.totalorder %s52, %s53
      %p64 = scmp.eq.s32.totalorder %s32, 0
      %p65 = por %p63, %p64
      %p66 = scmp.ne.s32.totalorder %s52, %s53
      %p67 = scmp.eq.s32.totalorder %s33, 3
      %p68 = por %p66, %p67
      %p70 = scmp.ne.s32.totalorder %s53, %s69
      %p71 = scmp.eq.s32.totalorder %s33, 0
      %p72 = por %p70, %p71
      %s73 = ssub.s32 %s34, %s46
      %p74 = scmp.eq.s32.totalorder %s73, 0
      %s76 = sadd.s32 %s75, 1
      %s77 = scalar_select %p74, %s75, %s76
      %p80 = pneg %p74
      %p81 = scmp.eq.s32.totalorder %s27, 3
      %p82 = por %p80, %p81
      %p83 = scmp.ne.s32.totalorder %s75, %s78
      %p84 = scmp.eq.s32.totalorder %s27, 0
      %p85 = por %p83, %p84
      %p86 = scmp.ne.s32.totalorder %s75, %s78
      %p87 = scmp.eq.s32.totalorder %s32, 3
      %p88 = por %p86, %p87
      %p89 = scmp.ne.s32.totalorder %s78, %s79
      %p90 = scmp.eq.s32.totalorder %s32, 0
      %p91 = por %p89, %p90
      %p92 = scmp.ne.s32.totalorder %s78, %s79
      %p93 = scmp.eq.s32.totalorder %s33, 3
      %p94 = por %p92, %p93
      %p96 = scmp.ne.s32.totalorder %s79, %s95
      %p97 = scmp.eq.s32.totalorder %s33, 0
      %p98 = por %p96, %p97
      %s99 = ssub.s32 %s34, %s46
      %p100 = scmp.eq.s32.totalorder %s99, 0
      %s102 = sadd.s32 %s101, 1
      %s103 = scalar_select %p100, %s101, %s102
      %p106 = pneg %p100
      %p107 = scmp.eq.s32.totalorder %s27, 3
      %p108 = por %p106, %p107
      %p109 = scmp.ne.s32.totalorder %s101, %s104
      %p110 = scmp.eq.s32.totalorder %s27, 0
      %p111 = por %p109, %p110
      %p112 = scmp.ne.s32.totalorder %s101, %s104
      %p113 = scmp.eq.s32.totalorder %s32, 3
      %p114 = por %p112, %p113
      %p115 = scmp.ne.s32.totalorder %s104, %s105
      %p116 = scmp.eq.s32.totalorder %s32, 0
      %p117 = por %p115, %p116
      %p118 = scmp.ne.s32.totalorder %s104, %s105
      %p119 = scmp.eq.s32.totalorder %s33, 3
      %p120 = por %p118, %p119
      %p122 = scmp.ne.s32.totalorder %s105, %s121
      %p123 = scmp.eq.s32.totalorder %s33, 0
      %p124 = por %p122, %p123
      %s126 = sadd.s32 %s125, 1
      %p129 = scmp.eq.s32.totalorder %s27, 3
      %p130 = scmp.ne.s32.totalorder %s125, %s127
      %p131 = scmp.eq.s32.totalorder %s27, 0
      %p132 = por %p130, %p131
      %p133 = scmp.ne.s32.totalorder %s125, %s127
      %p134 = scmp.eq.s32.totalorder %s32, 3
      %p135 = por %p133, %p134
      %p136 = scmp.ne.s32.totalorder %s127, %s128
      %p137 = scmp.eq.s32.totalorder %s32, 0
      %p138 = por %p136, %p137
      %p139 = scmp.ne.s32.totalorder %s127, %s128
      %p140 = scmp.eq.s32.totalorder %s33, 3
      %p141 = por %p139, %p140
      %p143 = scmp.ne.s32.totalorder %s128, %s142
      %p144 = scmp.eq.s32.totalorder %s33, 0
      %p145 = por %p143, %p144
      %s147 = sadd.s32 %s146, 1
      %p150 = scmp.eq.s32.totalorder %s27, 3
      %p151 = scmp.ne.s32.totalorder %s146, %s148
      %p152 = scmp.eq.s32.totalorder %s27, 0
      %p153 = por %p151, %p152
      %p154 = scmp.ne.s32.totalorder %s146, %s148
      %p155 = scmp.eq.s32.totalorder %s32, 3
      %p156 = por %p154, %p155
      %p157 = scmp.ne.s32.totalorder %s148, %s149
      %p158 = scmp.eq.s32.totalorder %s32, 0
      %p159 = por %p157, %p158
      %p160 = scmp.ne.s32.totalorder %s148, %s149
      %p161 = scmp.eq.s32.totalorder %s33, 3
      %p162 = por %p160, %p161
      %p164 = scmp.ne.s32.totalorder %s149, %s163
      %p165 = scmp.eq.s32.totalorder %s33, 0
      %p166 = por %p164, %p165
      %s168 = sadd.s32 %s167, 1
      %p171 = scmp.eq.s32.totalorder %s27, 3
      %p172 = scmp.ne.s32.totalorder %s167, %s169
      %p173 = scmp.eq.s32.totalorder %s27, 0
      %p174 = por %p172, %p173
      %p175 = scmp.ne.s32.totalorder %s167, %s169
      %p176 = scmp.eq.s32.totalorder %s32, 3
      %p177 = por %p175, %p176
      %p178 = scmp.ne.s32.totalorder %s169, %s170
      %p179 = scmp.eq.s32.totalorder %s32, 0
      %p180 = por %p178, %p179
      %p181 = scmp.ne.s32.totalorder %s169, %s170
      %p182 = scmp.eq.s32.totalorder %s33, 3
      %p183 = por %p181, %p182
      %p185 = scmp.ne.s32.totalorder %s170, %s184
      %p186 = scmp.eq.s32.totalorder %s33, 0
      %p187 = por %p185, %p186
      %s189 = sadd.s32 %s188, 1
      %p192 = scmp.eq.s32.totalorder %s27, 3
      %p193 = scmp.ne.s32.totalorder %s188, %s190
      %p194 = scmp.eq.s32.totalorder %s27, 0
      %p195 = por %p193, %p194
      %p196 = scmp.ne.s32.totalorder %s188, %s190
      %p197 = scmp.eq.s32.totalorder %s32, 3
      %p198 = por %p196, %p197
      %p199 = scmp.ne.s32.totalorder %s190, %s191
      %p200 = scmp.eq.s32.totalorder %s32, 0
      %p201 = por %p199, %p200
      %p202 = scmp.ne.s32.totalorder %s190, %s191
      %p203 = scmp.eq.s32.totalorder %s33, 3
      %p204 = por %p202, %p203
      %p206 = scmp.ne.s32.totalorder %s191, %s205
      %p207 = scmp.eq.s32.totalorder %s33, 0
      %p208 = por %p206, %p207
      %s209 = ssub.s32 %s35, %s42
      %p210 = scmp.eq.s32.totalorder %s209, 0
      %s212 = sadd.s32 %s211, 1
      %s213 = scalar_select %p210, %s211, %s212
      %p216 = pneg %p210
      %p217 = scmp.eq.s32.totalorder %s27, 3
      %p218 = por %p216, %p217
      %p219 = scmp.ne.s32.totalorder %s211, %s214
      %p220 = scmp.eq.s32.totalorder %s27, 0
      %p221 = por %p219, %p220
      %p222 = scmp.ne.s32.totalorder %s211, %s214
      %p223 = scmp.eq.s32.totalorder %s32, 3
      %p224 = por %p222, %p223
      %p225 = scmp.ne.s32.totalorder %s214, %s215
      %p226 = scmp.eq.s32.totalorder %s32, 0
      %p227 = por %p225, %p226
      %p228 = scmp.ne.s32.totalorder %s214, %s215
      %p229 = scmp.eq.s32.totalorder %s33, 3
      %p230 = por %p228, %p229
      %p232 = scmp.ne.s32.totalorder %s215, %s231
      %p233 = scmp.eq.s32.totalorder %s33, 0
      %p234 = por %p232, %p233
      %s235 = ssub.s32 %s35, %s42
      %p236 = scmp.eq.s32.totalorder %s235, 0
      %s238 = sadd.s32 %s237, 1
      %s239 = scalar_select %p236, %s237, %s238
      %p242 = pneg %p236
      %p243 = scmp.eq.s32.totalorder %s27, 3
      %p244 = por %p242, %p243
      %p245 = scmp.ne.s32.totalorder %s237, %s240
      %p246 = scmp.eq.s32.totalorder %s27, 0
      %p247 = por %p245, %p246
      %p248 = scmp.ne.s32.totalorder %s237, %s240
      %p249 = scmp.eq.s32.totalorder %s32, 3
      %p250 = por %p248, %p249
      %p251 = scmp.ne.s32.totalorder %s240, %s241
      %p252 = scmp.eq.s32.totalorder %s32, 0
      %p253 = por %p251, %p252
      %p254 = scmp.ne.s32.totalorder %s240, %s241
      %p255 = scmp.eq.s32.totalorder %s33, 3
      %p256 = por %p254, %p255
      %p258 = scmp.ne.s32.totalorder %s241, %s257
      %p259 = scmp.eq.s32.totalorder %s33, 0
      %p260 = por %p258, %p259
      %s261 = ssub.s32 %s35, %s42
      %p262 = scmp.eq.s32.totalorder %s261, 0
      %s264 = sadd.s32 %s263, 1
      %s265 = scalar_select %p262, %s263, %s264
      %p268 = pneg %p262
      %p269 = scmp.eq.s32.totalorder %s27, 3
      %p270 = por %p268, %p269
      %p271 = scmp.ne.s32.totalorder %s263, %s266
      %p272 = scmp.eq.s32.totalorder %s27, 0
      %p273 = por %p271, %p272
      %p274 = scmp.ne.s32.totalorder %s263, %s266
      %p275 = scmp.eq.s32.totalorder %s32, 3
      %p276 = por %p274, %p275
      %p277 = scmp.ne.s32.totalorder %s266, %s267
      %p278 = scmp.eq.s32.totalorder %s32, 0
      %p279 = por %p277, %p278
      %p280 = scmp.ne.s32.totalorder %s266, %s267
      %p281 = scmp.eq.s32.totalorder %s33, 3
      %p282 = por %p280, %p281
      %p284 = scmp.ne.s32.totalorder %s267, %s283
      %p285 = scmp.eq.s32.totalorder %s33, 0
      %p286 = por %p284, %p285
      %s287 = ssub.s32 %s35, %s42
      %p288 = scmp.eq.s32.totalorder %s287, 0
      %s290 = sadd.s32 %s289, 1
      %s291 = scalar_select %p288, %s289, %s290
      %p294 = pneg %p288
      %p295 = scmp.eq.s32.totalorder %s27, 3
      %p296 = por %p294, %p295
      %p297 = scmp.ne.s32.totalorder %s289, %s292
      %p298 = scmp.eq.s32.totalorder %s27, 0
      %p299 = por %p297, %p298
      %p300 = scmp.ne.s32.totalorder %s289, %s292
      %p301 = scmp.eq.s32.totalorder %s32, 3
      %p302 = por %p300, %p301
      %p303 = scmp.ne.s32.totalorder %s292, %s293
      %p304 = scmp.eq.s32.totalorder %s32, 0
      %p305 = por %p303, %p304
      %p306 = scmp.ne.s32.totalorder %s292, %s293
      %p307 = scmp.eq.s32.totalorder %s33, 3
      %p308 = por %p306, %p307
      %p310 = scmp.ne.s32.totalorder %s293, %s309
      %p311 = scmp.eq.s32.totalorder %s33, 0
      %p312 = por %p310, %p311
      %s313 = ssub.s32 %s35, %s42
      %p314 = scmp.eq.s32.totalorder %s313, 0
      %s316 = sadd.s32 %s315, 1
      %s317 = scalar_select %p314, %s315, %s316
      %p320 = pneg %p314
      %p321 = scmp.eq.s32.totalorder %s27, 3
      %p322 = por %p320, %p321
      %p323 = scmp.ne.s32.totalorder %s315, %s318
      %p324 = scmp.eq.s32.totalorder %s27, 0
      %p325 = por %p323, %p324
      %p326 = scmp.ne.s32.totalorder %s315, %s318
      %p327 = scmp.eq.s32.totalorder %s32, 3
      %p328 = por %p326, %p327
      %p329 = scmp.ne.s32.totalorder %s318, %s319
      %p330 = scmp.eq.s32.totalorder %s32, 0
      %p331 = por %p329, %p330
      %p332 = scmp.ne.s32.totalorder %s318, %s319
      %p333 = scmp.eq.s32.totalorder %s33, 3
      %p334 = por %p332, %p333
      %p336 = scmp.ne.s32.totalorder %s319, %s335
      %p337 = scmp.eq.s32.totalorder %s33, 0
      %p338 = por %p336, %p337
      %s339 = ssub.s32 %s35, %s42
      %p340 = scmp.eq.s32.totalorder %s339, 0
      %s342 = sadd.s32 %s341, 1
      %s343 = scalar_select %p340, %s341, %s342
      %p346 = pneg %p340
      %p347 = scmp.eq.s32.totalorder %s27, 3
      %p348 = por %p346, %p347
      %p349 = scmp.ne.s32.totalorder %s341, %s344
      %p350 = scmp.eq.s32.totalorder %s27, 0
      %p351 = por %p349, %p350
      %p352 = scmp.ne.s32.totalorder %s341, %s344
      %p353 = scmp.eq.s32.totalorder %s32, 3
      %p354 = por %p352, %p353
      %p355 = scmp.ne.s32.totalorder %s344, %s345
      %p356 = scmp.eq.s32.totalorder %s32, 0
      %p357 = por %p355, %p356
      %p358 = scmp.ne.s32.totalorder %s344, %s345
      %p359 = scmp.eq.s32.totalorder %s33, 3
      %p360 = por %p358, %p359
      %p362 = scmp.ne.s32.totalorder %s345, %s361
      %p363 = scmp.eq.s32.totalorder %s33, 0
      %p364 = por %p362, %p363
      %s365 = ssub.s32 %s35, %s42
      %p366 = scmp.eq.s32.totalorder %s365, 0
      %s368 = sadd.s32 %s367, 1
      %s369 = scalar_select %p366, %s367, %s368
      %p372 = pneg %p366
      %p373 = scmp.eq.s32.totalorder %s27, 3
      %p374 = por %p372, %p373
      %p375 = scmp.ne.s32.totalorder %s367, %s370
      %p376 = scmp.eq.s32.totalorder %s27, 0
      %p377 = por %p375, %p376
      %p378 = scmp.ne.s32.totalorder %s367, %s370
      %p379 = scmp.eq.s32.totalorder %s32, 3
      %p380 = por %p378, %p379
      %p381 = scmp.ne.s32.totalorder %s370, %s371
      %p382 = scmp.eq.s32.totalorder %s32, 0
      %p383 = por %p381, %p382
      %p384 = scmp.ne.s32.totalorder %s370, %s371
      %p385 = scmp.eq.s32.totalorder %s33, 3
      %p386 = por %p384, %p385
      %p388 = scmp.ne.s32.totalorder %s371, %s387
      %p389 = scmp.eq.s32.totalorder %s33, 0
      %p390 = por %p388, %p389
      %s391 = ssub.s32 %s34, %s46
      %p392 = scmp.eq.s32.totalorder %s391, 0
      %s394 = sadd.s32 %s393, 1
      %s395 = scalar_select %p392, %s393, %s394
      %p398 = pneg %p392
      %p399 = scmp.eq.s32.totalorder %s27, 3
      %p400 = por %p398, %p399
      %p401 = scmp.ne.s32.totalorder %s393, %s396
      %p402 = scmp.eq.s32.totalorder %s27, 0
      %p403 = por %p401, %p402
      %p404 = scmp.ne.s32.totalorder %s393, %s396
      %p405 = scmp.eq.s32.totalorder %s32, 3
      %p406 = por %p404, %p405
      %p407 = scmp.ne.s32.totalorder %s396, %s397
      %p408 = scmp.eq.s32.totalorder %s32, 0
      %p409 = por %p407, %p408
      %p410 = scmp.ne.s32.totalorder %s396, %s397
      %p411 = scmp.eq.s32.totalorder %s33, 3
      %p412 = por %p410, %p411
      %p414 = scmp.ne.s32.totalorder %s397, %s413
      %p415 = scmp.eq.s32.totalorder %s33, 0
      %p416 = por %p414, %p415
      %p417 = scmp.le.s32.totalorder 1, %s27
      %p418 = scmp.lt.s32.totalorder %s27, 5
      %p419 = pnand %p417, %p418
      %p420 = pneg %p419
      // Predicated region
      $region9: #{transformer_decoder_forward.1} parent=5 // pred_check
        _
      $region10: #{transformer_decoder_forward.1} parent=5 // pred_check_branch
        %422 = sbr.rel (%p419) target = $region12
      $region11: #{transformer_decoder_forward.1} parent=5 // pred_region
        %s423 = ssub.s32 %s27, 1
        // Predicated region
        $region13: #{transformer_decoder_forward.1} parent=11 // pred_check
          %p424 = pneg %p138
        $region14: #{transformer_decoder_forward.1} parent=11 // pred_check_branch
          %426 = sbr.rel (%p424) target = $region16
        $region15: #{transformer_decoder_forward.1} parent=11 // pred_region
          _
        $region16: #{transformer_decoder_forward.1} parent=11 // pred_fallthru
          _
        // Predicated region
        $region17: #{transformer_decoder_forward.1} parent=11 // pred_check
          %p427 = pneg %p159
        $region18: #{transformer_decoder_forward.1} parent=11 // pred_check_branch
          %429 = sbr.rel (%p427) target = $region20
        $region19: #{transformer_decoder_forward.1} parent=11 // pred_region
          _
        $region20: #{transformer_decoder_forward.1} parent=11 // pred_fallthru
          _
        // Predicated region
        $region21: #{transformer_decoder_forward.1} parent=11 // pred_check
          %p430 = pneg %p180
        $region22: #{transformer_decoder_forward.1} parent=11 // pred_check_branch
          %432 = sbr.rel (%p430) target = $region24
        $region23: #{transformer_decoder_forward.1} parent=11 // pred_region
          _
        $region24: #{transformer_decoder_forward.1} parent=11 // pred_fallthru
          _
        // Predicated region
        $region25: #{transformer_decoder_forward.1} parent=11 // pred_check
          %p433 = pneg %p201
        $region26: #{transformer_decoder_forward.1} parent=11 // pred_check_branch
          %435 = sbr.rel (%p433) target = $region28
        $region27: #{transformer_decoder_forward.1} parent=11 // pred_region
          %s437 = ssub.s32 16, 16
          %438 = vsyncadd [#allocation7], %s437
          %s440 = sshll.u32 [#allocation6], 4
          %s441 = int_to_ptr.vmem [resolvable:$true] %s440
          %443 = dma.hbm_to_vmem [thread:$0]  %s6, 16, %s441, [#allocation7]
        $region28: #{transformer_decoder_forward.1} parent=11 // pred_fallthru
          _
      $region12: #{transformer_decoder_forward.1} parent=5 // pred_fallthru
        _
      %p444 = scmp.lt.s32.totalorder %s27, 4
      // Predicated region
      $region29: #{transformer_decoder_forward.1} parent=5 // pred_check
        %p445 = pneg %p444
      $region30: #{transformer_decoder_forward.1} parent=5 // pred_check_branch
        %447 = sbr.rel (%p445) target = $region32
      $region31: #{transformer_decoder_forward.1} parent=5 // pred_region
        // Predicated region
        $region33: #{transformer_decoder_forward.1} parent=31 // pred_check
          %p448 = pneg %p59
        $region34: #{transformer_decoder_forward.1} parent=31 // pred_check_branch
          %450 = sbr.rel (%p448) target = $region36
        $region35: #{transformer_decoder_forward.1} parent=31 // pred_region
          %s451 = sand.u32 %s27, 1
          %s452 = scalar_lea.sflag [#allocation4], %s451
          %s453 = sand.u32 %s49, 1
          %s454 = smul.addr %s453, 64
          %s455 = scalar_lea.vmem [#allocation3], %s454
          %s457 = ssub.s32 1024, 1024
          %458 = vsyncadd %s452, %s457
          %s459 = smul.addr %s34, 8
          %s460 = smul.addr %s459, 128
          %s461 = scalar_lea.hbm %s0, %s460
          %s462 = sshll.u32 %s455, 4
          %s463 = int_to_ptr.vmem [resolvable:$true] %s462
          %468 = dma.hbm_to_vmem [thread:$0]  %s461, 1024, %s463, %s452, 128, 128, 8
        $region36: #{transformer_decoder_forward.1} parent=31 // pred_fallthru
          _
        // Predicated region
        $region37: #{transformer_decoder_forward.1} parent=31 // pred_check
          %p469 = pneg %p85
        $region38: #{transformer_decoder_forward.1} parent=31 // pred_check_branch
          %471 = sbr.rel (%p469) target = $region40
        $region39: #{transformer_decoder_forward.1} parent=31 // pred_region
          %p472 = scmp.lt.s32.totalorder %s34, 1
          %s473 = scalar_select %p472, %s34, 1
          %s474 = smul.addr %s473, 2
          %s475 = smul.addr %s474, 8
          %s476 = scalar_lea.vmem %s1, %s475
        $region40: #{transformer_decoder_forward.1} parent=31 // pred_fallthru
          _
        // Predicated region
        $region41: #{transformer_decoder_forward.1} parent=31 // pred_check
          %p477 = pneg %p111
        $region42: #{transformer_decoder_forward.1} parent=31 // pred_check_branch
          %479 = sbr.rel (%p477) target = $region44
        $region43: #{transformer_decoder_forward.1} parent=31 // pred_region
          %p480 = scmp.lt.s32.totalorder %s34, 1
          %s481 = scalar_select %p480, %s34, 1
          %s482 = scalar_lea.vmem %s2, %s481
        $region44: #{transformer_decoder_forward.1} parent=31 // pred_fallthru
          _
        // Predicated region
        $region45: #{transformer_decoder_forward.1} parent=31 // pred_check
          %p483 = pneg %p221
        $region46: #{transformer_decoder_forward.1} parent=31 // pred_check_branch
          %485 = sbr.rel (%p483) target = $region48
        $region47: #{transformer_decoder_forward.1} parent=31 // pred_region
          %p486 = scmp.lt.s32.totalorder %s35, 1
          %s487 = scalar_select %p486, %s35, 1
          %s488 = smul.addr %s487, 2
          %s489 = smul.addr %s488, 8
          %s490 = scalar_lea.vmem %s7, %s489
        $region48: #{transformer_decoder_forward.1} parent=31 // pred_fallthru
          _
        // Predicated region
        $region49: #{transformer_decoder_forward.1} parent=31 // pred_check
          %p491 = pneg %p247
        $region50: #{transformer_decoder_forward.1} parent=31 // pred_check_branch
          %493 = sbr.rel (%p491) target = $region52
        $region51: #{transformer_decoder_forward.1} parent=31 // pred_region
          %p494 = scmp.lt.s32.totalorder %s35, 1
          %s495 = scalar_select %p494, %s35, 1
          %s496 = smul.addr %s495, 128
          %s497 = smul.addr %s496, 4
          %s498 = scalar_lea.vmem %s8, %s497
        $region52: #{transformer_decoder_forward.1} parent=31 // pred_fallthru
          _
        // Predicated region
        $region53: #{transformer_decoder_forward.1} parent=31 // pred_check
          %p499 = pneg %p273
        $region54: #{transformer_decoder_forward.1} parent=31 // pred_check_branch
          %501 = sbr.rel (%p499) target = $region56
        $region55: #{transformer_decoder_forward.1} parent=31 // pred_region
          %s502 = sand.u32 %s27, 1
          %s503 = scalar_lea.sflag [#allocation4], %s502
          %s504 = sand.u32 %s263, 1
          %s505 = smul.addr %s504, 8
          %s506 = scalar_lea.vmem [#allocation8], %s505
          %s508 = ssub.s32 128, 128
          %509 = vsyncadd %s503, %s508
          %s510 = smul.addr %s35, 128
          %s511 = scalar_lea.hbm %s9, %s510
          %s513 = sshll.u32 %s506, 4
          %s514 = int_to_ptr.vmem [resolvable:$true] %s513
          %516 = dma.hbm_to_vmem [thread:$0]  %s511, 128, %s514, %s503
        $region56: #{transformer_decoder_forward.1} parent=31 // pred_fallthru
          _
        // Predicated region
        $region57: #{transformer_decoder_forward.1} parent=31 // pred_check
          %p517 = pneg %p299
        $region58: #{transformer_decoder_forward.1} parent=31 // pred_check_branch
          %519 = sbr.rel (%p517) target = $region60
        $region59: #{transformer_decoder_forward.1} parent=31 // pred_region
          %s520 = sand.u32 %s27, 1
          %s521 = scalar_lea.sflag [#allocation4], %s520
          %s522 = sand.u32 %s289, 1
          %s523 = smul.addr %s522, 128
          %s524 = scalar_lea.vmem [#allocation9], %s523
          %s526 = ssub.s32 2048, 2048
          %527 = vsyncadd %s521, %s526
          %s528 = smul.addr %s35, 32
          %s529 = smul.addr %s528, 64
          %s530 = scalar_lea.hbm %s10, %s529
          %s531 = sshll.u32 %s524, 4
          %s532 = int_to_ptr.vmem [resolvable:$true] %s531
          %537 = dma.hbm_to_vmem [thread:$0]  %s530, 2048, %s532, %s521, 128, 128, 8
        $region60: #{transformer_decoder_forward.1} parent=31 // pred_fallthru
          _
        // Predicated region
        $region61: #{transformer_decoder_forward.1} parent=31 // pred_check
          %p538 = pneg %p325
        $region62: #{transformer_decoder_forward.1} parent=31 // pred_check_branch
          %540 = sbr.rel (%p538) target = $region64
        $region63: #{transformer_decoder_forward.1} parent=31 // pred_region
          %s541 = sand.u32 %s27, 1
          %s542 = scalar_lea.sflag [#allocation4], %s541
          %s543 = sand.u32 %s315, 1
          %s544 = smul.addr %s543, 128
          %s545 = scalar_lea.vmem [#allocation10], %s544
          %s547 = ssub.s32 2048, 2048
          %548 = vsyncadd %s542, %s547
          %s549 = smul.addr %s35, 32
          %s550 = smul.addr %s549, 64
          %s551 = scalar_lea.hbm %s11, %s550
          %s552 = sshll.u32 %s545, 4
          %s553 = int_to_ptr.vmem [resolvable:$true] %s552
          %558 = dma.hbm_to_vmem [thread:$0]  %s551, 2048, %s553, %s542, 64, 64, 4
        $region64: #{transformer_decoder_forward.1} parent=31 // pred_fallthru
          _
        // Predicated region
        $region65: #{transformer_decoder_forward.1} parent=31 // pred_check
          %p559 = pneg %p351
        $region66: #{transformer_decoder_forward.1} parent=31 // pred_check_branch
          %561 = sbr.rel (%p559) target = $region68
        $region67: #{transformer_decoder_forward.1} parent=31 // pred_region
          %p562 = scmp.lt.s32.totalorder %s35, 1
          %s563 = scalar_select %p562, %s35, 1
          %s564 = smul.addr %s563, 2
          %s565 = smul.addr %s564, 4
          %s566 = scalar_lea.vmem %s12, %s565
        $region68: #{transformer_decoder_forward.1} parent=31 // pred_fallthru
          _
        // Predicated region
        $region69: #{transformer_decoder_forward.1} parent=31 // pred_check
          %p567 = pneg %p377
        $region70: #{transformer_decoder_forward.1} parent=31 // pred_check_branch
          %569 = sbr.rel (%p567) target = $region72
        $region71: #{transformer_decoder_forward.1} parent=31 // pred_region
          %s570 = sand.u32 %s27, 1
          %s571 = scalar_lea.sflag [#allocation4], %s570
          %s572 = sand.u32 %s367, 1
          %s573 = scalar_lea.vmem [#allocation11], %s572
          %s575 = ssub.s32 16, 16
          %576 = vsyncadd %s571, %s575
          %s577 = smul.addr %s35, 16
          %s578 = scalar_lea.hbm %s13, %s577
          %s580 = sshll.u32 %s573, 4
          %s581 = int_to_ptr.vmem [resolvable:$true] %s580
          %583 = dma.hbm_to_vmem [thread:$0]  %s578, 16, %s581, %s571
        $region72: #{transformer_decoder_forward.1} parent=31 // pred_fallthru
          _
      $region32: #{transformer_decoder_forward.1} parent=5 // pred_fallthru
        _
      %p584 = scmp.le.s32.totalorder 1, %s27
      %p585 = scmp.lt.s32.totalorder %s27, 5
      %p586 = pnand %p584, %p585
      %p587 = pneg %p586
      // Predicated region
      $region73: #{transformer_decoder_forward.1} parent=5 // pred_check
        _
      $region74: #{transformer_decoder_forward.1} parent=5 // pred_check_branch
        %589 = sbr.rel (%p586) target = $region76
      $region75: #{transformer_decoder_forward.1} parent=5 // pred_region
        %s590 = ssub.s32 %s27, 1
        %s591 = sand.u32 %s32, 1
        %s592 = scalar_lea.sflag [#allocation4], %s591
        %s593 = sand.u32 %s52, 1
        %s594 = smul.addr %s593, 64
        %s595 = scalar_lea.vmem [#allocation3], %s594
        // Predicated region
        $region77: #{transformer_decoder_forward.1} parent=75 // pred_check
          %p596 = pneg %p65
        $region78: #{transformer_decoder_forward.1} parent=75 // pred_check_branch
          %598 = sbr.rel (%p596) target = $region80
        $region79: #{transformer_decoder_forward.1} parent=75 // pred_region
          %599 = dma.done %s592, 1024
        $region80: #{transformer_decoder_forward.1} parent=75 // pred_fallthru
          _
        // Predicated region
        $region81: #{transformer_decoder_forward.1} parent=75 // pred_check
          %p600 = pneg %p201
        $region82: #{transformer_decoder_forward.1} parent=75 // pred_check_branch
          %602 = sbr.rel (%p600) target = $region84
        $region83: #{transformer_decoder_forward.1} parent=75 // pred_region
          %603 = dma.done [#allocation7], 16
        $region84: #{transformer_decoder_forward.1} parent=75 // pred_fallthru
          _
        %s604 = sand.u32 %s32, 1
        %s605 = scalar_lea.sflag [#allocation4], %s604
        %s606 = sand.u32 %s266, 1
        %s607 = smul.addr %s606, 8
        %s608 = scalar_lea.vmem [#allocation8], %s607
        // Predicated region
        $region85: #{transformer_decoder_forward.1} parent=75 // pred_check
          %p609 = pneg %p279
        $region86: #{transformer_decoder_forward.1} parent=75 // pred_check_branch
          %611 = sbr.rel (%p609) target = $region88
        $region87: #{transformer_decoder_forward.1} parent=75 // pred_region
          %612 = dma.done %s605, 128
        $region88: #{transformer_decoder_forward.1} parent=75 // pred_fallthru
          _
        %s613 = sand.u32 %s32, 1
        %s614 = scalar_lea.sflag [#allocation4], %s613
        %s615 = sand.u32 %s292, 1
        %s616 = smul.addr %s615, 128
        %s617 = scalar_lea.vmem [#allocation9], %s616
        // Predicated region
        $region89: #{transformer_decoder_forward.1} parent=75 // pred_check
          %p618 = pneg %p305
        $region90: #{transformer_decoder_forward.1} parent=75 // pred_check_branch
          %620 = sbr.rel (%p618) target = $region92
        $region91: #{transformer_decoder_forward.1} parent=75 // pred_region
          %621 = dma.done %s614, 2048
        $region92: #{transformer_decoder_forward.1} parent=75 // pred_fallthru
          _
        %s622 = sand.u32 %s32, 1
        %s623 = scalar_lea.sflag [#allocation4], %s622
        %s624 = sand.u32 %s318, 1
        %s625 = smul.addr %s624, 128
        %s626 = scalar_lea.vmem [#allocation10], %s625
        // Predicated region
        $region93: #{transformer_decoder_forward.1} parent=75 // pred_check
          %p627 = pneg %p331
        $region94: #{transformer_decoder_forward.1} parent=75 // pred_check_branch
          %629 = sbr.rel (%p627) target = $region96
        $region95: #{transformer_decoder_forward.1} parent=75 // pred_region
          %630 = dma.done %s623, 2048
        $region96: #{transformer_decoder_forward.1} parent=75 // pred_fallthru
          _
        %s631 = sand.u32 %s32, 1
        %s632 = scalar_lea.sflag [#allocation4], %s631
        %s633 = sand.u32 %s370, 1
        %s634 = scalar_lea.vmem [#allocation11], %s633
        // Predicated region
        $region97: #{transformer_decoder_forward.1} parent=75 // pred_check
          %p635 = pneg %p383
        $region98: #{transformer_decoder_forward.1} parent=75 // pred_check_branch
          %637 = sbr.rel (%p635) target = $region100
        $region99: #{transformer_decoder_forward.1} parent=75 // pred_region
          %638 = dma.done %s632, 16
        $region100: #{transformer_decoder_forward.1} parent=75 // pred_fallthru
          _
        %s639 = sand.u32 %s32, 1
        %s640 = scalar_lea.sflag [#allocation4], %s639
        %s641 = sand.u32 %s52, 1
        %s642 = smul.addr %s641, 64
        %s643 = scalar_lea.vmem [#allocation3], %s642
        %p644 = pneg %p65
        %p645 = pneg %p62
        %p646 = scmp.lt.s32.totalorder %s36, 1
        %s647 = scalar_select %p646, %s36, 1
        %s648 = smul.addr %s647, 2
        %s649 = smul.addr %s648, 8
        %s650 = scalar_lea.vmem %s1, %s649
        %p651 = pneg %p91
        %p652 = pneg %p88
        %p653 = scmp.lt.s32.totalorder %s36, 1
        %s654 = scalar_select %p653, %s36, 1
        %s655 = scalar_lea.vmem %s2, %s654
        %p656 = pneg %p117
        %p657 = pneg %p114
        %p658 = pneg %p138
        %p659 = pneg %p135
        %p660 = pneg %p159
        %p661 = pneg %p156
        %p662 = pneg %p180
        %p663 = pneg %p177
        %p664 = pneg %p201
        %p665 = pneg %p198
        %p666 = scmp.lt.s32.totalorder %s37, 1
        %s667 = scalar_select %p666, %s37, 1
        %s668 = smul.addr %s667, 2
        %s669 = smul.addr %s668, 8
        %s670 = scalar_lea.vmem %s7, %s669
        %p671 = pneg %p227
        %p672 = pneg %p224
        %p673 = scmp.lt.s32.totalorder %s37, 1
        %s674 = scalar_select %p673, %s37, 1
        %s675 = smul.addr %s674, 128
        %s676 = smul.addr %s675, 4
        %s677 = scalar_lea.vmem %s8, %s676
        %p678 = pneg %p253
        %p679 = pneg %p250
        %s680 = sand.u32 %s32, 1
        %s681 = scalar_lea.sflag [#allocation4], %s680
        %s682 = sand.u32 %s266, 1
        %s683 = smul.addr %s682, 8
        %s684 = scalar_lea.vmem [#allocation8], %s683
        %p685 = pneg %p279
        %p686 = pneg %p276
        %s687 = sand.u32 %s32, 1
        %s688 = scalar_lea.sflag [#allocation4], %s687
        %s689 = sand.u32 %s292, 1
        %s690 = smul.addr %s689, 128
        %s691 = scalar_lea.vmem [#allocation9], %s690
        %p692 = pneg %p305
        %p693 = pneg %p302
        %s694 = sand.u32 %s32, 1
        %s695 = scalar_lea.sflag [#allocation4], %s694
        %s696 = sand.u32 %s318, 1
        %s697 = smul.addr %s696, 128
        %s698 = scalar_lea.vmem [#allocation10], %s697
        %p699 = pneg %p331
        %p700 = pneg %p328
        %p701 = scmp.lt.s32.totalorder %s37, 1
        %s702 = scalar_select %p701, %s37, 1
        %s703 = smul.addr %s702, 2
        %s704 = smul.addr %s703, 4
        %s705 = scalar_lea.vmem %s12, %s704
        %p706 = pneg %p357
        %p707 = pneg %p354
        %s708 = sand.u32 %s32, 1
        %s709 = scalar_lea.sflag [#allocation4], %s708
        %s710 = sand.u32 %s370, 1
        %s711 = scalar_lea.vmem [#allocation11], %s710
        %p712 = pneg %p383
        %p713 = pneg %p380
        %p714 = pneg %p409
        %p715 = pneg %p406
        %s716 = sand.u32 %s396, 1
        %s717 = scalar_lea.sflag [#allocation5], %s716
        %s718 = sand.u32 %s396, 1
        %s719 = smul.addr %s718, 64
        %s720 = scalar_lea.vmem [#allocation12], %s719
        %p721 = scmp.lt.s32.totalorder %s36, 1
        %s722 = scalar_select %p721, %s36, 1
        %s723 = smul.addr %s722, 2
        %s724 = smul.addr %s723, 8
        %s725 = scalar_lea.vmem %s1, %s724
        %p726 = scmp.lt.s32.totalorder %s36, 1
        %s727 = scalar_select %p726, %s36, 1
        %s728 = scalar_lea.vmem %s2, %s727
        %p729 = scmp.lt.s32.totalorder %s37, 1
        %s730 = scalar_select %p729, %s37, 1
        %s731 = smul.addr %s730, 2
        %s732 = smul.addr %s731, 8
        %s733 = scalar_lea.vmem %s7, %s732
        %p734 = scmp.lt.s32.totalorder %s37, 1
        %s735 = scalar_select %p734, %s37, 1
        %s736 = smul.addr %s735, 128
        %s737 = smul.addr %s736, 4
        %s738 = scalar_lea.vmem %s8, %s737
        %p739 = scmp.lt.s32.totalorder %s37, 1
        %s740 = scalar_select %p739, %s37, 1
        %s741 = smul.addr %s740, 2
        %s742 = smul.addr %s741, 4
        %s743 = scalar_lea.vmem %s12, %s742
        %p745 = scmp.eq.s32.totalorder %s37, 0
        // Predicated region
        $region101: #{transformer_decoder_forward.1} parent=75 // pred_check
          %p746 = pneg %p745
        $region102: #{transformer_decoder_forward.1} parent=75 // pred_check_branch
          %748 = sbr.rel (%p746) target = $region104
        $region103: #{transformer_decoder_forward.1} parent=75 // pred_region
          %v749 = vld [vmem:[%s595] sm:$0xff]
          %v750 = vld [vmem:[%s595 + $0x8] sm:$0xff]
          %v751 = vld [vmem:[%s595 + $0x10] sm:$0xff]
          %v752 = vld [vmem:[%s595 + $0x18] sm:$0xff]
          %v753 = vld [vmem:[%s595 + $0x20] sm:$0xff]
          %v754 = vld [vmem:[%s595 + $0x28] sm:$0xff]
          %v755 = vld [vmem:[%s595 + $0x30] sm:$0xff]
          %v756 = vld [vmem:[%s595 + $0x38] sm:$0xff]
          %757 = vst [vmem:[#allocation2] sm:$0xff] %v749
          %758 = vst [vmem:[#allocation2 + $0x8] sm:$0xff] %v750
          %759 = vst [vmem:[#allocation2 + $0x10] sm:$0xff] %v751
          %760 = vst [vmem:[#allocation2 + $0x18] sm:$0xff] %v752
          %761 = vst [vmem:[#allocation2 + $0x20] sm:$0xff] %v753
          %762 = vst [vmem:[#allocation2 + $0x28] sm:$0xff] %v754
          %763 = vst [vmem:[#allocation2 + $0x30] sm:$0xff] %v755
          %764 = vst [vmem:[#allocation2 + $0x38] sm:$0xff] %v756
        $region104: #{transformer_decoder_forward.1} parent=75 // pred_fallthru
          _
        %v765 = vld [vmem:[#allocation2] sm:$0xff]
        %v766 = vld [vmem:[#allocation2 + $0x8] sm:$0xff]
        %v767 = vld [vmem:[#allocation2 + $0x10] sm:$0xff]
        %v768 = vld [vmem:[#allocation2 + $0x18] sm:$0xff]
        %v769 = vld [vmem:[#allocation2 + $0x20] sm:$0xff]
        %v770 = vld [vmem:[#allocation2 + $0x28] sm:$0xff]
        %v771 = vld [vmem:[#allocation2 + $0x30] sm:$0xff]
        %v772 = vld [vmem:[#allocation2 + $0x38] sm:$0xff]
        %v773 = vld [vmem:[%s725] sm:$0xff]
        %v774 = vld [vmem:[%s725 + $0x8] sm:$0xff]
        %v775 = vld [vmem:[%s3] sm:$0xff]
        %v776 = vld [vmem:[%s3 + $0x8] sm:$0xff]
        %v777 = vld [vmem:[%s3 + $0x10] sm:$0xff]
        %v778 = vld [vmem:[%s3 + $0x18] sm:$0xff]
        %v779 = vld [vmem:[%s3 + $0x20] sm:$0xff]
        %v780 = vld [vmem:[%s3 + $0x28] sm:$0xff]
        %v781 = vld [vmem:[%s3 + $0x30] sm:$0xff]
        %v782 = vld [vmem:[%s3 + $0x38] sm:$0xff]
        %v783 = vld [vmem:[%s4] sm:$0xff]
        %v784 = vld [vmem:[%s4 + $0x8] sm:$0xff]
        %v785 = vld [vmem:[%s728] sm:$0x1]
        %v786 = vld [vmem:[%s733] sm:$0xff]
        %v787 = vld [vmem:[%s733 + $0x8] sm:$0x3]
        %v788 = vld [vmem:[%s608] sm:$0xff]
        %v789 = vld [vmem:[%s743] sm:$0x77]
        %790 = vadd.xlane.f32.xlu0 %v765
        %v791 = vpop.xlane.xlu0 %790
        %792 = vadd.xlane.f32.xlu0 %v766
        %v793 = vpop.xlane.xlu0 %792
        %794 = vadd.xlane.f32.xlu0 %v767
        %v795 = vpop.xlane.xlu0 %794
        %796 = vadd.xlane.f32.xlu0 %v768
        %v797 = vpop.xlane.xlu0 %796
        %798 = vadd.xlane.f32.xlu0 %v769
        %v799 = vpop.xlane.xlu0 %798
        %800 = vadd.xlane.f32.xlu0 %v770
        %v801 = vpop.xlane.xlu0 %800
        %802 = vadd.xlane.f32.xlu0 %v771
        %v803 = vpop.xlane.xlu0 %802
        %804 = vadd.xlane.f32.xlu0 %v772
        %v805 = vpop.xlane.xlu0 %804
        %v806 = vrcp.pop 128.0
        %v807 = vmul.f32 %v791, %v806
        %v808 = vmul.f32 %v793, %v806
        %v809 = vmul.f32 %v795, %v806
        %v810 = vmul.f32 %v797, %v806
        %v811 = vmul.f32 %v799, %v806
        %v812 = vmul.f32 %v801, %v806
        %v813 = vmul.f32 %v803, %v806
        %v814 = vmul.f32 %v805, %v806
        %v815 = vsub.f32 %v765, %v807
        %v816 = vsub.f32 %v766, %v808
        %v817 = vsub.f32 %v767, %v809
        %v818 = vsub.f32 %v768, %v810
        %v819 = vsub.f32 %v769, %v811
        %v820 = vsub.f32 %v770, %v812
        %v821 = vsub.f32 %v771, %v813
        %v822 = vsub.f32 %v772, %v814
        %v823 = vmul.f32 %v815, %v815
        %v824 = vmul.f32 %v816, %v816
        %v825 = vmul.f32 %v817, %v817
        %v826 = vmul.f32 %v818, %v818
        %v827 = vmul.f32 %v819, %v819
        %v828 = vmul.f32 %v820, %v820
        %v829 = vmul.f32 %v821, %v821
        %v830 = vmul.f32 %v822, %v822
        %831 = vadd.xlane.f32.xlu0 %v823
        %v832 = vpop.xlane.xlu0 %831
        %833 = vadd.xlane.f32.xlu0 %v824
        %v834 = vpop.xlane.xlu0 %833
        %835 = vadd.xlane.f32.xlu0 %v825
        %v836 = vpop.xlane.xlu0 %835
        %837 = vadd.xlane.f32.xlu0 %v826
        %v838 = vpop.xlane.xlu0 %837
        %839 = vadd.xlane.f32.xlu0 %v827
        %v840 = vpop.xlane.xlu0 %839
        %841 = vadd.xlane.f32.xlu0 %v828
        %v842 = vpop.xlane.xlu0 %841
        %843 = vadd.xlane.f32.xlu0 %v829
        %v844 = vpop.xlane.xlu0 %843
        %845 = vadd.xlane.f32.xlu0 %v830
        %v846 = vpop.xlane.xlu0 %845
        %v847 = vmul.f32 %v832, %v806
        %v848 = vmul.f32 %v834, %v806
        %v849 = vmul.f32 %v836, %v806
        %v850 = vmul.f32 %v838, %v806
        %v851 = vmul.f32 %v840, %v806
        %v852 = vmul.f32 %v842, %v806
        %v853 = vmul.f32 %v844, %v806
        %v854 = vmul.f32 %v846, %v806
        %v855 = vadd.f32 %v847, 1e-05
        %v856 = vadd.f32 %v848, 1e-05
        %v857 = vadd.f32 %v849, 1e-05
        %v858 = vadd.f32 %v850, 1e-05
        %v859 = vadd.f32 %v851, 1e-05
        %v860 = vadd.f32 %v852, 1e-05
        %v861 = vadd.f32 %v853, 1e-05
        %v862 = vadd.f32 %v854, 1e-05
        %v863 = vrsqrt.pop %v855
        %v864 = vrsqrt.pop %v856
        %v865 = vrsqrt.pop %v857
        %v866 = vrsqrt.pop %v858
        %v867 = vrsqrt.pop %v859
        %v868 = vrsqrt.pop %v860
        %v869 = vrsqrt.pop %v861
        %v870 = vrsqrt.pop %v862
        %v871 = vmul.f32 %v815, %v863
        %v872 = vmul.f32 %v816, %v864
        %v873 = vmul.f32 %v817, %v865
        %v874 = vmul.f32 %v818, %v866
        %v875 = vmul.f32 %v819, %v867
        %v876 = vmul.f32 %v820, %v868
        %v877 = vmul.f32 %v821, %v869
        %v878 = vmul.f32 %v822, %v870
        %v879 = vlaneseq
        %v880 = vshrl.u32 %v879, 7
        %v881 = vsub.s32 0, %v880
        %v882 = vrot.slane %v786, %v881
        %v883 = vmul.f32 %v871, %v882
        %v884 = vmul.f32 %v872, %v882
        %v885 = vmul.f32 %v873, %v882
        %v886 = vmul.f32 %v874, %v882
        %v887 = vmul.f32 %v875, %v882
        %v888 = vmul.f32 %v876, %v882
        %v889 = vmul.f32 %v877, %v882
        %v890 = vmul.f32 %v878, %v882
        %v891 = vlaneseq
        %v892 = vshrl.u32 %v891, 7
        %v893 = vsub.s32 1, %v892
        %v894 = vrot.slane %v786, %v893
        %v895 = vadd.f32 %v883, %v894
        %v896 = vadd.f32 %v884, %v894
        %v897 = vadd.f32 %v885, %v894
        %v898 = vadd.f32 %v886, %v894
        %v899 = vadd.f32 %v887, %v894
        %v900 = vadd.f32 %v888, %v894
        %v901 = vadd.f32 %v889, %v894
        %v902 = vadd.f32 %v890, %v894
        %v903 = vadd.f32 %v895, %v775
        %v904 = vadd.f32 %v896, %v776
        %v905 = vadd.f32 %v897, %v777
        %v906 = vadd.f32 %v898, %v778
        %v907 = vadd.f32 %v899, %v779
        %v908 = vadd.f32 %v900, %v780
        %v909 = vadd.f32 %v901, %v781
        %v910 = vadd.f32 %v902, %v782
        %v911 = vpack.c.bf16 %v904, %v903
        %v912 = vpack.c.bf16 %v906, %v905
        %v913 = vpack.c.bf16 %v908, %v907
        %v914 = vpack.c.bf16 %v910, %v909
        %v915 = vpack.c.bf16 %v896, %v895
        %v916 = vpack.c.bf16 %v898, %v897
        %v917 = vpack.c.bf16 %v900, %v899
        %v918 = vpack.c.bf16 %v902, %v901
        %v919 = vld [vmem:[%s738] sm:$0xf]
        %v920 = vld [vmem:[%s738 + $0x4] sm:$0xf]
        %v921 = vld [vmem:[%s738 + $0x8] sm:$0xf]
        %v922 = vld [vmem:[%s738 + $0xc] sm:$0xf]
        %v923 = vld [vmem:[%s738 + $0x10] sm:$0xf]
        %v924 = vld [vmem:[%s738 + $0x14] sm:$0xf]
        %v925 = vld [vmem:[%s738 + $0x18] sm:$0xf]
        %v926 = vld [vmem:[%s738 + $0x1c] sm:$0xf]
        %v927 = vld [vmem:[%s738 + $0x20] sm:$0xf]
        %v928 = vld [vmem:[%s738 + $0x24] sm:$0xf]
        %v929 = vld [vmem:[%s738 + $0x28] sm:$0xf]
        %v930 = vld [vmem:[%s738 + $0x2c] sm:$0xf]
        %v931 = vld [vmem:[%s738 + $0x30] sm:$0xf]
        %v932 = vld [vmem:[%s738 + $0x34] sm:$0xf]
        %v933 = vld [vmem:[%s738 + $0x38] sm:$0xf]
        %v934 = vld [vmem:[%s738 + $0x3c] sm:$0xf]
        %v935 = vlaneseq
        %v936 = vshrl.u32 %v935, 7
        %v937 = vsub.s32 0, %v936
        %v938 = vrot.slane %v788, %v937
        %v955 = vunpack.c.l.b16 %v919
        %v956 = vunpack.c.l.b16 %v920
        %v957 = vunpack.c.l.b16 %v921
        %v958 = vunpack.c.l.b16 %v922
        %v959 = vunpack.c.l.b16 %v923
        %v960 = vunpack.c.l.b16 %v924
        %v961 = vunpack.c.l.b16 %v925
        %v962 = vunpack.c.l.b16 %v926
        %v963 = vunpack.c.l.b16 %v927
        %v964 = vunpack.c.l.b16 %v928
        %v965 = vunpack.c.l.b16 %v929
        %v966 = vunpack.c.l.b16 %v930
        %v967 = vunpack.c.l.b16 %v931
        %v968 = vunpack.c.l.b16 %v932
        %v969 = vunpack.c.l.b16 %v933
        %v970 = vunpack.c.l.b16 %v934
        %v971 = vpack.c.b16 %v956, %v955
        %v972 = vpack.c.b16 %v958, %v957
        %v973 = vpack.c.b16 %v960, %v959
        %v974 = vpack.c.b16 %v962, %v961
        %v975 = vpack.c.b16 %v964, %v963
        %v976 = vpack.c.b16 %v966, %v965
        %v977 = vpack.c.b16 %v968, %v967
        %v978 = vpack.c.b16 %v970, %v969
        %987 = vmatprep.subr.bf16.mxu0 0
        %988 = vmatpush1.bf16.msra.mxu0 %v971
        %989 = vmatprep.subr.bf16.mxu0 0
        %990 = vmatpush1.bf16.msra.mxu0 %v972
        %991 = vmatprep.subr.bf16.mxu0 0
        %992 = vmatpush1.bf16.msra.mxu0 %v973
        %993 = vmatprep.subr.bf16.mxu0 0
        %994 = vmatpush1.bf16.msra.mxu0 %v974
        %995 = vmatprep.subr.bf16.mxu0 0
        %996 = vmatpush1.bf16.msra.mxu0 %v975
        %997 = vmatprep.subr.bf16.mxu0 0
        %998 = vmatpush1.bf16.msra.mxu0 %v976
        %999 = vmatprep.subr.bf16.mxu0 0
        %1000 = vmatpush1.bf16.msra.mxu0 %v977
        %1001 = vmatprep.subr.bf16.mxu0 0
        %1002 = vmatpush1.bf16.msra.mxu0 %v978
        %1003 = vmatprep.subr.bf16.mxu0 0
        %1004 = vmatpush1.bf16.msra.mxu0 0
        %1005 = vmatprep.subr.bf16.mxu0 0
        %1006 = vmatpush1.bf16.msra.mxu0 0
        %1007 = vmatprep.subr.bf16.mxu0 0
        %1008 = vmatpush1.bf16.msra.mxu0 0
        %1009 = vmatprep.subr.bf16.mxu0 0
        %1010 = vmatpush1.bf16.msra.mxu0 0
        %1011 = vmatprep.subr.bf16.mxu0 0
        %1012 = vmatpush1.bf16.msra.mxu0 0
        %1013 = vmatprep.subr.bf16.mxu0 0
        %1014 = vmatpush1.bf16.msra.mxu0 0
        %1015 = vmatprep.subr.bf16.mxu0 0
        %1016 = vmatpush1.bf16.msra.mxu0 0
        %1017 = vmatprep.subr.bf16.mxu0 0
        %1018 = vmatpush1.bf16.msra.mxu0 0
        %1019 = vmatprep.mubr.bf16.mxu0 0
        %1020 = vmatmul.mubr.bf16.gmra.mrb[0].mxu0 %v911
        %v1021 = vpop.f32.mrb[0].mxu0
        %v1022 = vadd.f32 %v938, %v1021
        %v1023 = vpop.f32.mrb[0].mxu0
        %v1024 = vpop.f32.mrb[0].mxu0
        %v1025 = vadd.f32 %v938, %v1024
        %v1026 = vpop.f32.mrb[0].mxu0
        %1027 = vmatprep.mubr.bf16.mxu0 0
        %1028 = vmatmul.mubr.bf16.gmra.mrb[0].mxu0 %v912
        %v1029 = vpop.f32.mrb[0].mxu0
        %v1030 = vadd.f32 %v938, %v1029
        %v1031 = vpop.f32.mrb[0].mxu0
        %v1032 = vpop.f32.mrb[0].mxu0
        %v1033 = vadd.f32 %v938, %v1032
        %v1034 = vpop.f32.mrb[0].mxu0
        %1035 = vmatprep.mubr.bf16.mxu0 0
        %1036 = vmatmul.mubr.bf16.gmra.mrb[0].mxu0 %v913
        %v1037 = vpop.f32.mrb[0].mxu0
        %v1038 = vadd.f32 %v938, %v1037
        %v1039 = vpop.f32.mrb[0].mxu0
        %v1040 = vpop.f32.mrb[0].mxu0
        %v1041 = vadd.f32 %v938, %v1040
        %v1042 = vpop.f32.mrb[0].mxu0
        %1043 = vmatprep.mubr.bf16.mxu0 0
        %1044 = vmatmul.mubr.bf16.gmra.mrb[0].mxu0 %v914
        %v1045 = vpop.f32.mrb[0].mxu0
        %v1046 = vadd.f32 %v938, %v1045
        %v1047 = vpop.f32.mrb[0].mxu0
        %v1048 = vpop.f32.mrb[0].mxu0
        %v1049 = vadd.f32 %v938, %v1048
        %v1050 = vpop.f32.mrb[0].mxu0
        %1051 = vdwg.mxu0
        %s1052 = scalar_lea.vmem %s738, 64
        %v1053 = vld [vmem:[%s1052] sm:$0xf]
        %v1054 = vld [vmem:[%s1052 + $0x4] sm:$0xf]
        %v1055 = vld [vmem:[%s1052 + $0x8] sm:$0xf]
        %v1056 = vld [vmem:[%s1052 + $0xc] sm:$0xf]
        %v1057 = vld [vmem:[%s1052 + $0x10] sm:$0xf]
        %v1058 = vld [vmem:[%s1052 + $0x14] sm:$0xf]
        %v1059 = vld [vmem:[%s1052 + $0x18] sm:$0xf]
        %v1060 = vld [vmem:[%s1052 + $0x1c] sm:$0xf]
        %v1061 = vld [vmem:[%s1052 + $0x20] sm:$0xf]
        %v1062 = vld [vmem:[%s1052 + $0x24] sm:$0xf]
        %v1063 = vld [vmem:[%s1052 + $0x28] sm:$0xf]
        %v1064 = vld [vmem:[%s1052 + $0x2c] sm:$0xf]
        %v1065 = vld [vmem:[%s1052 + $0x30] sm:$0xf]
        %v1066 = vld [vmem:[%s1052 + $0x34] sm:$0xf]
        %v1067 = vld [vmem:[%s1052 + $0x38] sm:$0xf]
        %v1068 = vld [vmem:[%s1052 + $0x3c] sm:$0xf]
        %v1069 = vlaneseq
        %v1070 = vshrl.u32 %v1069, 7
        %v1071 = vsub.s32 1, %v1070
        %v1072 = vrot.slane %v788, %v1071
        %v1089 = vunpack.c.l.b16 %v1053
        %v1090 = vunpack.c.l.b16 %v1054
        %v1091 = vunpack.c.l.b16 %v1055
        %v1092 = vunpack.c.l.b16 %v1056
        %v1093 = vunpack.c.l.b16 %v1057
        %v1094 = vunpack.c.l.b16 %v1058
        %v1095 = vunpack.c.l.b16 %v1059
        %v1096 = vunpack.c.l.b16 %v1060
        %v1097 = vunpack.c.l.b16 %v1061
        %v1098 = vunpack.c.l.b16 %v1062
        %v1099 = vunpack.c.l.b16 %v1063
        %v1100 = vunpack.c.l.b16 %v1064
        %v1101 = vunpack.c.l.b16 %v1065
        %v1102 = vunpack.c.l.b16 %v1066
        %v1103 = vunpack.c.l.b16 %v1067
        %v1104 = vunpack.c.l.b16 %v1068
        %v1105 = vpack.c.b16 %v1090, %v1089
        %v1106 = vpack.c.b16 %v1092, %v1091
        %v1107 = vpack.c.b16 %v1094, %v1093
        %v1108 = vpack.c.b16 %v1096, %v1095
        %v1109 = vpack.c.b16 %v1098, %v1097
        %v1110 = vpack.c.b16 %v1100, %v1099
        %v1111 = vpack.c.b16 %v1102, %v1101
        %v1112 = vpack.c.b16 %v1104, %v1103
        %1121 = vmatprep.subr.bf16.mxu0 0
        %1122 = vmatpush1.bf16.msra.mxu0 %v1105
        %1123 = vmatprep.subr.bf16.mxu0 0
        %1124 = vmatpush1.bf16.msra.mxu0 %v1106
        %1125 = vmatprep.subr.bf16.mxu0 0
        %1126 = vmatpush1.bf16.msra.mxu0 %v1107
        %1127 = vmatprep.subr.bf16.mxu0 0
        %1128 = vmatpush1.bf16.msra.mxu0 %v1108
        %1129 = vmatprep.subr.bf16.mxu0 0
        %1130 = vmatpush1.bf16.msra.mxu0 %v1109
        %1131 = vmatprep.subr.bf16.mxu0 0
        %1132 = vmatpush1.bf16.msra.mxu0 %v1110
        %1133 = vmatprep.subr.bf16.mxu0 0
        %1134 = vmatpush1.bf16.msra.mxu0 %v1111
        %1135 = vmatprep.subr.bf16.mxu0 0
        %1136 = vmatpush1.bf16.msra.mxu0 %v1112
        %1137 = vmatprep.subr.bf16.mxu0 0
        %1138 = vmatpush1.bf16.msra.mxu0 0
        %1139 = vmatprep.subr.bf16.mxu0 0
        %1140 = vmatpush1.bf16.msra.mxu0 0
        %1141 = vmatprep.subr.bf16.mxu0 0
        %1142 = vmatpush1.bf16.msra.mxu0 0
        %1143 = vmatprep.subr.bf16.mxu0 0
        %1144 = vmatpush1.bf16.msra.mxu0 0
        %1145 = vmatprep.subr.bf16.mxu0 0
        %1146 = vmatpush1.bf16.msra.mxu0 0
        %1147 = vmatprep.subr.bf16.mxu0 0
        %1148 = vmatpush1.bf16.msra.mxu0 0
        %1149 = vmatprep.subr.bf16.mxu0 0
        %1150 = vmatpush1.bf16.msra.mxu0 0
        %1151 = vmatprep.subr.bf16.mxu0 0
        %1152 = vmatpush1.bf16.msra.mxu0 0
        %1153 = vmatprep.mubr.bf16.mxu0 0
        %1154 = vmatmul.mubr.bf16.gmra.mrb[0].mxu0 %v911
        %v1155 = vpop.f32.mrb[0].mxu0
        %v1156 = vadd.f32 %v1072, %v1155
        %v1157 = vpop.f32.mrb[0].mxu0
        %v1158 = vpop.f32.mrb[0].mxu0
        %v1159 = vadd.f32 %v1072, %v1158
        %v1160 = vpop.f32.mrb[0].mxu0
        %1161 = vmatprep.mubr.bf16.mxu0 0
        %1162 = vmatmul.mubr.bf16.gmra.mrb[0].mxu0 %v912
        %v1163 = vpop.f32.mrb[0].mxu0
        %v1164 = vadd.f32 %v1072, %v1163
        %v1165 = vpop.f32.mrb[0].mxu0
        %v1166 = vpop.f32.mrb[0].mxu0
        %v1167 = vadd.f32 %v1072, %v1166
        %v1168 = vpop.f32.mrb[0].mxu0
        %1169 = vmatprep.mubr.bf16.mxu0 0
        %1170 = vmatmul.mubr.bf16.gmra.mrb[0].mxu0 %v913
        %v1171 = vpop.f32.mrb[0].mxu0
        %v1172 = vadd.f32 %v1072, %v1171
        %v1173 = vpop.f32.mrb[0].mxu0
        %v1174 = vpop.f32.mrb[0].mxu0
        %v1175 = vadd.f32 %v1072, %v1174
        %v1176 = vpop.f32.mrb[0].mxu0
        %1177 = vmatprep.mubr.bf16.mxu0 0
        %1178 = vmatmul.mubr.bf16.gmra.mrb[0].mxu0 %v914
        %v1179 = vpop.f32.mrb[0].mxu0
        %v1180 = vadd.f32 %v1072, %v1179
        %v1181 = vpop.f32.mrb[0].mxu0
        %v1182 = vpop.f32.mrb[0].mxu0
        %v1183 = vadd.f32 %v1072, %v1182
        %v1184 = vpop.f32.mrb[0].mxu0
        %1185 = vdwg.mxu0
        %s1186 = scalar_lea.vmem %s738, 128
        %v1187 = vld [vmem:[%s1186] sm:$0xf]
        %v1188 = vld [vmem:[%s1186 + $0x4] sm:$0xf]
        %v1189 = vld [vmem:[%s1186 + $0x8] sm:$0xf]
        %v1190 = vld [vmem:[%s1186 + $0xc] sm:$0xf]
        %v1191 = vld [vmem:[%s1186 + $0x10] sm:$0xf]
        %v1192 = vld [vmem:[%s1186 + $0x14] sm:$0xf]
        %v1193 = vld [vmem:[%s1186 + $0x18] sm:$0xf]
        %v1194 = vld [vmem:[%s1186 + $0x1c] sm:$0xf]
        %v1195 = vld [vmem:[%s1186 + $0x20] sm:$0xf]
        %v1196 = vld [vmem:[%s1186 + $0x24] sm:$0xf]
        %v1197 = vld [vmem:[%s1186 + $0x28] sm:$0xf]
        %v1198 = vld [vmem:[%s1186 + $0x2c] sm:$0xf]
        %v1199 = vld [vmem:[%s1186 + $0x30] sm:$0xf]
        %v1200 = vld [vmem:[%s1186 + $0x34] sm:$0xf]
        %v1201 = vld [vmem:[%s1186 + $0x38] sm:$0xf]
        %v1202 = vld [vmem:[%s1186 + $0x3c] sm:$0xf]
        %v1203 = vlaneseq
        %v1204 = vshrl.u32 %v1203, 7
        %v1205 = vsub.s32 2, %v1204
        %v1206 = vrot.slane %v788, %v1205
        %v1223 = vunpack.c.l.b16 %v1187
        %v1224 = vunpack.c.l.b16 %v1188
        %v1225 = vunpack.c.l.b16 %v1189
        %v1226 = vunpack.c.l.b16 %v1190
        %v1227 = vunpack.c.l.b16 %v1191
        %v1228 = vunpack.c.l.b16 %v1192
        %v1229 = vunpack.c.l.b16 %v1193
        %v1230 = vunpack.c.l.b16 %v1194
        %v1231 = vunpack.c.l.b16 %v1195
        %v1232 = vunpack.c.l.b16 %v1196
        %v1233 = vunpack.c.l.b16 %v1197
        %v1234 = vunpack.c.l.b16 %v1198
        %v1235 = vunpack.c.l.b16 %v1199
        %v1236 = vunpack.c.l.b16 %v1200
        %v1237 = vunpack.c.l.b16 %v1201
        %v1238 = vunpack.c.l.b16 %v1202
        %v1239 = vpack.c.b16 %v1224, %v1223
        %v1240 = vpack.c.b16 %v1226, %v1225
        %v1241 = vpack.c.b16 %v1228, %v1227
        %v1242 = vpack.c.b16 %v1230, %v1229
        %v1243 = vpack.c.b16 %v1232, %v1231
        %v1244 = vpack.c.b16 %v1234, %v1233
        %v1245 = vpack.c.b16 %v1236, %v1235
        %v1246 = vpack.c.b16 %v1238, %v1237
        %1255 = vmatprep.subr.bf16.mxu0 0
        %1256 = vmatpush1.bf16.msra.mxu0 %v1239
        %1257 = vmatprep.subr.bf16.mxu0 0
        %1258 = vmatpush1.bf16.msra.mxu0 %v1240
        %1259 = vmatprep.subr.bf16.mxu0 0
        %1260 = vmatpush1.bf16.msra.mxu0 %v1241
        %1261 = vmatprep.subr.bf16.mxu0 0
        %1262 = vmatpush1.bf16.msra.mxu0 %v1242
        %1263 = vmatprep.subr.bf16.mxu0 0
        %1264 = vmatpush1.bf16.msra.mxu0 %v1243
        %1265 = vmatprep.subr.bf16.mxu0 0
        %1266 = vmatpush1.bf16.msra.mxu0 %v1244
        %1267 = vmatprep.subr.bf16.mxu0 0
        %1268 = vmatpush1.bf16.msra.mxu0 %v1245
        %1269 = vmatprep.subr.bf16.mxu0 0
        %1270 = vmatpush1.bf16.msra.mxu0 %v1246
        %1271 = vmatprep.subr.bf16.mxu0 0
        %1272 = vmatpush1.bf16.msra.mxu0 0
        %1273 = vmatprep.subr.bf16.mxu0 0
        %1274 = vmatpush1.bf16.msra.mxu0 0
        %1275 = vmatprep.subr.bf16.mxu0 0
        %1276 = vmatpush1.bf16.msra.mxu0 0
        %1277 = vmatprep.subr.bf16.mxu0 0
        %1278 = vmatpush1.bf16.msra.mxu0 0
        %1279 = vmatprep.subr.bf16.mxu0 0
        %1280 = vmatpush1.bf16.msra.mxu0 0
        %1281 = vmatprep.subr.bf16.mxu0 0
        %1282 = vmatpush1.bf16.msra.mxu0 0
        %1283 = vmatprep.subr.bf16.mxu0 0
        %1284 = vmatpush1.bf16.msra.mxu0 0
        %1285 = vmatprep.subr.bf16.mxu0 0
        %1286 = vmatpush1.bf16.msra.mxu0 0
        %1287 = vmatprep.mubr.bf16.mxu0 0
        %1288 = vmatmul.mubr.bf16.gmra.mrb[0].mxu0 %v915
        %v1289 = vpop.f32.mrb[0].mxu0
        %v1290 = vadd.f32 %v1206, %v1289
        %v1291 = vpop.f32.mrb[0].mxu0
        %v1292 = vpop.f32.mrb[0].mxu0
        %v1293 = vadd.f32 %v1206, %v1292
        %v1294 = vpop.f32.mrb[0].mxu0
        %1295 = vmatprep.mubr.bf16.mxu0 0
        %1296 = vmatmul.mubr.bf16.gmra.mrb[0].mxu0 %v916
        %v1297 = vpop.f32.mrb[0].mxu0
        %v1298 = vadd.f32 %v1206, %v1297
        %v1299 = vpop.f32.mrb[0].mxu0
        %v1300 = vpop.f32.mrb[0].mxu0
        %v1301 = vadd.f32 %v1206, %v1300
        %v1302 = vpop.f32.mrb[0].mxu0
        %1303 = vmatprep.mubr.bf16.mxu0 0
        %1304 = vmatmul.mubr.bf16.gmra.mrb[0].mxu0 %v917
        %v1305 = vpop.f32.mrb[0].mxu0
        %v1306 = vadd.f32 %v1206, %v1305
        %v1307 = vpop.f32.mrb[0].mxu0
        %v1308 = vpop.f32.mrb[0].mxu0
        %v1309 = vadd.f32 %v1206, %v1308
        %v1310 = vpop.f32.mrb[0].mxu0
        %1311 = vmatprep.mubr.bf16.mxu0 0
        %1312 = vmatmul.mubr.bf16.gmra.mrb[0].mxu0 %v918
        %v1313 = vpop.f32.mrb[0].mxu0
        %v1314 = vadd.f32 %v1206, %v1313
        %v1315 = vpop.f32.mrb[0].mxu0
        %v1316 = vpop.f32.mrb[0].mxu0
        %v1317 = vadd.f32 %v1206, %v1316
        %v1318 = vpop.f32.mrb[0].mxu0
        %1319 = vdwg.mxu0
        %v1320 = vmul.f32 %v1022, 0.17677669
        %v1321 = vmul.f32 %v1025, 0.17677669
        %v1322 = vmul.f32 %v1030, 0.17677669
        %v1323 = vmul.f32 %v1033, 0.17677669
        %v1324 = vmul.f32 %v1038, 0.17677669
        %v1325 = vmul.f32 %v1041, 0.17677669
        %v1326 = vmul.f32 %v1046, 0.17677669
        %v1327 = vmul.f32 %v1049, 0.17677669
        %v1328 = vpack.c.bf16 %v1159, %v1156
        %v1329 = vpack.c.bf16 %v1167, %v1164
        %v1330 = vpack.c.bf16 %v1175, %v1172
        %v1331 = vpack.c.bf16 %v1183, %v1180
        %v1332 = vlaneseq
        %v1333 = vand.u32 %v1332, 127
        %vm1334 = vcmp.ge.s32.totalorder %v1333, 0
        %vm1335 = vcmp.lt.s32.totalorder %v1333, 32
        %vm1336 = vmand %vm1334, %vm1335
        %v1337 = vsel %vm1336, 1, 0
        %vm1338 = vcmp.eq.s32.totalorder %v1337, 1
        %v1339 = vsel %vm1338, %v1320, 0.0
        %v1340 = vsel %vm1338, %v1321, 0.0
        %v1341 = vsel %vm1338, %v1322, 0.0
        %v1342 = vsel %vm1338, %v1323, 0.0
        %v1343 = vsel %vm1338, %v1324, 0.0
        %v1344 = vsel %vm1338, %v1325, 0.0
        %v1345 = vsel %vm1338, %v1326, 0.0
        %v1346 = vsel %vm1338, %v1327, 0.0
        %v1347 = vpack.c.bf16 %v1340, %v1339
        %v1348 = vpack.c.bf16 %v1342, %v1341
        %v1349 = vpack.c.bf16 %v1344, %v1343
        %v1350 = vpack.c.bf16 %v1346, %v1345
        %1351 = vmatprep.subr.bf16.mxu0 0
        %1352 = vmatpush1.bf16.xpose.msra.mxu0 %v1328
        %1353 = vmatprep.subr.bf16.mxu0 0
        %1354 = vmatpush1.bf16.xpose.msra.mxu0 %v1329
        %1355 = vmatprep.subr.bf16.mxu0 0
        %1356 = vmatpush1.bf16.xpose.msra.mxu0 %v1330
        %1357 = vmatprep.subr.bf16.mxu0 0
        %1358 = vmatpush1.bf16.xpose.msra.mxu0 %v1331
        %1359 = vmatprep.subr.bf16.mxu0 0
        %1360 = vmatpush1.bf16.xpose.msra.mxu0 0
        %1361 = vmatprep.subr.bf16.mxu0 0
        %1362 = vmatpush1.bf16.xpose.msra.mxu0 0
        %1363 = vmatprep.subr.bf16.mxu0 0
        %1364 = vmatpush1.bf16.xpose.msra.mxu0 0
        %1365 = vmatprep.subr.bf16.mxu0 0
        %1366 = vmatpush1.bf16.xpose.msra.mxu0 0
        %1367 = vmatprep.subr.bf16.mxu0 0
        %1368 = vmatpush1.bf16.xpose.msra.mxu0 0
        %1369 = vmatprep.subr.bf16.mxu0 0
        %1370 = vmatpush1.bf16.xpose.msra.mxu0 0
        %1371 = vmatprep.subr.bf16.mxu0 0
        %1372 = vmatpush1.bf16.xpose.msra.mxu0 0
        %1373 = vmatprep.subr.bf16.mxu0 0
        %1374 = vmatpush1.bf16.xpose.msra.mxu0 0
        %1375 = vmatprep.subr.bf16.mxu0 0
        %1376 = vmatpush1.bf16.xpose.msra.mxu0 0
        %1377 = vmatprep.subr.bf16.mxu0 0
        %1378 = vmatpush1.bf16.xpose.msra.mxu0 0
        %1379 = vmatprep.subr.bf16.mxu0 0
        %1380 = vmatpush1.bf16.xpose.msra.mxu0 0
        %1381 = vmatprep.subr.bf16.mxu0 0
        %1382 = vmatpush1.bf16.xpose.msra.mxu0 0
        %1383 = vmatprep.mubr.bf16.mxu0 0
        %1384 = vmatmul.mubr.bf16.gmra.mrb[0].mxu0 %v1347
        %v1385 = vpop.f32.mrb[0].mxu0
        %v1386 = vadd.f32 0.0, %v1385
        %v1387 = vpop.f32.mrb[0].mxu0
        %v1388 = vpop.f32.mrb[0].mxu0
        %v1389 = vadd.f32 0.0, %v1388
        %v1390 = vpop.f32.mrb[0].mxu0
        %1391 = vmatprep.mubr.bf16.mxu0 0
        %1392 = vmatmul.mubr.bf16.gmra.mrb[0].mxu0 %v1348
        %v1393 = vpop.f32.mrb[0].mxu0
        %v1394 = vadd.f32 0.0, %v1393
        %v1395 = vpop.f32.mrb[0].mxu0
        %v1396 = vpop.f32.mrb[0].mxu0
        %v1397 = vadd.f32 0.0, %v1396
        %v1398 = vpop.f32.mrb[0].mxu0
        %1399 = vmatprep.mubr.bf16.mxu0 0
        %1400 = vmatmul.mubr.bf16.gmra.mrb[0].mxu0 %v1349
        %v1401 = vpop.f32.mrb[0].mxu0
        %v1402 = vadd.f32 0.0, %v1401
        %v1403 = vpop.f32.mrb[0].mxu0
        %v1404 = vpop.f32.mrb[0].mxu0
        %v1405 = vadd.f32 0.0, %v1404
        %v1406 = vpop.f32.mrb[0].mxu0
        %1407 = vmatprep.mubr.bf16.mxu0 0
        %1408 = vmatmul.mubr.bf16.gmra.mrb[0].mxu0 %v1350
        %v1409 = vpop.f32.mrb[0].mxu0
        %v1410 = vadd.f32 0.0, %v1409
        %v1411 = vpop.f32.mrb[0].mxu0
        %v1412 = vpop.f32.mrb[0].mxu0
        %v1413 = vadd.f32 0.0, %v1412
        %v1414 = vpop.f32.mrb[0].mxu0
        %1415 = vdwg.mxu0
        %vm1416 = vcmask 523264
        %v1417 = vsel %vm1416, %v1386, -inf
        %1418 = vmax.xlane.f32.xlu0 %v1417
        %v1419 = vpop.xlane.xlu0 %1418
        %v1420 = vsel %vm1416, %v1389, -inf
        %1421 = vmax.xlane.f32.xlu0 %v1420
        %v1422 = vpop.xlane.xlu0 %1421
        %v1423 = vsel %vm1416, %v1394, -inf
        %1424 = vmax.xlane.f32.xlu0 %v1423
        %v1425 = vpop.xlane.xlu0 %1424
        %v1426 = vsel %vm1416, %v1397, -inf
        %1427 = vmax.xlane.f32.xlu0 %v1426
        %v1428 = vpop.xlane.xlu0 %1427
        %v1429 = vsel %vm1416, %v1402, -inf
        %1430 = vmax.xlane.f32.xlu0 %v1429
        %v1431 = vpop.xlane.xlu0 %1430
        %v1432 = vsel %vm1416, %v1405, -inf
        %1433 = vmax.xlane.f32.xlu0 %v1432
        %v1434 = vpop.xlane.xlu0 %1433
        %v1435 = vsel %vm1416, %v1410, -inf
        %1436 = vmax.xlane.f32.xlu0 %v1435
        %v1437 = vpop.xlane.xlu0 %1436
        %v1438 = vsel %vm1416, %v1413, -inf
        %1439 = vmax.xlane.f32.xlu0 %v1438
        %v1440 = vpop.xlane.xlu0 %1439
        %v1441 = vsub.f32 %v1386, %v1419
        %v1442 = vsub.f32 %v1389, %v1422
        %v1443 = vsub.f32 %v1394, %v1425
        %v1444 = vsub.f32 %v1397, %v1428
        %v1445 = vsub.f32 %v1402, %v1431
        %v1446 = vsub.f32 %v1405, %v1434
        %v1447 = vsub.f32 %v1410, %v1437
        %v1448 = vsub.f32 %v1413, %v1440
        %v1449 = vmul.f32 %v1441, 1.442695
        %v1450 = vpow.pop %v1449
        %v1451 = vmul.f32 %v1442, 1.442695
        %v1452 = vpow.pop %v1451
        %v1453 = vmul.f32 %v1443, 1.442695
        %v1454 = vpow.pop %v1453
        %v1455 = vmul.f32 %v1444, 1.442695
        %v1456 = vpow.pop %v1455
        %v1457 = vmul.f32 %v1445, 1.442695
        %v1458 = vpow.pop %v1457
        %v1459 = vmul.f32 %v1446, 1.442695
        %v1460 = vpow.pop %v1459
        %v1461 = vmul.f32 %v1447, 1.442695
        %v1462 = vpow.pop %v1461
        %v1463 = vmul.f32 %v1448, 1.442695
        %v1464 = vpow.pop %v1463
        %v1465 = vsel %vm1416, %v1450, 0.0
        %1466 = vadd.xlane.f32.xlu0 %v1465
        %v1467 = vpop.xlane.xlu0 %1466
        %v1468 = vsel %vm1416, %v1452, 0.0
        %1469 = vadd.xlane.f32.xlu0 %v1468
        %v1470 = vpop.xlane.xlu0 %1469
        %v1471 = vsel %vm1416, %v1454, 0.0
        %1472 = vadd.xlane.f32.xlu0 %v1471
        %v1473 = vpop.xlane.xlu0 %1472
        %v1474 = vsel %vm1416, %v1456, 0.0
        %1475 = vadd.xlane.f32.xlu0 %v1474
        %v1476 = vpop.xlane.xlu0 %1475
        %v1477 = vsel %vm1416, %v1458, 0.0
        %1478 = vadd.xlane.f32.xlu0 %v1477
        %v1479 = vpop.xlane.xlu0 %1478
        %v1480 = vsel %vm1416, %v1460, 0.0
        %1481 = vadd.xlane.f32.xlu0 %v1480
        %v1482 = vpop.xlane.xlu0 %1481
        %v1483 = vsel %vm1416, %v1462, 0.0
        %1484 = vadd.xlane.f32.xlu0 %v1483
        %v1485 = vpop.xlane.xlu0 %1484
        %v1486 = vsel %vm1416, %v1464, 0.0
        %1487 = vadd.xlane.f32.xlu0 %v1486
        %v1488 = vpop.xlane.xlu0 %1487
        %v1489 = vrcp.pop %v1467
        %v1490 = vrcp.pop %v1470
        %v1491 = vrcp.pop %v1473
        %v1492 = vrcp.pop %v1476
        %v1493 = vrcp.pop %v1479
        %v1494 = vrcp.pop %v1482
        %v1495 = vrcp.pop %v1485
        %v1496 = vrcp.pop %v1488
        %v1497 = vmul.f32 %v1450, %v1489
        %v1498 = vmul.f32 %v1452, %v1490
        %v1499 = vmul.f32 %v1454, %v1491
        %v1500 = vmul.f32 %v1456, %v1492
        %v1501 = vmul.f32 %v1458, %v1493
        %v1502 = vmul.f32 %v1460, %v1494
        %v1503 = vmul.f32 %v1462, %v1495
        %v1504 = vmul.f32 %v1464, %v1496
        %v1505 = vsel %vm1338, %v1290, 0.0
        %v1506 = vsel %vm1338, %v1293, 0.0
        %v1507 = vsel %vm1338, %v1298, 0.0
        %v1508 = vsel %vm1338, %v1301, 0.0
        %v1509 = vsel %vm1338, %v1306, 0.0
        %v1510 = vsel %vm1338, %v1309, 0.0
        %v1511 = vsel %vm1338, %v1314, 0.0
        %v1512 = vsel %vm1338, %v1317, 0.0
        %v1513 = vpack.c.bf16 %v1506, %v1505
        %v1514 = vpack.c.bf16 %v1508, %v1507
        %v1515 = vpack.c.bf16 %v1510, %v1509
        %v1516 = vpack.c.bf16 %v1512, %v1511
        %v1517 = vpack.c.bf16 %v1498, %v1497
        %v1518 = vpack.c.bf16 %v1500, %v1499
        %v1519 = vpack.c.bf16 %v1502, %v1501
        %v1520 = vpack.c.bf16 %v1504, %v1503
        %vm1521 = vcmp.ge.s32.totalorder %v1333, 32
        %vm1522 = vcmp.lt.s32.totalorder %v1333, 64
        %vm1523 = vmand %vm1521, %vm1522
        %v1524 = vsel %vm1523, 1, 0
        %vm1525 = vcmp.eq.s32.totalorder %v1524, 1
        %v1526 = vsel %vm1525, %v1320, 0.0
        %v1527 = vsel %vm1525, %v1321, 0.0
        %v1528 = vsel %vm1525, %v1322, 0.0
        %v1529 = vsel %vm1525, %v1323, 0.0
        %v1530 = vsel %vm1525, %v1324, 0.0
        %v1531 = vsel %vm1525, %v1325, 0.0
        %v1532 = vsel %vm1525, %v1326, 0.0
        %v1533 = vsel %vm1525, %v1327, 0.0
        %v1534 = vpack.c.bf16 %v1527, %v1526
        %v1535 = vpack.c.bf16 %v1529, %v1528
        %v1536 = vpack.c.bf16 %v1531, %v1530
        %v1537 = vpack.c.bf16 %v1533, %v1532
        %1538 = vmatprep.subr.bf16.mxu0 0
        %1539 = vmatpush1.bf16.xpose.msra.mxu0 %v1328
        %1540 = vmatprep.subr.bf16.mxu0 0
        %1541 = vmatpush1.bf16.xpose.msra.mxu0 %v1329
        %1542 = vmatprep.subr.bf16.mxu0 0
        %1543 = vmatpush1.bf16.xpose.msra.mxu0 %v1330
        %1544 = vmatprep.subr.bf16.mxu0 0
        %1545 = vmatpush1.bf16.xpose.msra.mxu0 %v1331
        %1546 = vmatprep.subr.bf16.mxu0 0
        %1547 = vmatpush1.bf16.xpose.msra.mxu0 0
        %1548 = vmatprep.subr.bf16.mxu0 0
        %1549 = vmatpush1.bf16.xpose.msra.mxu0 0
        %1550 = vmatprep.subr.bf16.mxu0 0
        %1551 = vmatpush1.bf16.xpose.msra.mxu0 0
        %1552 = vmatprep.subr.bf16.mxu0 0
        %1553 = vmatpush1.bf16.xpose.msra.mxu0 0
        %1554 = vmatprep.subr.bf16.mxu0 0
        %1555 = vmatpush1.bf16.xpose.msra.mxu0 0
        %1556 = vmatprep.subr.bf16.mxu0 0
        %1557 = vmatpush1.bf16.xpose.msra.mxu0 0
        %1558 = vmatprep.subr.bf16.mxu0 0
        %1559 = vmatpush1.bf16.xpose.msra.mxu0 0
        %1560 = vmatprep.subr.bf16.mxu0 0
        %1561 = vmatpush1.bf16.xpose.msra.mxu0 0
        %1562 = vmatprep.subr.bf16.mxu0 0
        %1563 = vmatpush1.bf16.xpose.msra.mxu0 0
        %1564 = vmatprep.subr.bf16.mxu0 0
        %1565 = vmatpush1.bf16.xpose.msra.mxu0 0
        %1566 = vmatprep.subr.bf16.mxu0 0
        %1567 = vmatpush1.bf16.xpose.msra.mxu0 0
        %1568 = vmatprep.subr.bf16.mxu0 0
        %1569 = vmatpush1.bf16.xpose.msra.mxu0 0
        %1570 = vmatprep.mubr.bf16.mxu0 0
        %1571 = vmatmul.mubr.bf16.gmra.mrb[0].mxu0 %v1534
        %v1572 = vpop.f32.mrb[0].mxu0
        %v1573 = vadd.f32 0.0, %v1572
        %v1574 = vpop.f32.mrb[0].mxu0
        %v1575 = vpop.f32.mrb[0].mxu0
        %v1576 = vadd.f32 0.0, %v1575
        %v1577 = vpop.f32.mrb[0].mxu0
        %1578 = vmatprep.mubr.bf16.mxu0 0
        %1579 = vmatmul.mubr.bf16.gmra.mrb[0].mxu0 %v1535
        %v1580 = vpop.f32.mrb[0].mxu0
        %v1581 = vadd.f32 0.0, %v1580
        %v1582 = vpop.f32.mrb[0].mxu0
        %v1583 = vpop.f32.mrb[0].mxu0
        %v1584 = vadd.f32 0.0, %v1583
        %v1585 = vpop.f32.mrb[0].mxu0
        %1586 = vmatprep.mubr.bf16.mxu0 0
        %1587 = vmatmul.mubr.bf16.gmra.mrb[0].mxu0 %v1536
        %v1588 = vpop.f32.mrb[0].mxu0
        %v1589 = vadd.f32 0.0, %v1588
        %v1590 = vpop.f32.mrb[0].mxu0
        %v1591 = vpop.f32.mrb[0].mxu0
        %v1592 = vadd.f32 0.0, %v1591
        %v1593 = vpop.f32.mrb[0].mxu0
        %1594 = vmatprep.mubr.bf16.mxu0 0
        %1595 = vmatmul.mubr.bf16.gmra.mrb[0].mxu0 %v1537
        %v1596 = vpop.f32.mrb[0].mxu0
        %v1597 = vadd.f32 0.0, %v1596
        %v1598 = vpop.f32.mrb[0].mxu0
        %v1599 = vpop.f32.mrb[0].mxu0
        %v1600 = vadd.f32 0.0, %v1599
        %v1601 = vpop.f32.mrb[0].mxu0
        %1602 = vdwg.mxu0
        %v1603 = vsel %vm1416, %v1573, -inf
        %1604 = vmax.xlane.f32.xlu0 %v1603
        %v1605 = vpop.xlane.xlu0 %1604
        %v1606 = vsel %vm1416, %v1576, -inf
        %1607 = vmax.xlane.f32.xlu0 %v1606
        %v1608 = vpop.xlane.xlu0 %1607
        %v1609 = vsel %vm1416, %v1581, -inf
        %1610 = vmax.xlane.f32.xlu0 %v1609
        %v1611 = vpop.xlane.xlu0 %1610
        %v1612 = vsel %vm1416, %v1584, -inf
        %1613 = vmax.xlane.f32.xlu0 %v1612
        %v1614 = vpop.xlane.xlu0 %1613
        %v1615 = vsel %vm1416, %v1589, -inf
        %1616 = vmax.xlane.f32.xlu0 %v1615
        %v1617 = vpop.xlane.xlu0 %1616
        %v1618 = vsel %vm1416, %v1592, -inf
        %1619 = vmax.xlane.f32.xlu0 %v1618
        %v1620 = vpop.xlane.xlu0 %1619
        %v1621 = vsel %vm1416, %v1597, -inf
        %1622 = vmax.xlane.f32.xlu0 %v1621
        %v1623 = vpop.xlane.xlu0 %1622
        %v1624 = vsel %vm1416, %v1600, -inf
        %1625 = vmax.xlane.f32.xlu0 %v1624
        %v1626 = vpop.xlane.xlu0 %1625
        %v1627 = vsub.f32 %v1573, %v1605
        %v1628 = vsub.f32 %v1576, %v1608
        %v1629 = vsub.f32 %v1581, %v1611
        %v1630 = vsub.f32 %v1584, %v1614
        %v1631 = vsub.f32 %v1589, %v1617
        %v1632 = vsub.f32 %v1592, %v1620
        %v1633 = vsub.f32 %v1597, %v1623
        %v1634 = vsub.f32 %v1600, %v1626
        %v1635 = vmul.f32 %v1627, 1.442695
        %v1636 = vpow.pop %v1635
        %v1637 = vmul.f32 %v1628, 1.442695
        %v1638 = vpow.pop %v1637
        %v1639 = vmul.f32 %v1629, 1.442695
        %v1640 = vpow.pop %v1639
        %v1641 = vmul.f32 %v1630, 1.442695
        %v1642 = vpow.pop %v1641
        %v1643 = vmul.f32 %v1631, 1.442695
        %v1644 = vpow.pop %v1643
        %v1645 = vmul.f32 %v1632, 1.442695
        %v1646 = vpow.pop %v1645
        %v1647 = vmul.f32 %v1633, 1.442695
        %v1648 = vpow.pop %v1647
        %v1649 = vmul.f32 %v1634, 1.442695
        %v1650 = vpow.pop %v1649
        %v1651 = vsel %vm1416, %v1636, 0.0
        %1652 = vadd.xlane.f32.xlu0 %v1651
        %v1653 = vpop.xlane.xlu0 %1652
        %v1654 = vsel %vm1416, %v1638, 0.0
        %1655 = vadd.xlane.f32.xlu0 %v1654
        %v1656 = vpop.xlane.xlu0 %1655
        %v1657 = vsel %vm1416, %v1640, 0.0
        %1658 = vadd.xlane.f32.xlu0 %v1657
        %v1659 = vpop.xlane.xlu0 %1658
        %v1660 = vsel %vm1416, %v1642, 0.0
        %1661 = vadd.xlane.f32.xlu0 %v1660
        %v1662 = vpop.xlane.xlu0 %1661
        %v1663 = vsel %vm1416, %v1644, 0.0
        %1664 = vadd.xlane.f32.xlu0 %v1663
        %v1665 = vpop.xlane.xlu0 %1664
        %v1666 = vsel %vm1416, %v1646, 0.0
        %1667 = vadd.xlane.f32.xlu0 %v1666
        %v1668 = vpop.xlane.xlu0 %1667
        %v1669 = vsel %vm1416, %v1648, 0.0
        %1670 = vadd.xlane.f32.xlu0 %v1669
        %v1671 = vpop.xlane.xlu0 %1670
        %v1672 = vsel %vm1416, %v1650, 0.0
        %1673 = vadd.xlane.f32.xlu0 %v1672
        %v1674 = vpop.xlane.xlu0 %1673
        %v1675 = vrcp.pop %v1653
        %v1676 = vrcp.pop %v1656
        %v1677 = vrcp.pop %v1659
        %v1678 = vrcp.pop %v1662
        %v1679 = vrcp.pop %v1665
        %v1680 = vrcp.pop %v1668
        %v1681 = vrcp.pop %v1671
        %v1682 = vrcp.pop %v1674
        %v1683 = vmul.f32 %v1636, %v1675
        %v1684 = vmul.f32 %v1638, %v1676
        %v1685 = vmul.f32 %v1640, %v1677
        %v1686 = vmul.f32 %v1642, %v1678
        %v1687 = vmul.f32 %v1644, %v1679
        %v1688 = vmul.f32 %v1646, %v1680
        %v1689 = vmul.f32 %v1648, %v1681
        %v1690 = vmul.f32 %v1650, %v1682
        %v1691 = vsel %vm1525, %v1290, 0.0
        %v1692 = vsel %vm1525, %v1293, 0.0
        %v1693 = vsel %vm1525, %v1298, 0.0
        %v1694 = vsel %vm1525, %v1301, 0.0
        %v1695 = vsel %vm1525, %v1306, 0.0
        %v1696 = vsel %vm1525, %v1309, 0.0
        %v1697 = vsel %vm1525, %v1314, 0.0
        %v1698 = vsel %vm1525, %v1317, 0.0
        %v1699 = vpack.c.bf16 %v1692, %v1691
        %v1700 = vpack.c.bf16 %v1694, %v1693
        %v1701 = vpack.c.bf16 %v1696, %v1695
        %v1702 = vpack.c.bf16 %v1698, %v1697
        %v1703 = vpack.c.bf16 %v1684, %v1683
        %v1704 = vpack.c.bf16 %v1686, %v1685
        %v1705 = vpack.c.bf16 %v1688, %v1687
        %v1706 = vpack.c.bf16 %v1690, %v1689
        %v1708 = vsel %vm1416, %v1703, 0
        %v1711 = vsel %vm1416, %v1704, 0
        %v1714 = vsel %vm1416, %v1705, 0
        %v1717 = vsel %vm1416, %v1706, 0
        %1719 = vmatprep.subr.bf16.mxu0 0
        %1720 = vmatpush1.bf16.msra.mxu0 %v1699
        %1721 = vmatprep.subr.bf16.mxu0 0
        %1722 = vmatpush1.bf16.msra.mxu0 %v1700
        %1723 = vmatprep.subr.bf16.mxu0 0
        %1724 = vmatpush1.bf16.msra.mxu0 %v1701
        %1725 = vmatprep.subr.bf16.mxu0 0
        %1726 = vmatpush1.bf16.msra.mxu0 %v1702
        %1727 = vmatprep.subr.bf16.mxu0 0
        %1728 = vmatpush1.bf16.msra.mxu0 0
        %1729 = vmatprep.subr.bf16.mxu0 0
        %1730 = vmatpush1.bf16.msra.mxu0 0
        %1731 = vmatprep.subr.bf16.mxu0 0
        %1732 = vmatpush1.bf16.msra.mxu0 0
        %1733 = vmatprep.subr.bf16.mxu0 0
        %1734 = vmatpush1.bf16.msra.mxu0 0
        %1735 = vmatprep.subr.bf16.mxu0 0
        %1736 = vmatpush1.bf16.msra.mxu0 0
        %1737 = vmatprep.subr.bf16.mxu0 0
        %1738 = vmatpush1.bf16.msra.mxu0 0
        %1739 = vmatprep.subr.bf16.mxu0 0
        %1740 = vmatpush1.bf16.msra.mxu0 0
        %1741 = vmatprep.subr.bf16.mxu0 0
        %1742 = vmatpush1.bf16.msra.mxu0 0
        %1743 = vmatprep.subr.bf16.mxu0 0
        %1744 = vmatpush1.bf16.msra.mxu0 0
        %1745 = vmatprep.subr.bf16.mxu0 0
        %1746 = vmatpush1.bf16.msra.mxu0 0
        %1747 = vmatprep.subr.bf16.mxu0 0
        %1748 = vmatpush1.bf16.msra.mxu0 0
        %1749 = vmatprep.subr.bf16.mxu0 0
        %1750 = vmatpush1.bf16.msra.mxu0 0
        %1751 = vmatprep.mubr.bf16.mxu0 0
        %1752 = vmatmul.mubr.bf16.gmra.mrb[0].mxu0 %v1708
        %v1753 = vpop.f32.mrb[0].mxu0
        %v1754 = vadd.f32 0.0, %v1753
        %v1755 = vpop.f32.mrb[0].mxu0
        %v1756 = vpop.f32.mrb[0].mxu0
        %v1757 = vadd.f32 0.0, %v1756
        %v1758 = vpop.f32.mrb[0].mxu0
        %1759 = vmatprep.mubr.bf16.mxu0 0
        %1760 = vmatmul.mubr.bf16.gmra.mrb[0].mxu0 %v1711
        %v1761 = vpop.f32.mrb[0].mxu0
        %v1762 = vadd.f32 0.0, %v1761
        %v1763 = vpop.f32.mrb[0].mxu0
        %v1764 = vpop.f32.mrb[0].mxu0
        %v1765 = vadd.f32 0.0, %v1764
        %v1766 = vpop.f32.mrb[0].mxu0
        %1767 = vmatprep.mubr.bf16.mxu0 0
        %1768 = vmatmul.mubr.bf16.gmra.mrb[0].mxu0 %v1714
        %v1769 = vpop.f32.mrb[0].mxu0
        %v1770 = vadd.f32 0.0, %v1769
        %v1771 = vpop.f32.mrb[0].mxu0
        %v1772 = vpop.f32.mrb[0].mxu0
        %v1773 = vadd.f32 0.0, %v1772
        %v1774 = vpop.f32.mrb[0].mxu0
        %1775 = vmatprep.mubr.bf16.mxu0 0
        %1776 = vmatmul.mubr.bf16.gmra.mrb[0].mxu0 %v1717
        %v1777 = vpop.f32.mrb[0].mxu0
        %v1778 = vadd.f32 0.0, %v1777
        %v1779 = vpop.f32.mrb[0].mxu0
        %v1780 = vpop.f32.mrb[0].mxu0
        %v1781 = vadd.f32 0.0, %v1780
        %v1782 = vpop.f32.mrb[0].mxu0
        %1783 = vdwg.mxu0
        %v1785 = vsel %vm1416, %v1517, 0
        %v1788 = vsel %vm1416, %v1518, 0
        %v1791 = vsel %vm1416, %v1519, 0
        %v1794 = vsel %vm1416, %v1520, 0
        %1796 = vmatprep.subr.bf16.mxu0 0
        %1797 = vmatpush1.bf16.msra.mxu0 %v1513
        %1798 = vmatprep.subr.bf16.mxu0 0
        %1799 = vmatpush1.bf16.msra.mxu0 %v1514
        %1800 = vmatprep.subr.bf16.mxu0 0
        %1801 = vmatpush1.bf16.msra.mxu0 %v1515
        %1802 = vmatprep.subr.bf16.mxu0 0
        %1803 = vmatpush1.bf16.msra.mxu0 %v1516
        %1804 = vmatprep.subr.bf16.mxu0 0
        %1805 = vmatpush1.bf16.msra.mxu0 0
        %1806 = vmatprep.subr.bf16.mxu0 0
        %1807 = vmatpush1.bf16.msra.mxu0 0
        %1808 = vmatprep.subr.bf16.mxu0 0
        %1809 = vmatpush1.bf16.msra.mxu0 0
        %1810 = vmatprep.subr.bf16.mxu0 0
        %1811 = vmatpush1.bf16.msra.mxu0 0
        %1812 = vmatprep.subr.bf16.mxu0 0
        %1813 = vmatpush1.bf16.msra.mxu0 0
        %1814 = vmatprep.subr.bf16.mxu0 0
        %1815 = vmatpush1.bf16.msra.mxu0 0
        %1816 = vmatprep.subr.bf16.mxu0 0
        %1817 = vmatpush1.bf16.msra.mxu0 0
        %1818 = vmatprep.subr.bf16.mxu0 0
        %1819 = vmatpush1.bf16.msra.mxu0 0
        %1820 = vmatprep.subr.bf16.mxu0 0
        %1821 = vmatpush1.bf16.msra.mxu0 0
        %1822 = vmatprep.subr.bf16.mxu0 0
        %1823 = vmatpush1.bf16.msra.mxu0 0
        %1824 = vmatprep.subr.bf16.mxu0 0
        %1825 = vmatpush1.bf16.msra.mxu0 0
        %1826 = vmatprep.subr.bf16.mxu0 0
        %1827 = vmatpush1.bf16.msra.mxu0 0
        %1828 = vmatprep.mubr.bf16.mxu0 0
        %1829 = vmatmul.mubr.bf16.gmra.mrb[0].mxu0 %v1785
        %v1830 = vpop.f32.mrb[0].mxu0
        %v1831 = vadd.f32 %v1754, %v1830
        %v1832 = vpop.f32.mrb[0].mxu0
        %v1833 = vpop.f32.mrb[0].mxu0
        %v1834 = vadd.f32 %v1757, %v1833
        %v1835 = vpop.f32.mrb[0].mxu0
        %1836 = vmatprep.mubr.bf16.mxu0 0
        %1837 = vmatmul.mubr.bf16.gmra.mrb[0].mxu0 %v1788
        %v1838 = vpop.f32.mrb[0].mxu0
        %v1839 = vadd.f32 %v1762, %v1838
        %v1840 = vpop.f32.mrb[0].mxu0
        %v1841 = vpop.f32.mrb[0].mxu0
        %v1842 = vadd.f32 %v1765, %v1841
        %v1843 = vpop.f32.mrb[0].mxu0
        %1844 = vmatprep.mubr.bf16.mxu0 0
        %1845 = vmatmul.mubr.bf16.gmra.mrb[0].mxu0 %v1791
        %v1846 = vpop.f32.mrb[0].mxu0
        %v1847 = vadd.f32 %v1770, %v1846
        %v1848 = vpop.f32.mrb[0].mxu0
        %v1849 = vpop.f32.mrb[0].mxu0
        %v1850 = vadd.f32 %v1773, %v1849
        %v1851 = vpop.f32.mrb[0].mxu0
        %1852 = vmatprep.mubr.bf16.mxu0 0
        %1853 = vmatmul.mubr.bf16.gmra.mrb[0].mxu0 %v1794
        %v1854 = vpop.f32.mrb[0].mxu0
        %v1855 = vadd.f32 %v1778, %v1854
        %v1856 = vpop.f32.mrb[0].mxu0
        %v1857 = vpop.f32.mrb[0].mxu0
        %v1858 = vadd.f32 %v1781, %v1857
        %v1859 = vpop.f32.mrb[0].mxu0
        %1860 = vdwg.mxu0
        %vm1861 = vcmp.ge.s32.totalorder %v1333, 64
        %vm1862 = vcmp.lt.s32.totalorder %v1333, 96
        %vm1863 = vmand %vm1861, %vm1862
        %v1864 = vsel %vm1863, 1, 0
        %vm1865 = vcmp.eq.s32.totalorder %v1864, 1
        %v1866 = vsel %vm1865, %v1320, 0.0
        %v1867 = vsel %vm1865, %v1321, 0.0
        %v1868 = vsel %vm1865, %v1322, 0.0
        %v1869 = vsel %vm1865, %v1323, 0.0
        %v1870 = vsel %vm1865, %v1324, 0.0
        %v1871 = vsel %vm1865, %v1325, 0.0
        %v1872 = vsel %vm1865, %v1326, 0.0
        %v1873 = vsel %vm1865, %v1327, 0.0
        %v1874 = vpack.c.bf16 %v1867, %v1866
        %v1875 = vpack.c.bf16 %v1869, %v1868
        %v1876 = vpack.c.bf16 %v1871, %v1870
        %v1877 = vpack.c.bf16 %v1873, %v1872
        %1878 = vmatprep.subr.bf16.mxu0 0
        %1879 = vmatpush1.bf16.xpose.msra.mxu0 %v1328
        %1880 = vmatprep.subr.bf16.mxu0 0
        %1881 = vmatpush1.bf16.xpose.msra.mxu0 %v1329
        %1882 = vmatprep.subr.bf16.mxu0 0
        %1883 = vmatpush1.bf16.xpose.msra.mxu0 %v1330
        %1884 = vmatprep.subr.bf16.mxu0 0
        %1885 = vmatpush1.bf16.xpose.msra.mxu0 %v1331
        %1886 = vmatprep.subr.bf16.mxu0 0
        %1887 = vmatpush1.bf16.xpose.msra.mxu0 0
        %1888 = vmatprep.subr.bf16.mxu0 0
        %1889 = vmatpush1.bf16.xpose.msra.mxu0 0
        %1890 = vmatprep.subr.bf16.mxu0 0
        %1891 = vmatpush1.bf16.xpose.msra.mxu0 0
        %1892 = vmatprep.subr.bf16.mxu0 0
        %1893 = vmatpush1.bf16.xpose.msra.mxu0 0
        %1894 = vmatprep.subr.bf16.mxu0 0
        %1895 = vmatpush1.bf16.xpose.msra.mxu0 0
        %1896 = vmatprep.subr.bf16.mxu0 0
        %1897 = vmatpush1.bf16.xpose.msra.mxu0 0
        %1898 = vmatprep.subr.bf16.mxu0 0
        %1899 = vmatpush1.bf16.xpose.msra.mxu0 0
        %1900 = vmatprep.subr.bf16.mxu0 0
        %1901 = vmatpush1.bf16.xpose.msra.mxu0 0
        %1902 = vmatprep.subr.bf16.mxu0 0
        %1903 = vmatpush1.bf16.xpose.msra.mxu0 0
        %1904 = vmatprep.subr.bf16.mxu0 0
        %1905 = vmatpush1.bf16.xpose.msra.mxu0 0
        %1906 = vmatprep.subr.bf16.mxu0 0
        %1907 = vmatpush1.bf16.xpose.msra.mxu0 0
        %1908 = vmatprep.subr.bf16.mxu0 0
        %1909 = vmatpush1.bf16.xpose.msra.mxu0 0
        %1910 = vmatprep.mubr.bf16.mxu0 0
        %1911 = vmatmul.mubr.bf16.gmra.mrb[0].mxu0 %v1874
        %v1912 = vpop.f32.mrb[0].mxu0
        %v1913 = vadd.f32 0.0, %v1912
        %v1914 = vpop.f32.mrb[0].mxu0
        %v1915 = vpop.f32.mrb[0].mxu0
        %v1916 = vadd.f32 0.0, %v1915
        %v1917 = vpop.f32.mrb[0].mxu0
        %1918 = vmatprep.mubr.bf16.mxu0 0
        %1919 = vmatmul.mubr.bf16.gmra.mrb[0].mxu0 %v1875
        %v1920 = vpop.f32.mrb[0].mxu0
        %v1921 = vadd.f32 0.0, %v1920
        %v1922 = vpop.f32.mrb[0].mxu0
        %v1923 = vpop.f32.mrb[0].mxu0
        %v1924 = vadd.f32 0.0, %v1923
        %v1925 = vpop.f32.mrb[0].mxu0
        %1926 = vmatprep.mubr.bf16.mxu0 0
        %1927 = vmatmul.mubr.bf16.gmra.mrb[0].mxu0 %v1876
        %v1928 = vpop.f32.mrb[0].mxu0
        %v1929 = vadd.f32 0.0, %v1928
        %v1930 = vpop.f32.mrb[0].mxu0
        %v1931 = vpop.f32.mrb[0].mxu0
        %v1932 = vadd.f32 0.0, %v1931
        %v1933 = vpop.f32.mrb[0].mxu0
        %1934 = vmatprep.mubr.bf16.mxu0 0
        %1935 = vmatmul.mubr.bf16.gmra.mrb[0].mxu0 %v1877
        %v1936 = vpop.f32.mrb[0].mxu0
        %v1937 = vadd.f32 0.0, %v1936
        %v1938 = vpop.f32.mrb[0].mxu0
        %v1939 = vpop.f32.mrb[0].mxu0
        %v1940 = vadd.f32 0.0, %v1939
        %v1941 = vpop.f32.mrb[0].mxu0
        %1942 = vdwg.mxu0
        %v1943 = vsel %vm1416, %v1913, -inf
        %1944 = vmax.xlane.f32.xlu0 %v1943
        %v1945 = vpop.xlane.xlu0 %1944
        %v1946 = vsel %vm1416, %v1916, -inf
        %1947 = vmax.xlane.f32.xlu0 %v1946
        %v1948 = vpop.xlane.xlu0 %1947
        %v1949 = vsel %vm1416, %v1921, -inf
        %1950 = vmax.xlane.f32.xlu0 %v1949
        %v1951 = vpop.xlane.xlu0 %1950
        %v1952 = vsel %vm1416, %v1924, -inf
        %1953 = vmax.xlane.f32.xlu0 %v1952
        %v1954 = vpop.xlane.xlu0 %1953
        %v1955 = vsel %vm1416, %v1929, -inf
        %1956 = vmax.xlane.f32.xlu0 %v1955
        %v1957 = vpop.xlane.xlu0 %1956
        %v1958 = vsel %vm1416, %v1932, -inf
        %1959 = vmax.xlane.f32.xlu0 %v1958
        %v1960 = vpop.xlane.xlu0 %1959
        %v1961 = vsel %vm1416, %v1937, -inf
        %1962 = vmax.xlane.f32.xlu0 %v1961
        %v1963 = vpop.xlane.xlu0 %1962
        %v1964 = vsel %vm1416, %v1940, -inf
        %1965 = vmax.xlane.f32.xlu0 %v1964
        %v1966 = vpop.xlane.xlu0 %1965
        %v1967 = vsub.f32 %v1913, %v1945
        %v1968 = vsub.f32 %v1916, %v1948
        %v1969 = vsub.f32 %v1921, %v1951
        %v1970 = vsub.f32 %v1924, %v1954
        %v1971 = vsub.f32 %v1929, %v1957
        %v1972 = vsub.f32 %v1932, %v1960
        %v1973 = vsub.f32 %v1937, %v1963
        %v1974 = vsub.f32 %v1940, %v1966
        %v1975 = vmul.f32 %v1967, 1.442695
        %v1976 = vpow.pop %v1975
        %v1977 = vmul.f32 %v1968, 1.442695
        %v1978 = vpow.pop %v1977
        %v1979 = vmul.f32 %v1969, 1.442695
        %v1980 = vpow.pop %v1979
        %v1981 = vmul.f32 %v1970, 1.442695
        %v1982 = vpow.pop %v1981
        %v1983 = vmul.f32 %v1971, 1.442695
        %v1984 = vpow.pop %v1983
        %v1985 = vmul.f32 %v1972, 1.442695
        %v1986 = vpow.pop %v1985
        %v1987 = vmul.f32 %v1973, 1.442695
        %v1988 = vpow.pop %v1987
        %v1989 = vmul.f32 %v1974, 1.442695
        %v1990 = vpow.pop %v1989
        %v1991 = vsel %vm1416, %v1976, 0.0
        %1992 = vadd.xlane.f32.xlu0 %v1991
        %v1993 = vpop.xlane.xlu0 %1992
        %v1994 = vsel %vm1416, %v1978, 0.0
        %1995 = vadd.xlane.f32.xlu0 %v1994
        %v1996 = vpop.xlane.xlu0 %1995
        %v1997 = vsel %vm1416, %v1980, 0.0
        %1998 = vadd.xlane.f32.xlu0 %v1997
        %v1999 = vpop.xlane.xlu0 %1998
        %v2000 = vsel %vm1416, %v1982, 0.0
        %2001 = vadd.xlane.f32.xlu0 %v2000
        %v2002 = vpop.xlane.xlu0 %2001
        %v2003 = vsel %vm1416, %v1984, 0.0
        %2004 = vadd.xlane.f32.xlu0 %v2003
        %v2005 = vpop.xlane.xlu0 %2004
        %v2006 = vsel %vm1416, %v1986, 0.0
        %2007 = vadd.xlane.f32.xlu0 %v2006
        %v2008 = vpop.xlane.xlu0 %2007
        %v2009 = vsel %vm1416, %v1988, 0.0
        %2010 = vadd.xlane.f32.xlu0 %v2009
        %v2011 = vpop.xlane.xlu0 %2010
        %v2012 = vsel %vm1416, %v1990, 0.0
        %2013 = vadd.xlane.f32.xlu0 %v2012
        %v2014 = vpop.xlane.xlu0 %2013
        %v2015 = vrcp.pop %v1993
        %v2016 = vrcp.pop %v1996
        %v2017 = vrcp.pop %v1999
        %v2018 = vrcp.pop %v2002
        %v2019 = vrcp.pop %v2005
        %v2020 = vrcp.pop %v2008
        %v2021 = vrcp.pop %v2011
        %v2022 = vrcp.pop %v2014
        %v2023 = vmul.f32 %v1976, %v2015
        %v2024 = vmul.f32 %v1978, %v2016
        %v2025 = vmul.f32 %v1980, %v2017
        %v2026 = vmul.f32 %v1982, %v2018
        %v2027 = vmul.f32 %v1984, %v2019
        %v2028 = vmul.f32 %v1986, %v2020
        %v2029 = vmul.f32 %v1988, %v2021
        %v2030 = vmul.f32 %v1990, %v2022
        %v2031 = vsel %vm1865, %v1290, 0.0
        %v2032 = vsel %vm1865, %v1293, 0.0
        %v2033 = vsel %vm1865, %v1298, 0.0
        %v2034 = vsel %vm1865, %v1301, 0.0
        %v2035 = vsel %vm1865, %v1306, 0.0
        %v2036 = vsel %vm1865, %v1309, 0.0
        %v2037 = vsel %vm1865, %v1314, 0.0
        %v2038 = vsel %vm1865, %v1317, 0.0
        %v2039 = vpack.c.bf16 %v2032, %v2031
        %v2040 = vpack.c.bf16 %v2034, %v2033
        %v2041 = vpack.c.bf16 %v2036, %v2035
        %v2042 = vpack.c.bf16 %v2038, %v2037
        %v2043 = vpack.c.bf16 %v2024, %v2023
        %v2044 = vpack.c.bf16 %v2026, %v2025
        %v2045 = vpack.c.bf16 %v2028, %v2027
        %v2046 = vpack.c.bf16 %v2030, %v2029
        %v2048 = vsel %vm1416, %v2043, 0
        %v2051 = vsel %vm1416, %v2044, 0
        %v2054 = vsel %vm1416, %v2045, 0
        %v2057 = vsel %vm1416, %v2046, 0
        %2059 = vmatprep.subr.bf16.mxu0 0
        %2060 = vmatpush1.bf16.msra.mxu0 %v2039
        %2061 = vmatprep.subr.bf16.mxu0 0
        %2062 = vmatpush1.bf16.msra.mxu0 %v2040
        %2063 = vmatprep.subr.bf16.mxu0 0
        %2064 = vmatpush1.bf16.msra.mxu0 %v2041
        %2065 = vmatprep.subr.bf16.mxu0 0
        %2066 = vmatpush1.bf16.msra.mxu0 %v2042
        %2067 = vmatprep.subr.bf16.mxu0 0
        %2068 = vmatpush1.bf16.msra.mxu0 0
        %2069 = vmatprep.subr.bf16.mxu0 0
        %2070 = vmatpush1.bf16.msra.mxu0 0
        %2071 = vmatprep.subr.bf16.mxu0 0
        %2072 = vmatpush1.bf16.msra.mxu0 0
        %2073 = vmatprep.subr.bf16.mxu0 0
        %2074 = vmatpush1.bf16.msra.mxu0 0
        %2075 = vmatprep.subr.bf16.mxu0 0
        %2076 = vmatpush1.bf16.msra.mxu0 0
        %2077 = vmatprep.subr.bf16.mxu0 0
        %2078 = vmatpush1.bf16.msra.mxu0 0
        %2079 = vmatprep.subr.bf16.mxu0 0
        %2080 = vmatpush1.bf16.msra.mxu0 0
        %2081 = vmatprep.subr.bf16.mxu0 0
        %2082 = vmatpush1.bf16.msra.mxu0 0
        %2083 = vmatprep.subr.bf16.mxu0 0
        %2084 = vmatpush1.bf16.msra.mxu0 0
        %2085 = vmatprep.subr.bf16.mxu0 0
        %2086 = vmatpush1.bf16.msra.mxu0 0
        %2087 = vmatprep.subr.bf16.mxu0 0
        %2088 = vmatpush1.bf16.msra.mxu0 0
        %2089 = vmatprep.subr.bf16.mxu0 0
        %2090 = vmatpush1.bf16.msra.mxu0 0
        %2091 = vmatprep.mubr.bf16.mxu0 0
        %2092 = vmatmul.mubr.bf16.gmra.mrb[0].mxu0 %v2048
        %v2093 = vpop.f32.mrb[0].mxu0
        %v2094 = vadd.f32 0.0, %v2093
        %v2095 = vpop.f32.mrb[0].mxu0
        %v2096 = vpop.f32.mrb[0].mxu0
        %v2097 = vadd.f32 0.0, %v2096
        %v2098 = vpop.f32.mrb[0].mxu0
        %2099 = vmatprep.mubr.bf16.mxu0 0
        %2100 = vmatmul.mubr.bf16.gmra.mrb[0].mxu0 %v2051
        %v2101 = vpop.f32.mrb[0].mxu0
        %v2102 = vadd.f32 0.0, %v2101
        %v2103 = vpop.f32.mrb[0].mxu0
        %v2104 = vpop.f32.mrb[0].mxu0
        %v2105 = vadd.f32 0.0, %v2104
        %v2106 = vpop.f32.mrb[0].mxu0
        %2107 = vmatprep.mubr.bf16.mxu0 0
        %2108 = vmatmul.mubr.bf16.gmra.mrb[0].mxu0 %v2054
        %v2109 = vpop.f32.mrb[0].mxu0
        %v2110 = vadd.f32 0.0, %v2109
        %v2111 = vpop.f32.mrb[0].mxu0
        %v2112 = vpop.f32.mrb[0].mxu0
        %v2113 = vadd.f32 0.0, %v2112
        %v2114 = vpop.f32.mrb[0].mxu0
        %2115 = vmatprep.mubr.bf16.mxu0 0
        %2116 = vmatmul.mubr.bf16.gmra.mrb[0].mxu0 %v2057
        %v2117 = vpop.f32.mrb[0].mxu0
        %v2118 = vadd.f32 0.0, %v2117
        %v2119 = vpop.f32.mrb[0].mxu0
        %v2120 = vpop.f32.mrb[0].mxu0
        %v2121 = vadd.f32 0.0, %v2120
        %v2122 = vpop.f32.mrb[0].mxu0
        %2123 = vdwg.mxu0
        %v2124 = vadd.f32 %v1831, %v2094
        %v2125 = vadd.f32 %v1834, %v2097
        %v2126 = vadd.f32 %v1839, %v2102
        %v2127 = vadd.f32 %v1842, %v2105
        %v2128 = vadd.f32 %v1847, %v2110
        %v2129 = vadd.f32 %v1850, %v2113
        %v2130 = vadd.f32 %v1855, %v2118
        %v2131 = vadd.f32 %v1858, %v2121
        %vm2132 = vcmp.ge.s32.totalorder %v1333, 96
        %vm2133 = vcmp.lt.s32.totalorder %v1333, 128
        %vm2134 = vmand %vm2132, %vm2133
        %v2135 = vsel %vm2134, 1, 0
        %vm2136 = vcmp.eq.s32.totalorder %v2135, 1
        %v2137 = vsel %vm2136, %v1320, 0.0
        %v2138 = vsel %vm2136, %v1321, 0.0
        %v2139 = vsel %vm2136, %v1322, 0.0
        %v2140 = vsel %vm2136, %v1323, 0.0
        %v2141 = vsel %vm2136, %v1324, 0.0
        %v2142 = vsel %vm2136, %v1325, 0.0
        %v2143 = vsel %vm2136, %v1326, 0.0
        %v2144 = vsel %vm2136, %v1327, 0.0
        %v2145 = vpack.c.bf16 %v2138, %v2137
        %v2146 = vpack.c.bf16 %v2140, %v2139
        %v2147 = vpack.c.bf16 %v2142, %v2141
        %v2148 = vpack.c.bf16 %v2144, %v2143
        %2149 = vmatprep.subr.bf16.mxu0 0
        %2150 = vmatpush1.bf16.xpose.msra.mxu0 %v1328
        %2151 = vmatprep.subr.bf16.mxu0 0
        %2152 = vmatpush1.bf16.xpose.msra.mxu0 %v1329
        %2153 = vmatprep.subr.bf16.mxu0 0
        %2154 = vmatpush1.bf16.xpose.msra.mxu0 %v1330
        %2155 = vmatprep.subr.bf16.mxu0 0
        %2156 = vmatpush1.bf16.xpose.msra.mxu0 %v1331
        %2157 = vmatprep.subr.bf16.mxu0 0
        %2158 = vmatpush1.bf16.xpose.msra.mxu0 0
        %2159 = vmatprep.subr.bf16.mxu0 0
        %2160 = vmatpush1.bf16.xpose.msra.mxu0 0
        %2161 = vmatprep.subr.bf16.mxu0 0
        %2162 = vmatpush1.bf16.xpose.msra.mxu0 0
        %2163 = vmatprep.subr.bf16.mxu0 0
        %2164 = vmatpush1.bf16.xpose.msra.mxu0 0
        %2165 = vmatprep.subr.bf16.mxu0 0
        %2166 = vmatpush1.bf16.xpose.msra.mxu0 0
        %2167 = vmatprep.subr.bf16.mxu0 0
        %2168 = vmatpush1.bf16.xpose.msra.mxu0 0
        %2169 = vmatprep.subr.bf16.mxu0 0
        %2170 = vmatpush1.bf16.xpose.msra.mxu0 0
        %2171 = vmatprep.subr.bf16.mxu0 0
        %2172 = vmatpush1.bf16.xpose.msra.mxu0 0
        %2173 = vmatprep.subr.bf16.mxu0 0
        %2174 = vmatpush1.bf16.xpose.msra.mxu0 0
        %2175 = vmatprep.subr.bf16.mxu0 0
        %2176 = vmatpush1.bf16.xpose.msra.mxu0 0
        %2177 = vmatprep.subr.bf16.mxu0 0
        %2178 = vmatpush1.bf16.xpose.msra.mxu0 0
        %2179 = vmatprep.subr.bf16.mxu0 0
        %2180 = vmatpush1.bf16.xpose.msra.mxu0 0
        %2181 = vmatprep.mubr.bf16.mxu0 0
        %2182 = vmatmul.mubr.bf16.gmra.mrb[0].mxu0 %v2145
        %v2183 = vpop.f32.mrb[0].mxu0
        %v2184 = vadd.f32 0.0, %v2183
        %v2185 = vpop.f32.mrb[0].mxu0
        %v2186 = vpop.f32.mrb[0].mxu0
        %v2187 = vadd.f32 0.0, %v2186
        %v2188 = vpop.f32.mrb[0].mxu0
        %2189 = vmatprep.mubr.bf16.mxu0 0
        %2190 = vmatmul.mubr.bf16.gmra.mrb[0].mxu0 %v2146
        %v2191 = vpop.f32.mrb[0].mxu0
        %v2192 = vadd.f32 0.0, %v2191
        %v2193 = vpop.f32.mrb[0].mxu0
        %v2194 = vpop.f32.mrb[0].mxu0
        %v2195 = vadd.f32 0.0, %v2194
        %v2196 = vpop.f32.mrb[0].mxu0
        %2197 = vmatprep.mubr.bf16.mxu0 0
        %2198 = vmatmul.mubr.bf16.gmra.mrb[0].mxu0 %v2147
        %v2199 = vpop.f32.mrb[0].mxu0
        %v2200 = vadd.f32 0.0, %v2199
        %v2201 = vpop.f32.mrb[0].mxu0
        %v2202 = vpop.f32.mrb[0].mxu0
        %v2203 = vadd.f32 0.0, %v2202
        %v2204 = vpop.f32.mrb[0].mxu0
        %2205 = vmatprep.mubr.bf16.mxu0 0
        %2206 = vmatmul.mubr.bf16.gmra.mrb[0].mxu0 %v2148
        %v2207 = vpop.f32.mrb[0].mxu0
        %v2208 = vadd.f32 0.0, %v2207
        %v2209 = vpop.f32.mrb[0].mxu0
        %v2210 = vpop.f32.mrb[0].mxu0
        %v2211 = vadd.f32 0.0, %v2210
        %v2212 = vpop.f32.mrb[0].mxu0
        %2213 = vdwg.mxu0
        %v2214 = vsel %vm1416, %v2184, -inf
        %2215 = vmax.xlane.f32.xlu0 %v2214
        %v2216 = vpop.xlane.xlu0 %2215
        %v2217 = vsel %vm1416, %v2187, -inf
        %2218 = vmax.xlane.f32.xlu0 %v2217
        %v2219 = vpop.xlane.xlu0 %2218
        %v2220 = vsel %vm1416, %v2192, -inf
        %2221 = vmax.xlane.f32.xlu0 %v2220
        %v2222 = vpop.xlane.xlu0 %2221
        %v2223 = vsel %vm1416, %v2195, -inf
        %2224 = vmax.xlane.f32.xlu0 %v2223
        %v2225 = vpop.xlane.xlu0 %2224
        %v2226 = vsel %vm1416, %v2200, -inf
        %2227 = vmax.xlane.f32.xlu0 %v2226
        %v2228 = vpop.xlane.xlu0 %2227
        %v2229 = vsel %vm1416, %v2203, -inf
        %2230 = vmax.xlane.f32.xlu0 %v2229
        %v2231 = vpop.xlane.xlu0 %2230
        %v2232 = vsel %vm1416, %v2208, -inf
        %2233 = vmax.xlane.f32.xlu0 %v2232
        %v2234 = vpop.xlane.xlu0 %2233
        %v2235 = vsel %vm1416, %v2211, -inf
        %2236 = vmax.xlane.f32.xlu0 %v2235
        %v2237 = vpop.xlane.xlu0 %2236
        %v2238 = vsub.f32 %v2184, %v2216
        %v2239 = vsub.f32 %v2187, %v2219
        %v2240 = vsub.f32 %v2192, %v2222
        %v2241 = vsub.f32 %v2195, %v2225
        %v2242 = vsub.f32 %v2200, %v2228
        %v2243 = vsub.f32 %v2203, %v2231
        %v2244 = vsub.f32 %v2208, %v2234
        %v2245 = vsub.f32 %v2211, %v2237
        %v2246 = vmul.f32 %v2238, 1.442695
        %v2247 = vpow.pop %v2246
        %v2248 = vmul.f32 %v2239, 1.442695
        %v2249 = vpow.pop %v2248
        %v2250 = vmul.f32 %v2240, 1.442695
        %v2251 = vpow.pop %v2250
        %v2252 = vmul.f32 %v2241, 1.442695
        %v2253 = vpow.pop %v2252
        %v2254 = vmul.f32 %v2242, 1.442695
        %v2255 = vpow.pop %v2254
        %v2256 = vmul.f32 %v2243, 1.442695
        %v2257 = vpow.pop %v2256
        %v2258 = vmul.f32 %v2244, 1.442695
        %v2259 = vpow.pop %v2258
        %v2260 = vmul.f32 %v2245, 1.442695
        %v2261 = vpow.pop %v2260
        %v2262 = vsel %vm1416, %v2247, 0.0
        %2263 = vadd.xlane.f32.xlu0 %v2262
        %v2264 = vpop.xlane.xlu0 %2263
        %v2265 = vsel %vm1416, %v2249, 0.0
        %2266 = vadd.xlane.f32.xlu0 %v2265
        %v2267 = vpop.xlane.xlu0 %2266
        %v2268 = vsel %vm1416, %v2251, 0.0
        %2269 = vadd.xlane.f32.xlu0 %v2268
        %v2270 = vpop.xlane.xlu0 %2269
        %v2271 = vsel %vm1416, %v2253, 0.0
        %2272 = vadd.xlane.f32.xlu0 %v2271
        %v2273 = vpop.xlane.xlu0 %2272
        %v2274 = vsel %vm1416, %v2255, 0.0
        %2275 = vadd.xlane.f32.xlu0 %v2274
        %v2276 = vpop.xlane.xlu0 %2275
        %v2277 = vsel %vm1416, %v2257, 0.0
        %2278 = vadd.xlane.f32.xlu0 %v2277
        %v2279 = vpop.xlane.xlu0 %2278
        %v2280 = vsel %vm1416, %v2259, 0.0
        %2281 = vadd.xlane.f32.xlu0 %v2280
        %v2282 = vpop.xlane.xlu0 %2281
        %v2283 = vsel %vm1416, %v2261, 0.0
        %2284 = vadd.xlane.f32.xlu0 %v2283
        %v2285 = vpop.xlane.xlu0 %2284
        %v2286 = vrcp.pop %v2264
        %v2287 = vrcp.pop %v2267
        %v2288 = vrcp.pop %v2270
        %v2289 = vrcp.pop %v2273
        %v2290 = vrcp.pop %v2276
        %v2291 = vrcp.pop %v2279
        %v2292 = vrcp.pop %v2282
        %v2293 = vrcp.pop %v2285
        %v2294 = vmul.f32 %v2247, %v2286
        %v2295 = vmul.f32 %v2249, %v2287
        %v2296 = vmul.f32 %v2251, %v2288
        %v2297 = vmul.f32 %v2253, %v2289
        %v2298 = vmul.f32 %v2255, %v2290
        %v2299 = vmul.f32 %v2257, %v2291
        %v2300 = vmul.f32 %v2259, %v2292
        %v2301 = vmul.f32 %v2261, %v2293
        %v2302 = vsel %vm2136, %v1290, 0.0
        %v2303 = vsel %vm2136, %v1293, 0.0
        %v2304 = vsel %vm2136, %v1298, 0.0
        %v2305 = vsel %vm2136, %v1301, 0.0
        %v2306 = vsel %vm2136, %v1306, 0.0
        %v2307 = vsel %vm2136, %v1309, 0.0
        %v2308 = vsel %vm2136, %v1314, 0.0
        %v2309 = vsel %vm2136, %v1317, 0.0
        %v2310 = vpack.c.bf16 %v2303, %v2302
        %v2311 = vpack.c.bf16 %v2305, %v2304
        %v2312 = vpack.c.bf16 %v2307, %v2306
        %v2313 = vpack.c.bf16 %v2309, %v2308
        %v2314 = vpack.c.bf16 %v2295, %v2294
        %v2315 = vpack.c.bf16 %v2297, %v2296
        %v2316 = vpack.c.bf16 %v2299, %v2298
        %v2317 = vpack.c.bf16 %v2301, %v2300
        %v2319 = vsel %vm1416, %v2314, 0
        %v2322 = vsel %vm1416, %v2315, 0
        %v2325 = vsel %vm1416, %v2316, 0
        %v2328 = vsel %vm1416, %v2317, 0
        %2330 = vmatprep.subr.bf16.mxu0 0
        %2331 = vmatpush1.bf16.msra.mxu0 %v2310
        %2332 = vmatprep.subr.bf16.mxu0 0
        %2333 = vmatpush1.bf16.msra.mxu0 %v2311
        %2334 = vmatprep.subr.bf16.mxu0 0
        %2335 = vmatpush1.bf16.msra.mxu0 %v2312
        %2336 = vmatprep.subr.bf16.mxu0 0
        %2337 = vmatpush1.bf16.msra.mxu0 %v2313
        %2338 = vmatprep.subr.bf16.mxu0 0
        %2339 = vmatpush1.bf16.msra.mxu0 0
        %2340 = vmatprep.subr.bf16.mxu0 0
        %2341 = vmatpush1.bf16.msra.mxu0 0
        %2342 = vmatprep.subr.bf16.mxu0 0
        %2343 = vmatpush1.bf16.msra.mxu0 0
        %2344 = vmatprep.subr.bf16.mxu0 0
        %2345 = vmatpush1.bf16.msra.mxu0 0
        %2346 = vmatprep.subr.bf16.mxu0 0
        %2347 = vmatpush1.bf16.msra.mxu0 0
        %2348 = vmatprep.subr.bf16.mxu0 0
        %2349 = vmatpush1.bf16.msra.mxu0 0
        %2350 = vmatprep.subr.bf16.mxu0 0
        %2351 = vmatpush1.bf16.msra.mxu0 0
        %2352 = vmatprep.subr.bf16.mxu0 0
        %2353 = vmatpush1.bf16.msra.mxu0 0
        %2354 = vmatprep.subr.bf16.mxu0 0
        %2355 = vmatpush1.bf16.msra.mxu0 0
        %2356 = vmatprep.subr.bf16.mxu0 0
        %2357 = vmatpush1.bf16.msra.mxu0 0
        %2358 = vmatprep.subr.bf16.mxu0 0
        %2359 = vmatpush1.bf16.msra.mxu0 0
        %2360 = vmatprep.subr.bf16.mxu0 0
        %2361 = vmatpush1.bf16.msra.mxu0 0
        %2362 = vmatprep.mubr.bf16.mxu0 0
        %2363 = vmatmul.mubr.bf16.gmra.mrb[0].mxu0 %v2319
        %v2364 = vpop.f32.mrb[0].mxu0
        %v2365 = vadd.f32 0.0, %v2364
        %v2366 = vpop.f32.mrb[0].mxu0
        %v2367 = vpop.f32.mrb[0].mxu0
        %v2368 = vadd.f32 0.0, %v2367
        %v2369 = vpop.f32.mrb[0].mxu0
        %2370 = vmatprep.mubr.bf16.mxu0 0
        %2371 = vmatmul.mubr.bf16.gmra.mrb[0].mxu0 %v2322
        %v2372 = vpop.f32.mrb[0].mxu0
        %v2373 = vadd.f32 0.0, %v2372
        %v2374 = vpop.f32.mrb[0].mxu0
        %v2375 = vpop.f32.mrb[0].mxu0
        %v2376 = vadd.f32 0.0, %v2375
        %v2377 = vpop.f32.mrb[0].mxu0
        %2378 = vmatprep.mubr.bf16.mxu0 0
        %2379 = vmatmul.mubr.bf16.gmra.mrb[0].mxu0 %v2325
        %v2380 = vpop.f32.mrb[0].mxu0
        %v2381 = vadd.f32 0.0, %v2380
        %v2382 = vpop.f32.mrb[0].mxu0
        %v2383 = vpop.f32.mrb[0].mxu0
        %v2384 = vadd.f32 0.0, %v2383
        %v2385 = vpop.f32.mrb[0].mxu0
        %2386 = vmatprep.mubr.bf16.mxu0 0
        %2387 = vmatmul.mubr.bf16.gmra.mrb[0].mxu0 %v2328
        %v2388 = vpop.f32.mrb[0].mxu0
        %v2389 = vadd.f32 0.0, %v2388
        %v2390 = vpop.f32.mrb[0].mxu0
        %v2391 = vpop.f32.mrb[0].mxu0
        %v2392 = vadd.f32 0.0, %v2391
        %v2393 = vpop.f32.mrb[0].mxu0
        %2394 = vdwg.mxu0
        %v2395 = vadd.f32 %v2124, %v2365
        %v2396 = vadd.f32 %v2125, %v2368
        %v2397 = vadd.f32 %v2126, %v2373
        %v2398 = vadd.f32 %v2127, %v2376
        %v2399 = vadd.f32 %v2128, %v2381
        %v2400 = vadd.f32 %v2129, %v2384
        %v2401 = vadd.f32 %v2130, %v2389
        %v2402 = vadd.f32 %v2131, %v2392
        %v2403 = vpack.c.bf16 %v2396, %v2395
        %v2404 = vpack.c.bf16 %v2398, %v2397
        %v2405 = vpack.c.bf16 %v2400, %v2399
        %v2406 = vpack.c.bf16 %v2402, %v2401
        %s2407 = scalar_lea.vmem %s738, 192
        %v2408 = vld [vmem:[%s2407] sm:$0xf]
        %v2409 = vld [vmem:[%s2407 + $0x4] sm:$0xf]
        %v2410 = vld [vmem:[%s2407 + $0x8] sm:$0xf]
        %v2411 = vld [vmem:[%s2407 + $0xc] sm:$0xf]
        %v2412 = vld [vmem:[%s2407 + $0x10] sm:$0xf]
        %v2413 = vld [vmem:[%s2407 + $0x14] sm:$0xf]
        %v2414 = vld [vmem:[%s2407 + $0x18] sm:$0xf]
        %v2415 = vld [vmem:[%s2407 + $0x1c] sm:$0xf]
        %v2416 = vld [vmem:[%s2407 + $0x20] sm:$0xf]
        %v2417 = vld [vmem:[%s2407 + $0x24] sm:$0xf]
        %v2418 = vld [vmem:[%s2407 + $0x28] sm:$0xf]
        %v2419 = vld [vmem:[%s2407 + $0x2c] sm:$0xf]
        %v2420 = vld [vmem:[%s2407 + $0x30] sm:$0xf]
        %v2421 = vld [vmem:[%s2407 + $0x34] sm:$0xf]
        %v2422 = vld [vmem:[%s2407 + $0x38] sm:$0xf]
        %v2423 = vld [vmem:[%s2407 + $0x3c] sm:$0xf]
        %v2424 = vlaneseq
        %v2425 = vshrl.u32 %v2424, 7
        %v2426 = vsub.s32 3, %v2425
        %v2427 = vrot.slane %v788, %v2426
        %v2444 = vunpack.c.l.b16 %v2408
        %v2445 = vunpack.c.l.b16 %v2409
        %v2446 = vunpack.c.l.b16 %v2410
        %v2447 = vunpack.c.l.b16 %v2411
        %v2448 = vunpack.c.l.b16 %v2412
        %v2449 = vunpack.c.l.b16 %v2413
        %v2450 = vunpack.c.l.b16 %v2414
        %v2451 = vunpack.c.l.b16 %v2415
        %v2452 = vunpack.c.l.b16 %v2416
        %v2453 = vunpack.c.l.b16 %v2417
        %v2454 = vunpack.c.l.b16 %v2418
        %v2455 = vunpack.c.l.b16 %v2419
        %v2456 = vunpack.c.l.b16 %v2420
        %v2457 = vunpack.c.l.b16 %v2421
        %v2458 = vunpack.c.l.b16 %v2422
        %v2459 = vunpack.c.l.b16 %v2423
        %v2460 = vpack.c.b16 %v2445, %v2444
        %v2461 = vpack.c.b16 %v2447, %v2446
        %v2462 = vpack.c.b16 %v2449, %v2448
        %v2463 = vpack.c.b16 %v2451, %v2450
        %v2464 = vpack.c.b16 %v2453, %v2452
        %v2465 = vpack.c.b16 %v2455, %v2454
        %v2466 = vpack.c.b16 %v2457, %v2456
        %v2467 = vpack.c.b16 %v2459, %v2458
        %2476 = vmatprep.subr.bf16.mxu0 0
        %2477 = vmatpush1.bf16.msra.mxu0 %v2460
        %2478 = vmatprep.subr.bf16.mxu0 0
        %2479 = vmatpush1.bf16.msra.mxu0 %v2461
        %2480 = vmatprep.subr.bf16.mxu0 0
        %2481 = vmatpush1.bf16.msra.mxu0 %v2462
        %2482 = vmatprep.subr.bf16.mxu0 0
        %2483 = vmatpush1.bf16.msra.mxu0 %v2463
        %2484 = vmatprep.subr.bf16.mxu0 0
        %2485 = vmatpush1.bf16.msra.mxu0 %v2464
        %2486 = vmatprep.subr.bf16.mxu0 0
        %2487 = vmatpush1.bf16.msra.mxu0 %v2465
        %2488 = vmatprep.subr.bf16.mxu0 0
        %2489 = vmatpush1.bf16.msra.mxu0 %v2466
        %2490 = vmatprep.subr.bf16.mxu0 0
        %2491 = vmatpush1.bf16.msra.mxu0 %v2467
        %2492 = vmatprep.subr.bf16.mxu0 0
        %2493 = vmatpush1.bf16.msra.mxu0 0
        %2494 = vmatprep.subr.bf16.mxu0 0
        %2495 = vmatpush1.bf16.msra.mxu0 0
        %2496 = vmatprep.subr.bf16.mxu0 0
        %2497 = vmatpush1.bf16.msra.mxu0 0
        %2498 = vmatprep.subr.bf16.mxu0 0
        %2499 = vmatpush1.bf16.msra.mxu0 0
        %2500 = vmatprep.subr.bf16.mxu0 0
        %2501 = vmatpush1.bf16.msra.mxu0 0
        %2502 = vmatprep.subr.bf16.mxu0 0
        %2503 = vmatpush1.bf16.msra.mxu0 0
        %2504 = vmatprep.subr.bf16.mxu0 0
        %2505 = vmatpush1.bf16.msra.mxu0 0
        %2506 = vmatprep.subr.bf16.mxu0 0
        %2507 = vmatpush1.bf16.msra.mxu0 0
        %2508 = vmatprep.mubr.bf16.mxu0 0
        %2509 = vmatmul.mubr.bf16.gmra.mrb[0].mxu0 %v2403
        %v2510 = vpop.f32.mrb[0].mxu0
        %v2511 = vadd.f32 %v2427, %v2510
        %v2512 = vpop.f32.mrb[0].mxu0
        %v2513 = vpop.f32.mrb[0].mxu0
        %v2514 = vadd.f32 %v2427, %v2513
        %v2515 = vpop.f32.mrb[0].mxu0
        %2516 = vmatprep.mubr.bf16.mxu0 0
        %2517 = vmatmul.mubr.bf16.gmra.mrb[0].mxu0 %v2404
        %v2518 = vpop.f32.mrb[0].mxu0
        %v2519 = vadd.f32 %v2427, %v2518
        %v2520 = vpop.f32.mrb[0].mxu0
        %v2521 = vpop.f32.mrb[0].mxu0
        %v2522 = vadd.f32 %v2427, %v2521
        %v2523 = vpop.f32.mrb[0].mxu0
        %2524 = vmatprep.mubr.bf16.mxu0 0
        %2525 = vmatmul.mubr.bf16.gmra.mrb[0].mxu0 %v2405
        %v2526 = vpop.f32.mrb[0].mxu0
        %v2527 = vadd.f32 %v2427, %v2526
        %v2528 = vpop.f32.mrb[0].mxu0
        %v2529 = vpop.f32.mrb[0].mxu0
        %v2530 = vadd.f32 %v2427, %v2529
        %v2531 = vpop.f32.mrb[0].mxu0
        %2532 = vmatprep.mubr.bf16.mxu0 0
        %2533 = vmatmul.mubr.bf16.gmra.mrb[0].mxu0 %v2406
        %v2534 = vpop.f32.mrb[0].mxu0
        %v2535 = vadd.f32 %v2427, %v2534
        %v2536 = vpop.f32.mrb[0].mxu0
        %v2537 = vpop.f32.mrb[0].mxu0
        %v2538 = vadd.f32 %v2427, %v2537
        %v2539 = vpop.f32.mrb[0].mxu0
        %2540 = vdwg.mxu0
        %2541 = vadd.xlane.f32.xlu0 %v2511
        %v2542 = vpop.xlane.xlu0 %2541
        %2543 = vadd.xlane.f32.xlu0 %v2514
        %v2544 = vpop.xlane.xlu0 %2543
        %2545 = vadd.xlane.f32.xlu0 %v2519
        %v2546 = vpop.xlane.xlu0 %2545
        %2547 = vadd.xlane.f32.xlu0 %v2522
        %v2548 = vpop.xlane.xlu0 %2547
        %2549 = vadd.xlane.f32.xlu0 %v2527
        %v2550 = vpop.xlane.xlu0 %2549
        %2551 = vadd.xlane.f32.xlu0 %v2530
        %v2552 = vpop.xlane.xlu0 %2551
        %2553 = vadd.xlane.f32.xlu0 %v2535
        %v2554 = vpop.xlane.xlu0 %2553
        %2555 = vadd.xlane.f32.xlu0 %v2538
        %v2556 = vpop.xlane.xlu0 %2555
        %v2557 = vmul.f32 %v2542, %v806
        %v2558 = vmul.f32 %v2544, %v806
        %v2559 = vmul.f32 %v2546, %v806
        %v2560 = vmul.f32 %v2548, %v806
        %v2561 = vmul.f32 %v2550, %v806
        %v2562 = vmul.f32 %v2552, %v806
        %v2563 = vmul.f32 %v2554, %v806
        %v2564 = vmul.f32 %v2556, %v806
        %v2565 = vsub.f32 %v2511, %v2557
        %v2566 = vsub.f32 %v2514, %v2558
        %v2567 = vsub.f32 %v2519, %v2559
        %v2568 = vsub.f32 %v2522, %v2560
        %v2569 = vsub.f32 %v2527, %v2561
        %v2570 = vsub.f32 %v2530, %v2562
        %v2571 = vsub.f32 %v2535, %v2563
        %v2572 = vsub.f32 %v2538, %v2564
        %v2573 = vmul.f32 %v2565, %v2565
        %v2574 = vmul.f32 %v2566, %v2566
        %v2575 = vmul.f32 %v2567, %v2567
        %v2576 = vmul.f32 %v2568, %v2568
        %v2577 = vmul.f32 %v2569, %v2569
        %v2578 = vmul.f32 %v2570, %v2570
        %v2579 = vmul.f32 %v2571, %v2571
        %v2580 = vmul.f32 %v2572, %v2572
        %2581 = vadd.xlane.f32.xlu0 %v2573
        %v2582 = vpop.xlane.xlu0 %2581
        %2583 = vadd.xlane.f32.xlu0 %v2574
        %v2584 = vpop.xlane.xlu0 %2583
        %2585 = vadd.xlane.f32.xlu0 %v2575
        %v2586 = vpop.xlane.xlu0 %2585
        %2587 = vadd.xlane.f32.xlu0 %v2576
        %v2588 = vpop.xlane.xlu0 %2587
        %2589 = vadd.xlane.f32.xlu0 %v2577
        %v2590 = vpop.xlane.xlu0 %2589
        %2591 = vadd.xlane.f32.xlu0 %v2578
        %v2592 = vpop.xlane.xlu0 %2591
        %2593 = vadd.xlane.f32.xlu0 %v2579
        %v2594 = vpop.xlane.xlu0 %2593
        %2595 = vadd.xlane.f32.xlu0 %v2580
        %v2596 = vpop.xlane.xlu0 %2595
        %v2597 = vmul.f32 %v2582, %v806
        %v2598 = vmul.f32 %v2584, %v806
        %v2599 = vmul.f32 %v2586, %v806
        %v2600 = vmul.f32 %v2588, %v806
        %v2601 = vmul.f32 %v2590, %v806
        %v2602 = vmul.f32 %v2592, %v806
        %v2603 = vmul.f32 %v2594, %v806
        %v2604 = vmul.f32 %v2596, %v806
        %v2605 = vadd.f32 %v2597, 1e-05
        %v2606 = vadd.f32 %v2598, 1e-05
        %v2607 = vadd.f32 %v2599, 1e-05
        %v2608 = vadd.f32 %v2600, 1e-05
        %v2609 = vadd.f32 %v2601, 1e-05
        %v2610 = vadd.f32 %v2602, 1e-05
        %v2611 = vadd.f32 %v2603, 1e-05
        %v2612 = vadd.f32 %v2604, 1e-05
        %v2613 = vrsqrt.pop %v2605
        %v2614 = vrsqrt.pop %v2606
        %v2615 = vrsqrt.pop %v2607
        %v2616 = vrsqrt.pop %v2608
        %v2617 = vrsqrt.pop %v2609
        %v2618 = vrsqrt.pop %v2610
        %v2619 = vrsqrt.pop %v2611
        %v2620 = vrsqrt.pop %v2612
        %v2621 = vmul.f32 %v2565, %v2613
        %v2622 = vmul.f32 %v2566, %v2614
        %v2623 = vmul.f32 %v2567, %v2615
        %v2624 = vmul.f32 %v2568, %v2616
        %v2625 = vmul.f32 %v2569, %v2617
        %v2626 = vmul.f32 %v2570, %v2618
        %v2627 = vmul.f32 %v2571, %v2619
        %v2628 = vmul.f32 %v2572, %v2620
        %v2629 = vlaneseq
        %v2630 = vshrl.u32 %v2629, 7
        %v2631 = vsub.s32 2, %v2630
        %v2632 = vrot.slane %v786, %v2631
        %v2633 = vmul.f32 %v2621, %v2632
        %v2634 = vmul.f32 %v2622, %v2632
        %v2635 = vmul.f32 %v2623, %v2632
        %v2636 = vmul.f32 %v2624, %v2632
        %v2637 = vmul.f32 %v2625, %v2632
        %v2638 = vmul.f32 %v2626, %v2632
        %v2639 = vmul.f32 %v2627, %v2632
        %v2640 = vmul.f32 %v2628, %v2632
        %v2641 = vlaneseq
        %v2642 = vshrl.u32 %v2641, 7
        %v2643 = vsub.s32 3, %v2642
        %v2644 = vrot.slane %v786, %v2643
        %v2645 = vadd.f32 %v2633, %v2644
        %v2646 = vadd.f32 %v2634, %v2644
        %v2647 = vadd.f32 %v2635, %v2644
        %v2648 = vadd.f32 %v2636, %v2644
        %v2649 = vadd.f32 %v2637, %v2644
        %v2650 = vadd.f32 %v2638, %v2644
        %v2651 = vadd.f32 %v2639, %v2644
        %v2652 = vadd.f32 %v2640, %v2644
        %v2653 = vadd.f32 %v765, %v2645
        %v2654 = vadd.f32 %v766, %v2646
        %v2655 = vadd.f32 %v767, %v2647
        %v2656 = vadd.f32 %v768, %v2648
        %v2657 = vadd.f32 %v769, %v2649
        %v2658 = vadd.f32 %v770, %v2650
        %v2659 = vadd.f32 %v771, %v2651
        %v2660 = vadd.f32 %v772, %v2652
        %2661 = vadd.xlane.f32.xlu0 %v2653
        %v2662 = vpop.xlane.xlu0 %2661
        %2663 = vadd.xlane.f32.xlu0 %v2654
        %v2664 = vpop.xlane.xlu0 %2663
        %2665 = vadd.xlane.f32.xlu0 %v2655
        %v2666 = vpop.xlane.xlu0 %2665
        %2667 = vadd.xlane.f32.xlu0 %v2656
        %v2668 = vpop.xlane.xlu0 %2667
        %2669 = vadd.xlane.f32.xlu0 %v2657
        %v2670 = vpop.xlane.xlu0 %2669
        %2671 = vadd.xlane.f32.xlu0 %v2658
        %v2672 = vpop.xlane.xlu0 %2671
        %2673 = vadd.xlane.f32.xlu0 %v2659
        %v2674 = vpop.xlane.xlu0 %2673
        %2675 = vadd.xlane.f32.xlu0 %v2660
        %v2676 = vpop.xlane.xlu0 %2675
        %v2677 = vmul.f32 %v2662, %v806
        %v2678 = vmul.f32 %v2664, %v806
        %v2679 = vmul.f32 %v2666, %v806
        %v2680 = vmul.f32 %v2668, %v806
        %v2681 = vmul.f32 %v2670, %v806
        %v2682 = vmul.f32 %v2672, %v806
        %v2683 = vmul.f32 %v2674, %v806
        %v2684 = vmul.f32 %v2676, %v806
        %v2685 = vsub.f32 %v2653, %v2677
        %v2686 = vsub.f32 %v2654, %v2678
        %v2687 = vsub.f32 %v2655, %v2679
        %v2688 = vsub.f32 %v2656, %v2680
        %v2689 = vsub.f32 %v2657, %v2681
        %v2690 = vsub.f32 %v2658, %v2682
        %v2691 = vsub.f32 %v2659, %v2683
        %v2692 = vsub.f32 %v2660, %v2684
        %v2693 = vmul.f32 %v2685, %v2685
        %v2694 = vmul.f32 %v2686, %v2686
        %v2695 = vmul.f32 %v2687, %v2687
        %v2696 = vmul.f32 %v2688, %v2688
        %v2697 = vmul.f32 %v2689, %v2689
        %v2698 = vmul.f32 %v2690, %v2690
        %v2699 = vmul.f32 %v2691, %v2691
        %v2700 = vmul.f32 %v2692, %v2692
        %2701 = vadd.xlane.f32.xlu0 %v2693
        %v2702 = vpop.xlane.xlu0 %2701
        %2703 = vadd.xlane.f32.xlu0 %v2694
        %v2704 = vpop.xlane.xlu0 %2703
        %2705 = vadd.xlane.f32.xlu0 %v2695
        %v2706 = vpop.xlane.xlu0 %2705
        %2707 = vadd.xlane.f32.xlu0 %v2696
        %v2708 = vpop.xlane.xlu0 %2707
        %2709 = vadd.xlane.f32.xlu0 %v2697
        %v2710 = vpop.xlane.xlu0 %2709
        %2711 = vadd.xlane.f32.xlu0 %v2698
        %v2712 = vpop.xlane.xlu0 %2711
        %2713 = vadd.xlane.f32.xlu0 %v2699
        %v2714 = vpop.xlane.xlu0 %2713
        %2715 = vadd.xlane.f32.xlu0 %v2700
        %v2716 = vpop.xlane.xlu0 %2715
        %v2717 = vmul.f32 %v2702, %v806
        %v2718 = vmul.f32 %v2704, %v806
        %v2719 = vmul.f32 %v2706, %v806
        %v2720 = vmul.f32 %v2708, %v806
        %v2721 = vmul.f32 %v2710, %v806
        %v2722 = vmul.f32 %v2712, %v806
        %v2723 = vmul.f32 %v2714, %v806
        %v2724 = vmul.f32 %v2716, %v806
        %v2725 = vadd.f32 %v2717, 1e-05
        %v2726 = vadd.f32 %v2718, 1e-05
        %v2727 = vadd.f32 %v2719, 1e-05
        %v2728 = vadd.f32 %v2720, 1e-05
        %v2729 = vadd.f32 %v2721, 1e-05
        %v2730 = vadd.f32 %v2722, 1e-05
        %v2731 = vadd.f32 %v2723, 1e-05
        %v2732 = vadd.f32 %v2724, 1e-05
        %v2733 = vrsqrt.pop %v2725
        %v2734 = vrsqrt.pop %v2726
        %v2735 = vrsqrt.pop %v2727
        %v2736 = vrsqrt.pop %v2728
        %v2737 = vrsqrt.pop %v2729
        %v2738 = vrsqrt.pop %v2730
        %v2739 = vrsqrt.pop %v2731
        %v2740 = vrsqrt.pop %v2732
        %v2741 = vmul.f32 %v2685, %v2733
        %v2742 = vmul.f32 %v2686, %v2734
        %v2743 = vmul.f32 %v2687, %v2735
        %v2744 = vmul.f32 %v2688, %v2736
        %v2745 = vmul.f32 %v2689, %v2737
        %v2746 = vmul.f32 %v2690, %v2738
        %v2747 = vmul.f32 %v2691, %v2739
        %v2748 = vmul.f32 %v2692, %v2740
        %v2749 = vlaneseq
        %v2750 = vshrl.u32 %v2749, 7
        %v2751 = vsub.s32 4, %v2750
        %v2752 = vrot.slane %v786, %v2751
        %v2753 = vmul.f32 %v2741, %v2752
        %v2754 = vmul.f32 %v2742, %v2752
        %v2755 = vmul.f32 %v2743, %v2752
        %v2756 = vmul.f32 %v2744, %v2752
        %v2757 = vmul.f32 %v2745, %v2752
        %v2758 = vmul.f32 %v2746, %v2752
        %v2759 = vmul.f32 %v2747, %v2752
        %v2760 = vmul.f32 %v2748, %v2752
        %v2761 = vlaneseq
        %v2762 = vshrl.u32 %v2761, 7
        %v2763 = vsub.s32 5, %v2762
        %v2764 = vrot.slane %v786, %v2763
        %v2765 = vadd.f32 %v2753, %v2764
        %v2766 = vadd.f32 %v2754, %v2764
        %v2767 = vadd.f32 %v2755, %v2764
        %v2768 = vadd.f32 %v2756, %v2764
        %v2769 = vadd.f32 %v2757, %v2764
        %v2770 = vadd.f32 %v2758, %v2764
        %v2771 = vadd.f32 %v2759, %v2764
        %v2772 = vadd.f32 %v2760, %v2764
        %v2773 = vadd.f32 %v2765, %v775
        %v2774 = vadd.f32 %v2766, %v776
        %v2775 = vadd.f32 %v2767, %v777
        %v2776 = vadd.f32 %v2768, %v778
        %v2777 = vadd.f32 %v2769, %v779
        %v2778 = vadd.f32 %v2770, %v780
        %v2779 = vadd.f32 %v2771, %v781
        %v2780 = vadd.f32 %v2772, %v782
        %v2781 = vpack.c.bf16 %v2774, %v2773
        %v2782 = vpack.c.bf16 %v2776, %v2775
        %v2783 = vpack.c.bf16 %v2778, %v2777
        %v2784 = vpack.c.bf16 %v2780, %v2779
        %v2785 = vadd.f32 %v773, %v783
        %v2786 = vadd.f32 %v774, %v784
        %v2787 = vpack.c.bf16 %v2786, %v2785
        %v2788 = vpack.c.bf16 %v774, %v773
        %s2789 = scalar_lea.vmem %s738, 256
        %v2790 = vld [vmem:[%s2789] sm:$0xf]
        %v2791 = vld [vmem:[%s2789 + $0x4] sm:$0xf]
        %v2792 = vld [vmem:[%s2789 + $0x8] sm:$0xf]
        %v2793 = vld [vmem:[%s2789 + $0xc] sm:$0xf]
        %v2794 = vld [vmem:[%s2789 + $0x10] sm:$0xf]
        %v2795 = vld [vmem:[%s2789 + $0x14] sm:$0xf]
        %v2796 = vld [vmem:[%s2789 + $0x18] sm:$0xf]
        %v2797 = vld [vmem:[%s2789 + $0x1c] sm:$0xf]
        %v2798 = vld [vmem:[%s2789 + $0x20] sm:$0xf]
        %v2799 = vld [vmem:[%s2789 + $0x24] sm:$0xf]
        %v2800 = vld [vmem:[%s2789 + $0x28] sm:$0xf]
        %v2801 = vld [vmem:[%s2789 + $0x2c] sm:$0xf]
        %v2802 = vld [vmem:[%s2789 + $0x30] sm:$0xf]
        %v2803 = vld [vmem:[%s2789 + $0x34] sm:$0xf]
        %v2804 = vld [vmem:[%s2789 + $0x38] sm:$0xf]
        %v2805 = vld [vmem:[%s2789 + $0x3c] sm:$0xf]
        %v2806 = vlaneseq
        %v2807 = vshrl.u32 %v2806, 7
        %v2808 = vsub.s32 4, %v2807
        %v2809 = vrot.slane %v788, %v2808
        %v2826 = vunpack.c.l.b16 %v2790
        %v2827 = vunpack.c.l.b16 %v2791
        %v2828 = vunpack.c.l.b16 %v2792
        %v2829 = vunpack.c.l.b16 %v2793
        %v2830 = vunpack.c.l.b16 %v2794
        %v2831 = vunpack.c.l.b16 %v2795
        %v2832 = vunpack.c.l.b16 %v2796
        %v2833 = vunpack.c.l.b16 %v2797
        %v2834 = vunpack.c.l.b16 %v2798
        %v2835 = vunpack.c.l.b16 %v2799
        %v2836 = vunpack.c.l.b16 %v2800
        %v2837 = vunpack.c.l.b16 %v2801
        %v2838 = vunpack.c.l.b16 %v2802
        %v2839 = vunpack.c.l.b16 %v2803
        %v2840 = vunpack.c.l.b16 %v2804
        %v2841 = vunpack.c.l.b16 %v2805
        %v2842 = vpack.c.b16 %v2827, %v2826
        %v2843 = vpack.c.b16 %v2829, %v2828
        %v2844 = vpack.c.b16 %v2831, %v2830
        %v2845 = vpack.c.b16 %v2833, %v2832
        %v2846 = vpack.c.b16 %v2835, %v2834
        %v2847 = vpack.c.b16 %v2837, %v2836
        %v2848 = vpack.c.b16 %v2839, %v2838
        %v2849 = vpack.c.b16 %v2841, %v2840
        %2858 = vmatprep.subr.bf16.mxu0 0
        %2859 = vmatpush1.bf16.msra.mxu0 %v2842
        %2860 = vmatprep.subr.bf16.mxu0 0
        %2861 = vmatpush1.bf16.msra.mxu0 %v2843
        %2862 = vmatprep.subr.bf16.mxu0 0
        %2863 = vmatpush1.bf16.msra.mxu0 %v2844
        %2864 = vmatprep.subr.bf16.mxu0 0
        %2865 = vmatpush1.bf16.msra.mxu0 %v2845
        %2866 = vmatprep.subr.bf16.mxu0 0
        %2867 = vmatpush1.bf16.msra.mxu0 %v2846
        %2868 = vmatprep.subr.bf16.mxu0 0
        %2869 = vmatpush1.bf16.msra.mxu0 %v2847
        %2870 = vmatprep.subr.bf16.mxu0 0
        %2871 = vmatpush1.bf16.msra.mxu0 %v2848
        %2872 = vmatprep.subr.bf16.mxu0 0
        %2873 = vmatpush1.bf16.msra.mxu0 %v2849
        %2874 = vmatprep.subr.bf16.mxu0 0
        %2875 = vmatpush1.bf16.msra.mxu0 0
        %2876 = vmatprep.subr.bf16.mxu0 0
        %2877 = vmatpush1.bf16.msra.mxu0 0
        %2878 = vmatprep.subr.bf16.mxu0 0
        %2879 = vmatpush1.bf16.msra.mxu0 0
        %2880 = vmatprep.subr.bf16.mxu0 0
        %2881 = vmatpush1.bf16.msra.mxu0 0
        %2882 = vmatprep.subr.bf16.mxu0 0
        %2883 = vmatpush1.bf16.msra.mxu0 0
        %2884 = vmatprep.subr.bf16.mxu0 0
        %2885 = vmatpush1.bf16.msra.mxu0 0
        %2886 = vmatprep.subr.bf16.mxu0 0
        %2887 = vmatpush1.bf16.msra.mxu0 0
        %2888 = vmatprep.subr.bf16.mxu0 0
        %2889 = vmatpush1.bf16.msra.mxu0 0
        %2890 = vmatprep.mubr.bf16.mxu0 0
        %2891 = vmatmul.mubr.bf16.gmra.mrb[0].mxu0 %v2781
        %v2892 = vpop.f32.mrb[0].mxu0
        %v2893 = vadd.f32 %v2809, %v2892
        %v2894 = vpop.f32.mrb[0].mxu0
        %v2895 = vpop.f32.mrb[0].mxu0
        %v2896 = vadd.f32 %v2809, %v2895
        %v2897 = vpop.f32.mrb[0].mxu0
        %2898 = vmatprep.mubr.bf16.mxu0 0
        %2899 = vmatmul.mubr.bf16.gmra.mrb[0].mxu0 %v2782
        %v2900 = vpop.f32.mrb[0].mxu0
        %v2901 = vadd.f32 %v2809, %v2900
        %v2902 = vpop.f32.mrb[0].mxu0
        %v2903 = vpop.f32.mrb[0].mxu0
        %v2904 = vadd.f32 %v2809, %v2903
        %v2905 = vpop.f32.mrb[0].mxu0
        %2906 = vmatprep.mubr.bf16.mxu0 0
        %2907 = vmatmul.mubr.bf16.gmra.mrb[0].mxu0 %v2783
        %v2908 = vpop.f32.mrb[0].mxu0
        %v2909 = vadd.f32 %v2809, %v2908
        %v2910 = vpop.f32.mrb[0].mxu0
        %v2911 = vpop.f32.mrb[0].mxu0
        %v2912 = vadd.f32 %v2809, %v2911
        %v2913 = vpop.f32.mrb[0].mxu0
        %2914 = vmatprep.mubr.bf16.mxu0 0
        %2915 = vmatmul.mubr.bf16.gmra.mrb[0].mxu0 %v2784
        %v2916 = vpop.f32.mrb[0].mxu0
        %v2917 = vadd.f32 %v2809, %v2916
        %v2918 = vpop.f32.mrb[0].mxu0
        %v2919 = vpop.f32.mrb[0].mxu0
        %v2920 = vadd.f32 %v2809, %v2919
        %v2921 = vpop.f32.mrb[0].mxu0
        %2922 = vdwg.mxu0
        %s2923 = scalar_lea.vmem %s738, 320
        %v2924 = vld [vmem:[%s2923] sm:$0xf]
        %v2925 = vld [vmem:[%s2923 + $0x4] sm:$0xf]
        %v2926 = vld [vmem:[%s2923 + $0x8] sm:$0xf]
        %v2927 = vld [vmem:[%s2923 + $0xc] sm:$0xf]
        %v2928 = vld [vmem:[%s2923 + $0x10] sm:$0xf]
        %v2929 = vld [vmem:[%s2923 + $0x14] sm:$0xf]
        %v2930 = vld [vmem:[%s2923 + $0x18] sm:$0xf]
        %v2931 = vld [vmem:[%s2923 + $0x1c] sm:$0xf]
        %v2932 = vld [vmem:[%s2923 + $0x20] sm:$0xf]
        %v2933 = vld [vmem:[%s2923 + $0x24] sm:$0xf]
        %v2934 = vld [vmem:[%s2923 + $0x28] sm:$0xf]
        %v2935 = vld [vmem:[%s2923 + $0x2c] sm:$0xf]
        %v2936 = vld [vmem:[%s2923 + $0x30] sm:$0xf]
        %v2937 = vld [vmem:[%s2923 + $0x34] sm:$0xf]
        %v2938 = vld [vmem:[%s2923 + $0x38] sm:$0xf]
        %v2939 = vld [vmem:[%s2923 + $0x3c] sm:$0xf]
        %v2940 = vlaneseq
        %v2941 = vshrl.u32 %v2940, 7
        %v2942 = vsub.s32 5, %v2941
        %v2943 = vrot.slane %v788, %v2942
        %v2960 = vunpack.c.l.b16 %v2924
        %v2961 = vunpack.c.l.b16 %v2925
        %v2962 = vunpack.c.l.b16 %v2926
        %v2963 = vunpack.c.l.b16 %v2927
        %v2964 = vunpack.c.l.b16 %v2928
        %v2965 = vunpack.c.l.b16 %v2929
        %v2966 = vunpack.c.l.b16 %v2930
        %v2967 = vunpack.c.l.b16 %v2931
        %v2968 = vunpack.c.l.b16 %v2932
        %v2969 = vunpack.c.l.b16 %v2933
        %v2970 = vunpack.c.l.b16 %v2934
        %v2971 = vunpack.c.l.b16 %v2935
        %v2972 = vunpack.c.l.b16 %v2936
        %v2973 = vunpack.c.l.b16 %v2937
        %v2974 = vunpack.c.l.b16 %v2938
        %v2975 = vunpack.c.l.b16 %v2939
        %v2976 = vpack.c.b16 %v2961, %v2960
        %v2977 = vpack.c.b16 %v2963, %v2962
        %v2978 = vpack.c.b16 %v2965, %v2964
        %v2979 = vpack.c.b16 %v2967, %v2966
        %v2980 = vpack.c.b16 %v2969, %v2968
        %v2981 = vpack.c.b16 %v2971, %v2970
        %v2982 = vpack.c.b16 %v2973, %v2972
        %v2983 = vpack.c.b16 %v2975, %v2974
        %2992 = vmatprep.subr.bf16.mxu0 0
        %2993 = vmatpush1.bf16.msra.mxu0 %v2976
        %2994 = vmatprep.subr.bf16.mxu0 0
        %2995 = vmatpush1.bf16.msra.mxu0 %v2977
        %2996 = vmatprep.subr.bf16.mxu0 0
        %2997 = vmatpush1.bf16.msra.mxu0 %v2978
        %2998 = vmatprep.subr.bf16.mxu0 0
        %2999 = vmatpush1.bf16.msra.mxu0 %v2979
        %3000 = vmatprep.subr.bf16.mxu0 0
        %3001 = vmatpush1.bf16.msra.mxu0 %v2980
        %3002 = vmatprep.subr.bf16.mxu0 0
        %3003 = vmatpush1.bf16.msra.mxu0 %v2981
        %3004 = vmatprep.subr.bf16.mxu0 0
        %3005 = vmatpush1.bf16.msra.mxu0 %v2982
        %3006 = vmatprep.subr.bf16.mxu0 0
        %3007 = vmatpush1.bf16.msra.mxu0 %v2983
        %3008 = vmatprep.subr.bf16.mxu0 0
        %3009 = vmatpush1.bf16.msra.mxu0 0
        %3010 = vmatprep.subr.bf16.mxu0 0
        %3011 = vmatpush1.bf16.msra.mxu0 0
        %3012 = vmatprep.subr.bf16.mxu0 0
        %3013 = vmatpush1.bf16.msra.mxu0 0
        %3014 = vmatprep.subr.bf16.mxu0 0
        %3015 = vmatpush1.bf16.msra.mxu0 0
        %3016 = vmatprep.subr.bf16.mxu0 0
        %3017 = vmatpush1.bf16.msra.mxu0 0
        %3018 = vmatprep.subr.bf16.mxu0 0
        %3019 = vmatpush1.bf16.msra.mxu0 0
        %3020 = vmatprep.subr.bf16.mxu0 0
        %3021 = vmatpush1.bf16.msra.mxu0 0
        %3022 = vmatprep.subr.bf16.mxu0 0
        %3023 = vmatpush1.bf16.msra.mxu0 0
        %3024 = vmatprep.mubr.bf16.mxu0 0
        %3025 = vmatmul.mubr.bf16.gmra.mrb[0].mxu0 %v2787
        %v3026 = vpop.f32.mrb[0].mxu0
        %v3027 = vadd.f32 %v2943, %v3026
        %v3028 = vpop.f32.mrb[0].mxu0
        %v3029 = vpop.f32.mrb[0].mxu0
        %v3030 = vadd.f32 %v2943, %v3029
        %v3031 = vpop.f32.mrb[0].mxu0
        %3032 = vdwg.mxu0
        %s3033 = scalar_lea.vmem %s738, 384
        %v3034 = vld [vmem:[%s3033] sm:$0xf]
        %v3035 = vld [vmem:[%s3033 + $0x4] sm:$0xf]
        %v3036 = vld [vmem:[%s3033 + $0x8] sm:$0xf]
        %v3037 = vld [vmem:[%s3033 + $0xc] sm:$0xf]
        %v3038 = vld [vmem:[%s3033 + $0x10] sm:$0xf]
        %v3039 = vld [vmem:[%s3033 + $0x14] sm:$0xf]
        %v3040 = vld [vmem:[%s3033 + $0x18] sm:$0xf]
        %v3041 = vld [vmem:[%s3033 + $0x1c] sm:$0xf]
        %v3042 = vld [vmem:[%s3033 + $0x20] sm:$0xf]
        %v3043 = vld [vmem:[%s3033 + $0x24] sm:$0xf]
        %v3044 = vld [vmem:[%s3033 + $0x28] sm:$0xf]
        %v3045 = vld [vmem:[%s3033 + $0x2c] sm:$0xf]
        %v3046 = vld [vmem:[%s3033 + $0x30] sm:$0xf]
        %v3047 = vld [vmem:[%s3033 + $0x34] sm:$0xf]
        %v3048 = vld [vmem:[%s3033 + $0x38] sm:$0xf]
        %v3049 = vld [vmem:[%s3033 + $0x3c] sm:$0xf]
        %v3050 = vlaneseq
        %v3051 = vshrl.u32 %v3050, 7
        %v3052 = vsub.s32 6, %v3051
        %v3053 = vrot.slane %v788, %v3052
        %v3070 = vunpack.c.l.b16 %v3034
        %v3071 = vunpack.c.l.b16 %v3035
        %v3072 = vunpack.c.l.b16 %v3036
        %v3073 = vunpack.c.l.b16 %v3037
        %v3074 = vunpack.c.l.b16 %v3038
        %v3075 = vunpack.c.l.b16 %v3039
        %v3076 = vunpack.c.l.b16 %v3040
        %v3077 = vunpack.c.l.b16 %v3041
        %v3078 = vunpack.c.l.b16 %v3042
        %v3079 = vunpack.c.l.b16 %v3043
        %v3080 = vunpack.c.l.b16 %v3044
        %v3081 = vunpack.c.l.b16 %v3045
        %v3082 = vunpack.c.l.b16 %v3046
        %v3083 = vunpack.c.l.b16 %v3047
        %v3084 = vunpack.c.l.b16 %v3048
        %v3085 = vunpack.c.l.b16 %v3049
        %v3086 = vpack.c.b16 %v3071, %v3070
        %v3087 = vpack.c.b16 %v3073, %v3072
        %v3088 = vpack.c.b16 %v3075, %v3074
        %v3089 = vpack.c.b16 %v3077, %v3076
        %v3090 = vpack.c.b16 %v3079, %v3078
        %v3091 = vpack.c.b16 %v3081, %v3080
        %v3092 = vpack.c.b16 %v3083, %v3082
        %v3093 = vpack.c.b16 %v3085, %v3084
        %3102 = vmatprep.subr.bf16.mxu0 0
        %3103 = vmatpush1.bf16.msra.mxu0 %v3086
        %3104 = vmatprep.subr.bf16.mxu0 0
        %3105 = vmatpush1.bf16.msra.mxu0 %v3087
        %3106 = vmatprep.subr.bf16.mxu0 0
        %3107 = vmatpush1.bf16.msra.mxu0 %v3088
        %3108 = vmatprep.subr.bf16.mxu0 0
        %3109 = vmatpush1.bf16.msra.mxu0 %v3089
        %3110 = vmatprep.subr.bf16.mxu0 0
        %3111 = vmatpush1.bf16.msra.mxu0 %v3090
        %3112 = vmatprep.subr.bf16.mxu0 0
        %3113 = vmatpush1.bf16.msra.mxu0 %v3091
        %3114 = vmatprep.subr.bf16.mxu0 0
        %3115 = vmatpush1.bf16.msra.mxu0 %v3092
        %3116 = vmatprep.subr.bf16.mxu0 0
        %3117 = vmatpush1.bf16.msra.mxu0 %v3093
        %3118 = vmatprep.subr.bf16.mxu0 0
        %3119 = vmatpush1.bf16.msra.mxu0 0
        %3120 = vmatprep.subr.bf16.mxu0 0
        %3121 = vmatpush1.bf16.msra.mxu0 0
        %3122 = vmatprep.subr.bf16.mxu0 0
        %3123 = vmatpush1.bf16.msra.mxu0 0
        %3124 = vmatprep.subr.bf16.mxu0 0
        %3125 = vmatpush1.bf16.msra.mxu0 0
        %3126 = vmatprep.subr.bf16.mxu0 0
        %3127 = vmatpush1.bf16.msra.mxu0 0
        %3128 = vmatprep.subr.bf16.mxu0 0
        %3129 = vmatpush1.bf16.msra.mxu0 0
        %3130 = vmatprep.subr.bf16.mxu0 0
        %3131 = vmatpush1.bf16.msra.mxu0 0
        %3132 = vmatprep.subr.bf16.mxu0 0
        %3133 = vmatpush1.bf16.msra.mxu0 0
        %3134 = vmatprep.mubr.bf16.mxu0 0
        %3135 = vmatmul.mubr.bf16.gmra.mrb[0].mxu0 %v2788
        %v3136 = vpop.f32.mrb[0].mxu0
        %v3137 = vadd.f32 %v3053, %v3136
        %v3138 = vpop.f32.mrb[0].mxu0
        %v3139 = vpop.f32.mrb[0].mxu0
        %v3140 = vadd.f32 %v3053, %v3139
        %v3141 = vpop.f32.mrb[0].mxu0
        %3142 = vdwg.mxu0
        %v3143 = vmul.f32 %v2893, 0.17677669
        %v3144 = vmul.f32 %v2896, 0.17677669
        %v3145 = vmul.f32 %v2901, 0.17677669
        %v3146 = vmul.f32 %v2904, 0.17677669
        %v3147 = vmul.f32 %v2909, 0.17677669
        %v3148 = vmul.f32 %v2912, 0.17677669
        %v3149 = vmul.f32 %v2917, 0.17677669
        %v3150 = vmul.f32 %v2920, 0.17677669
        %v3151 = vpack.c.bf16 %v3030, %v3027
        %v3153 = vlaneseq
        %v3154 = vshrl.u32 %v3153, 7
        %v3155 = vsub.s32 0, %v3154
        %v3156 = vrot.slane %v785, %v3155
        %v3158 = vsel %vm1338, %v3143, 0.0
        %v3159 = vsel %vm1338, %v3144, 0.0
        %v3160 = vsel %vm1338, %v3145, 0.0
        %v3161 = vsel %vm1338, %v3146, 0.0
        %v3162 = vsel %vm1338, %v3147, 0.0
        %v3163 = vsel %vm1338, %v3148, 0.0
        %v3164 = vsel %vm1338, %v3149, 0.0
        %v3165 = vsel %vm1338, %v3150, 0.0
        %v3166 = vpack.c.bf16 %v3159, %v3158
        %v3167 = vpack.c.bf16 %v3161, %v3160
        %v3168 = vpack.c.bf16 %v3163, %v3162
        %v3169 = vpack.c.bf16 %v3165, %v3164
        %3170 = vmatprep.subr.bf16.mxu0 0
        %3171 = vmatpush1.bf16.xpose.msra.mxu0 %v3151
        %3172 = vmatprep.subr.bf16.mxu0 0
        %3173 = vmatpush1.bf16.xpose.msra.mxu0 0
        %3174 = vmatprep.subr.bf16.mxu0 0
        %3175 = vmatpush1.bf16.xpose.msra.mxu0 0
        %3176 = vmatprep.subr.bf16.mxu0 0
        %3177 = vmatpush1.bf16.xpose.msra.mxu0 0
        %3178 = vmatprep.subr.bf16.mxu0 0
        %3179 = vmatpush1.bf16.xpose.msra.mxu0 0
        %3180 = vmatprep.subr.bf16.mxu0 0
        %3181 = vmatpush1.bf16.xpose.msra.mxu0 0
        %3182 = vmatprep.subr.bf16.mxu0 0
        %3183 = vmatpush1.bf16.xpose.msra.mxu0 0
        %3184 = vmatprep.subr.bf16.mxu0 0
        %3185 = vmatpush1.bf16.xpose.msra.mxu0 0
        %3186 = vmatprep.subr.bf16.mxu0 0
        %3187 = vmatpush1.bf16.xpose.msra.mxu0 0
        %3188 = vmatprep.subr.bf16.mxu0 0
        %3189 = vmatpush1.bf16.xpose.msra.mxu0 0
        %3190 = vmatprep.subr.bf16.mxu0 0
        %3191 = vmatpush1.bf16.xpose.msra.mxu0 0
        %3192 = vmatprep.subr.bf16.mxu0 0
        %3193 = vmatpush1.bf16.xpose.msra.mxu0 0
        %3194 = vmatprep.subr.bf16.mxu0 0
        %3195 = vmatpush1.bf16.xpose.msra.mxu0 0
        %3196 = vmatprep.subr.bf16.mxu0 0
        %3197 = vmatpush1.bf16.xpose.msra.mxu0 0
        %3198 = vmatprep.subr.bf16.mxu0 0
        %3199 = vmatpush1.bf16.xpose.msra.mxu0 0
        %3200 = vmatprep.subr.bf16.mxu0 0
        %3201 = vmatpush1.bf16.xpose.msra.mxu0 0
        %3202 = vmatprep.mubr.bf16.mxu0 0
        %3203 = vmatmul.mubr.bf16.gmra.mrb[0].mxu0 %v3166
        %v3204 = vpop.f32.mrb[0].mxu0
        %v3205 = vadd.f32 %v3156, %v3204
        %v3206 = vpop.f32.mrb[0].mxu0
        %v3207 = vpop.f32.mrb[0].mxu0
        %v3208 = vadd.f32 %v3156, %v3207
        %v3209 = vpop.f32.mrb[0].mxu0
        %3210 = vmatprep.mubr.bf16.mxu0 0
        %3211 = vmatmul.mubr.bf16.gmra.mrb[0].mxu0 %v3167
        %v3212 = vpop.f32.mrb[0].mxu0
        %v3213 = vadd.f32 %v3156, %v3212
        %v3214 = vpop.f32.mrb[0].mxu0
        %v3215 = vpop.f32.mrb[0].mxu0
        %v3216 = vadd.f32 %v3156, %v3215
        %v3217 = vpop.f32.mrb[0].mxu0
        %3218 = vmatprep.mubr.bf16.mxu0 0
        %3219 = vmatmul.mubr.bf16.gmra.mrb[0].mxu0 %v3168
        %v3220 = vpop.f32.mrb[0].mxu0
        %v3221 = vadd.f32 %v3156, %v3220
        %v3222 = vpop.f32.mrb[0].mxu0
        %v3223 = vpop.f32.mrb[0].mxu0
        %v3224 = vadd.f32 %v3156, %v3223
        %v3225 = vpop.f32.mrb[0].mxu0
        %3226 = vmatprep.mubr.bf16.mxu0 0
        %3227 = vmatmul.mubr.bf16.gmra.mrb[0].mxu0 %v3169
        %v3228 = vpop.f32.mrb[0].mxu0
        %v3229 = vadd.f32 %v3156, %v3228
        %v3230 = vpop.f32.mrb[0].mxu0
        %v3231 = vpop.f32.mrb[0].mxu0
        %v3232 = vadd.f32 %v3156, %v3231
        %v3233 = vpop.f32.mrb[0].mxu0
        %3234 = vdwg.mxu0
        %vm3235 = vcmask 130048
        %v3236 = vsel %vm3235, %v3205, -inf
        %3237 = vmax.xlane.f32.xlu0 %v3236
        %v3238 = vpop.xlane.xlu0 %3237
        %v3239 = vsel %vm3235, %v3208, -inf
        %3240 = vmax.xlane.f32.xlu0 %v3239
        %v3241 = vpop.xlane.xlu0 %3240
        %v3242 = vsel %vm3235, %v3213, -inf
        %3243 = vmax.xlane.f32.xlu0 %v3242
        %v3244 = vpop.xlane.xlu0 %3243
        %v3245 = vsel %vm3235, %v3216, -inf
        %3246 = vmax.xlane.f32.xlu0 %v3245
        %v3247 = vpop.xlane.xlu0 %3246
        %v3248 = vsel %vm3235, %v3221, -inf
        %3249 = vmax.xlane.f32.xlu0 %v3248
        %v3250 = vpop.xlane.xlu0 %3249
        %v3251 = vsel %vm3235, %v3224, -inf
        %3252 = vmax.xlane.f32.xlu0 %v3251
        %v3253 = vpop.xlane.xlu0 %3252
        %v3254 = vsel %vm3235, %v3229, -inf
        %3255 = vmax.xlane.f32.xlu0 %v3254
        %v3256 = vpop.xlane.xlu0 %3255
        %v3257 = vsel %vm3235, %v3232, -inf
        %3258 = vmax.xlane.f32.xlu0 %v3257
        %v3259 = vpop.xlane.xlu0 %3258
        %v3260 = vsub.f32 %v3205, %v3238
        %v3261 = vsub.f32 %v3208, %v3241
        %v3262 = vsub.f32 %v3213, %v3244
        %v3263 = vsub.f32 %v3216, %v3247
        %v3264 = vsub.f32 %v3221, %v3250
        %v3265 = vsub.f32 %v3224, %v3253
        %v3266 = vsub.f32 %v3229, %v3256
        %v3267 = vsub.f32 %v3232, %v3259
        %v3268 = vmul.f32 %v3260, 1.442695
        %v3269 = vpow.pop %v3268
        %v3270 = vmul.f32 %v3261, 1.442695
        %v3271 = vpow.pop %v3270
        %v3272 = vmul.f32 %v3262, 1.442695
        %v3273 = vpow.pop %v3272
        %v3274 = vmul.f32 %v3263, 1.442695
        %v3275 = vpow.pop %v3274
        %v3276 = vmul.f32 %v3264, 1.442695
        %v3277 = vpow.pop %v3276
        %v3278 = vmul.f32 %v3265, 1.442695
        %v3279 = vpow.pop %v3278
        %v3280 = vmul.f32 %v3266, 1.442695
        %v3281 = vpow.pop %v3280
        %v3282 = vmul.f32 %v3267, 1.442695
        %v3283 = vpow.pop %v3282
        %v3284 = vsel %vm3235, %v3269, 0.0
        %3285 = vadd.xlane.f32.xlu0 %v3284
        %v3286 = vpop.xlane.xlu0 %3285
        %v3287 = vsel %vm3235, %v3271, 0.0
        %3288 = vadd.xlane.f32.xlu0 %v3287
        %v3289 = vpop.xlane.xlu0 %3288
        %v3290 = vsel %vm3235, %v3273, 0.0
        %3291 = vadd.xlane.f32.xlu0 %v3290
        %v3292 = vpop.xlane.xlu0 %3291
        %v3293 = vsel %vm3235, %v3275, 0.0
        %3294 = vadd.xlane.f32.xlu0 %v3293
        %v3295 = vpop.xlane.xlu0 %3294
        %v3296 = vsel %vm3235, %v3277, 0.0
        %3297 = vadd.xlane.f32.xlu0 %v3296
        %v3298 = vpop.xlane.xlu0 %3297
        %v3299 = vsel %vm3235, %v3279, 0.0
        %3300 = vadd.xlane.f32.xlu0 %v3299
        %v3301 = vpop.xlane.xlu0 %3300
        %v3302 = vsel %vm3235, %v3281, 0.0
        %3303 = vadd.xlane.f32.xlu0 %v3302
        %v3304 = vpop.xlane.xlu0 %3303
        %v3305 = vsel %vm3235, %v3283, 0.0
        %3306 = vadd.xlane.f32.xlu0 %v3305
        %v3307 = vpop.xlane.xlu0 %3306
        %v3308 = vrcp.pop %v3286
        %v3309 = vrcp.pop %v3289
        %v3310 = vrcp.pop %v3292
        %v3311 = vrcp.pop %v3295
        %v3312 = vrcp.pop %v3298
        %v3313 = vrcp.pop %v3301
        %v3314 = vrcp.pop %v3304
        %v3315 = vrcp.pop %v3307
        %v3316 = vmul.f32 %v3269, %v3308
        %v3317 = vmul.f32 %v3271, %v3309
        %v3318 = vmul.f32 %v3273, %v3310
        %v3319 = vmul.f32 %v3275, %v3311
        %v3320 = vmul.f32 %v3277, %v3312
        %v3321 = vmul.f32 %v3279, %v3313
        %v3322 = vmul.f32 %v3281, %v3314
        %v3323 = vmul.f32 %v3283, %v3315
        %v3324 = vsel %vm1338, %v3137, 0.0
        %v3325 = vsel %vm1338, %v3140, 0.0
        %v3326 = vpack.c.bf16 %v3325, %v3324
        %v3327 = vpack.c.bf16 %v3317, %v3316
        %v3328 = vpack.c.bf16 %v3319, %v3318
        %v3329 = vpack.c.bf16 %v3321, %v3320
        %v3330 = vpack.c.bf16 %v3323, %v3322
        %v3331 = vsel %vm1525, %v3143, 0.0
        %v3332 = vsel %vm1525, %v3144, 0.0
        %v3333 = vsel %vm1525, %v3145, 0.0
        %v3334 = vsel %vm1525, %v3146, 0.0
        %v3335 = vsel %vm1525, %v3147, 0.0
        %v3336 = vsel %vm1525, %v3148, 0.0
        %v3337 = vsel %vm1525, %v3149, 0.0
        %v3338 = vsel %vm1525, %v3150, 0.0
        %v3339 = vpack.c.bf16 %v3332, %v3331
        %v3340 = vpack.c.bf16 %v3334, %v3333
        %v3341 = vpack.c.bf16 %v3336, %v3335
        %v3342 = vpack.c.bf16 %v3338, %v3337
        %3343 = vmatprep.subr.bf16.mxu0 0
        %3344 = vmatpush1.bf16.xpose.msra.mxu0 %v3151
        %3345 = vmatprep.subr.bf16.mxu0 0
        %3346 = vmatpush1.bf16.xpose.msra.mxu0 0
        %3347 = vmatprep.subr.bf16.mxu0 0
        %3348 = vmatpush1.bf16.xpose.msra.mxu0 0
        %3349 = vmatprep.subr.bf16.mxu0 0
        %3350 = vmatpush1.bf16.xpose.msra.mxu0 0
        %3351 = vmatprep.subr.bf16.mxu0 0
        %3352 = vmatpush1.bf16.xpose.msra.mxu0 0
        %3353 = vmatprep.subr.bf16.mxu0 0
        %3354 = vmatpush1.bf16.xpose.msra.mxu0 0
        %3355 = vmatprep.subr.bf16.mxu0 0
        %3356 = vmatpush1.bf16.xpose.msra.mxu0 0
        %3357 = vmatprep.subr.bf16.mxu0 0
        %3358 = vmatpush1.bf16.xpose.msra.mxu0 0
        %3359 = vmatprep.subr.bf16.mxu0 0
        %3360 = vmatpush1.bf16.xpose.msra.mxu0 0
        %3361 = vmatprep.subr.bf16.mxu0 0
        %3362 = vmatpush1.bf16.xpose.msra.mxu0 0
        %3363 = vmatprep.subr.bf16.mxu0 0
        %3364 = vmatpush1.bf16.xpose.msra.mxu0 0
        %3365 = vmatprep.subr.bf16.mxu0 0
        %3366 = vmatpush1.bf16.xpose.msra.mxu0 0
        %3367 = vmatprep.subr.bf16.mxu0 0
        %3368 = vmatpush1.bf16.xpose.msra.mxu0 0
        %3369 = vmatprep.subr.bf16.mxu0 0
        %3370 = vmatpush1.bf16.xpose.msra.mxu0 0
        %3371 = vmatprep.subr.bf16.mxu0 0
        %3372 = vmatpush1.bf16.xpose.msra.mxu0 0
        %3373 = vmatprep.subr.bf16.mxu0 0
        %3374 = vmatpush1.bf16.xpose.msra.mxu0 0
        %3375 = vmatprep.mubr.bf16.mxu0 0
        %3376 = vmatmul.mubr.bf16.gmra.mrb[0].mxu0 %v3339
        %v3377 = vpop.f32.mrb[0].mxu0
        %v3378 = vadd.f32 %v3156, %v3377
        %v3379 = vpop.f32.mrb[0].mxu0
        %v3380 = vpop.f32.mrb[0].mxu0
        %v3381 = vadd.f32 %v3156, %v3380
        %v3382 = vpop.f32.mrb[0].mxu0
        %3383 = vmatprep.mubr.bf16.mxu0 0
        %3384 = vmatmul.mubr.bf16.gmra.mrb[0].mxu0 %v3340
        %v3385 = vpop.f32.mrb[0].mxu0
        %v3386 = vadd.f32 %v3156, %v3385
        %v3387 = vpop.f32.mrb[0].mxu0
        %v3388 = vpop.f32.mrb[0].mxu0
        %v3389 = vadd.f32 %v3156, %v3388
        %v3390 = vpop.f32.mrb[0].mxu0
        %3391 = vmatprep.mubr.bf16.mxu0 0
        %3392 = vmatmul.mubr.bf16.gmra.mrb[0].mxu0 %v3341
        %v3393 = vpop.f32.mrb[0].mxu0
        %v3394 = vadd.f32 %v3156, %v3393
        %v3395 = vpop.f32.mrb[0].mxu0
        %v3396 = vpop.f32.mrb[0].mxu0
        %v3397 = vadd.f32 %v3156, %v3396
        %v3398 = vpop.f32.mrb[0].mxu0
        %3399 = vmatprep.mubr.bf16.mxu0 0
        %3400 = vmatmul.mubr.bf16.gmra.mrb[0].mxu0 %v3342
        %v3401 = vpop.f32.mrb[0].mxu0
        %v3402 = vadd.f32 %v3156, %v3401
        %v3403 = vpop.f32.mrb[0].mxu0
        %v3404 = vpop.f32.mrb[0].mxu0
        %v3405 = vadd.f32 %v3156, %v3404
        %v3406 = vpop.f32.mrb[0].mxu0
        %3407 = vdwg.mxu0
        %v3408 = vsel %vm3235, %v3378, -inf
        %3409 = vmax.xlane.f32.xlu0 %v3408
        %v3410 = vpop.xlane.xlu0 %3409
        %v3411 = vsel %vm3235, %v3381, -inf
        %3412 = vmax.xlane.f32.xlu0 %v3411
        %v3413 = vpop.xlane.xlu0 %3412
        %v3414 = vsel %vm3235, %v3386, -inf
        %3415 = vmax.xlane.f32.xlu0 %v3414
        %v3416 = vpop.xlane.xlu0 %3415
        %v3417 = vsel %vm3235, %v3389, -inf
        %3418 = vmax.xlane.f32.xlu0 %v3417
        %v3419 = vpop.xlane.xlu0 %3418
        %v3420 = vsel %vm3235, %v3394, -inf
        %3421 = vmax.xlane.f32.xlu0 %v3420
        %v3422 = vpop.xlane.xlu0 %3421
        %v3423 = vsel %vm3235, %v3397, -inf
        %3424 = vmax.xlane.f32.xlu0 %v3423
        %v3425 = vpop.xlane.xlu0 %3424
        %v3426 = vsel %vm3235, %v3402, -inf
        %3427 = vmax.xlane.f32.xlu0 %v3426
        %v3428 = vpop.xlane.xlu0 %3427
        %v3429 = vsel %vm3235, %v3405, -inf
        %3430 = vmax.xlane.f32.xlu0 %v3429
        %v3431 = vpop.xlane.xlu0 %3430
        %v3432 = vsub.f32 %v3378, %v3410
        %v3433 = vsub.f32 %v3381, %v3413
        %v3434 = vsub.f32 %v3386, %v3416
        %v3435 = vsub.f32 %v3389, %v3419
        %v3436 = vsub.f32 %v3394, %v3422
        %v3437 = vsub.f32 %v3397, %v3425
        %v3438 = vsub.f32 %v3402, %v3428
        %v3439 = vsub.f32 %v3405, %v3431
        %v3440 = vmul.f32 %v3432, 1.442695
        %v3441 = vpow.pop %v3440
        %v3442 = vmul.f32 %v3433, 1.442695
        %v3443 = vpow.pop %v3442
        %v3444 = vmul.f32 %v3434, 1.442695
        %v3445 = vpow.pop %v3444
        %v3446 = vmul.f32 %v3435, 1.442695
        %v3447 = vpow.pop %v3446
        %v3448 = vmul.f32 %v3436, 1.442695
        %v3449 = vpow.pop %v3448
        %v3450 = vmul.f32 %v3437, 1.442695
        %v3451 = vpow.pop %v3450
        %v3452 = vmul.f32 %v3438, 1.442695
        %v3453 = vpow.pop %v3452
        %v3454 = vmul.f32 %v3439, 1.442695
        %v3455 = vpow.pop %v3454
        %v3456 = vsel %vm3235, %v3441, 0.0
        %3457 = vadd.xlane.f32.xlu0 %v3456
        %v3458 = vpop.xlane.xlu0 %3457
        %v3459 = vsel %vm3235, %v3443, 0.0
        %3460 = vadd.xlane.f32.xlu0 %v3459
        %v3461 = vpop.xlane.xlu0 %3460
        %v3462 = vsel %vm3235, %v3445, 0.0
        %3463 = vadd.xlane.f32.xlu0 %v3462
        %v3464 = vpop.xlane.xlu0 %3463
        %v3465 = vsel %vm3235, %v3447, 0.0
        %3466 = vadd.xlane.f32.xlu0 %v3465
        %v3467 = vpop.xlane.xlu0 %3466
        %v3468 = vsel %vm3235, %v3449, 0.0
        %3469 = vadd.xlane.f32.xlu0 %v3468
        %v3470 = vpop.xlane.xlu0 %3469
        %v3471 = vsel %vm3235, %v3451, 0.0
        %3472 = vadd.xlane.f32.xlu0 %v3471
        %v3473 = vpop.xlane.xlu0 %3472
        %v3474 = vsel %vm3235, %v3453, 0.0
        %3475 = vadd.xlane.f32.xlu0 %v3474
        %v3476 = vpop.xlane.xlu0 %3475
        %v3477 = vsel %vm3235, %v3455, 0.0
        %3478 = vadd.xlane.f32.xlu0 %v3477
        %v3479 = vpop.xlane.xlu0 %3478
        %v3480 = vrcp.pop %v3458
        %v3481 = vrcp.pop %v3461
        %v3482 = vrcp.pop %v3464
        %v3483 = vrcp.pop %v3467
        %v3484 = vrcp.pop %v3470
        %v3485 = vrcp.pop %v3473
        %v3486 = vrcp.pop %v3476
        %v3487 = vrcp.pop %v3479
        %v3488 = vmul.f32 %v3441, %v3480
        %v3489 = vmul.f32 %v3443, %v3481
        %v3490 = vmul.f32 %v3445, %v3482
        %v3491 = vmul.f32 %v3447, %v3483
        %v3492 = vmul.f32 %v3449, %v3484
        %v3493 = vmul.f32 %v3451, %v3485
        %v3494 = vmul.f32 %v3453, %v3486
        %v3495 = vmul.f32 %v3455, %v3487
        %v3496 = vsel %vm1525, %v3137, 0.0
        %v3497 = vsel %vm1525, %v3140, 0.0
        %v3498 = vpack.c.bf16 %v3497, %v3496
        %v3499 = vpack.c.bf16 %v3489, %v3488
        %v3500 = vpack.c.bf16 %v3491, %v3490
        %v3501 = vpack.c.bf16 %v3493, %v3492
        %v3502 = vpack.c.bf16 %v3495, %v3494
        %v3504 = vsel %vm3235, %v3499, 0
        %v3507 = vsel %vm3235, %v3500, 0
        %v3510 = vsel %vm3235, %v3501, 0
        %v3513 = vsel %vm3235, %v3502, 0
        %3515 = vmatprep.subr.bf16.mxu0 0
        %3516 = vmatpush1.bf16.msra.mxu0 %v3498
        %3517 = vmatprep.subr.bf16.mxu0 0
        %3518 = vmatpush1.bf16.msra.mxu0 0
        %3519 = vmatprep.subr.bf16.mxu0 0
        %3520 = vmatpush1.bf16.msra.mxu0 0
        %3521 = vmatprep.subr.bf16.mxu0 0
        %3522 = vmatpush1.bf16.msra.mxu0 0
        %3523 = vmatprep.subr.bf16.mxu0 0
        %3524 = vmatpush1.bf16.msra.mxu0 0
        %3525 = vmatprep.subr.bf16.mxu0 0
        %3526 = vmatpush1.bf16.msra.mxu0 0
        %3527 = vmatprep.subr.bf16.mxu0 0
        %3528 = vmatpush1.bf16.msra.mxu0 0
        %3529 = vmatprep.subr.bf16.mxu0 0
        %3530 = vmatpush1.bf16.msra.mxu0 0
        %3531 = vmatprep.subr.bf16.mxu0 0
        %3532 = vmatpush1.bf16.msra.mxu0 0
        %3533 = vmatprep.subr.bf16.mxu0 0
        %3534 = vmatpush1.bf16.msra.mxu0 0
        %3535 = vmatprep.subr.bf16.mxu0 0
        %3536 = vmatpush1.bf16.msra.mxu0 0
        %3537 = vmatprep.subr.bf16.mxu0 0
        %3538 = vmatpush1.bf16.msra.mxu0 0
        %3539 = vmatprep.subr.bf16.mxu0 0
        %3540 = vmatpush1.bf16.msra.mxu0 0
        %3541 = vmatprep.subr.bf16.mxu0 0
        %3542 = vmatpush1.bf16.msra.mxu0 0
        %3543 = vmatprep.subr.bf16.mxu0 0
        %3544 = vmatpush1.bf16.msra.mxu0 0
        %3545 = vmatprep.subr.bf16.mxu0 0
        %3546 = vmatpush1.bf16.msra.mxu0 0
        %3547 = vmatprep.mubr.bf16.mxu0 0
        %3548 = vmatmul.mubr.bf16.gmra.mrb[0].mxu0 %v3504
        %v3549 = vpop.f32.mrb[0].mxu0
        %v3550 = vadd.f32 0.0, %v3549
        %v3551 = vpop.f32.mrb[0].mxu0
        %v3552 = vpop.f32.mrb[0].mxu0
        %v3553 = vadd.f32 0.0, %v3552
        %v3554 = vpop.f32.mrb[0].mxu0
        %3555 = vmatprep.mubr.bf16.mxu0 0
        %3556 = vmatmul.mubr.bf16.gmra.mrb[0].mxu0 %v3507
        %v3557 = vpop.f32.mrb[0].mxu0
        %v3558 = vadd.f32 0.0, %v3557
        %v3559 = vpop.f32.mrb[0].mxu0
        %v3560 = vpop.f32.mrb[0].mxu0
        %v3561 = vadd.f32 0.0, %v3560
        %v3562 = vpop.f32.mrb[0].mxu0
        %3563 = vmatprep.mubr.bf16.mxu0 0
        %3564 = vmatmul.mubr.bf16.gmra.mrb[0].mxu0 %v3510
        %v3565 = vpop.f32.mrb[0].mxu0
        %v3566 = vadd.f32 0.0, %v3565
        %v3567 = vpop.f32.mrb[0].mxu0
        %v3568 = vpop.f32.mrb[0].mxu0
        %v3569 = vadd.f32 0.0, %v3568
        %v3570 = vpop.f32.mrb[0].mxu0
        %3571 = vmatprep.mubr.bf16.mxu0 0
        %3572 = vmatmul.mubr.bf16.gmra.mrb[0].mxu0 %v3513
        %v3573 = vpop.f32.mrb[0].mxu0
        %v3574 = vadd.f32 0.0, %v3573
        %v3575 = vpop.f32.mrb[0].mxu0
        %v3576 = vpop.f32.mrb[0].mxu0
        %v3577 = vadd.f32 0.0, %v3576
        %v3578 = vpop.f32.mrb[0].mxu0
        %3579 = vdwg.mxu0
        %v3581 = vsel %vm3235, %v3327, 0
        %v3584 = vsel %vm3235, %v3328, 0
        %v3587 = vsel %vm3235, %v3329, 0
        %v3590 = vsel %vm3235, %v3330, 0
        %3592 = vmatprep.subr.bf16.mxu0 0
        %3593 = vmatpush1.bf16.msra.mxu0 %v3326
        %3594 = vmatprep.subr.bf16.mxu0 0
        %3595 = vmatpush1.bf16.msra.mxu0 0
        %3596 = vmatprep.subr.bf16.mxu0 0
        %3597 = vmatpush1.bf16.msra.mxu0 0
        %3598 = vmatprep.subr.bf16.mxu0 0
        %3599 = vmatpush1.bf16.msra.mxu0 0
        %3600 = vmatprep.subr.bf16.mxu0 0
        %3601 = vmatpush1.bf16.msra.mxu0 0
        %3602 = vmatprep.subr.bf16.mxu0 0
        %3603 = vmatpush1.bf16.msra.mxu0 0
        %3604 = vmatprep.subr.bf16.mxu0 0
        %3605 = vmatpush1.bf16.msra.mxu0 0
        %3606 = vmatprep.subr.bf16.mxu0 0
        %3607 = vmatpush1.bf16.msra.mxu0 0
        %3608 = vmatprep.subr.bf16.mxu0 0
        %3609 = vmatpush1.bf16.msra.mxu0 0
        %3610 = vmatprep.subr.bf16.mxu0 0
        %3611 = vmatpush1.bf16.msra.mxu0 0
        %3612 = vmatprep.subr.bf16.mxu0 0
        %3613 = vmatpush1.bf16.msra.mxu0 0
        %3614 = vmatprep.subr.bf16.mxu0 0
        %3615 = vmatpush1.bf16.msra.mxu0 0
        %3616 = vmatprep.subr.bf16.mxu0 0
        %3617 = vmatpush1.bf16.msra.mxu0 0
        %3618 = vmatprep.subr.bf16.mxu0 0
        %3619 = vmatpush1.bf16.msra.mxu0 0
        %3620 = vmatprep.subr.bf16.mxu0 0
        %3621 = vmatpush1.bf16.msra.mxu0 0
        %3622 = vmatprep.subr.bf16.mxu0 0
        %3623 = vmatpush1.bf16.msra.mxu0 0
        %3624 = vmatprep.mubr.bf16.mxu0 0
        %3625 = vmatmul.mubr.bf16.gmra.mrb[0].mxu0 %v3581
        %v3626 = vpop.f32.mrb[0].mxu0
        %v3627 = vadd.f32 %v3550, %v3626
        %v3628 = vpop.f32.mrb[0].mxu0
        %v3629 = vpop.f32.mrb[0].mxu0
        %v3630 = vadd.f32 %v3553, %v3629
        %v3631 = vpop.f32.mrb[0].mxu0
        %3632 = vmatprep.mubr.bf16.mxu0 0
        %3633 = vmatmul.mubr.bf16.gmra.mrb[0].mxu0 %v3584
        %v3634 = vpop.f32.mrb[0].mxu0
        %v3635 = vadd.f32 %v3558, %v3634
        %v3636 = vpop.f32.mrb[0].mxu0
        %v3637 = vpop.f32.mrb[0].mxu0
        %v3638 = vadd.f32 %v3561, %v3637
        %v3639 = vpop.f32.mrb[0].mxu0
        %3640 = vmatprep.mubr.bf16.mxu0 0
        %3641 = vmatmul.mubr.bf16.gmra.mrb[0].mxu0 %v3587
        %v3642 = vpop.f32.mrb[0].mxu0
        %v3643 = vadd.f32 %v3566, %v3642
        %v3644 = vpop.f32.mrb[0].mxu0
        %v3645 = vpop.f32.mrb[0].mxu0
        %v3646 = vadd.f32 %v3569, %v3645
        %v3647 = vpop.f32.mrb[0].mxu0
        %3648 = vmatprep.mubr.bf16.mxu0 0
        %3649 = vmatmul.mubr.bf16.gmra.mrb[0].mxu0 %v3590
        %v3650 = vpop.f32.mrb[0].mxu0
        %v3651 = vadd.f32 %v3574, %v3650
        %v3652 = vpop.f32.mrb[0].mxu0
        %v3653 = vpop.f32.mrb[0].mxu0
        %v3654 = vadd.f32 %v3577, %v3653
        %v3655 = vpop.f32.mrb[0].mxu0
        %3656 = vdwg.mxu0
        %v3657 = vsel %vm1865, %v3143, 0.0
        %v3658 = vsel %vm1865, %v3144, 0.0
        %v3659 = vsel %vm1865, %v3145, 0.0
        %v3660 = vsel %vm1865, %v3146, 0.0
        %v3661 = vsel %vm1865, %v3147, 0.0
        %v3662 = vsel %vm1865, %v3148, 0.0
        %v3663 = vsel %vm1865, %v3149, 0.0
        %v3664 = vsel %vm1865, %v3150, 0.0
        %v3665 = vpack.c.bf16 %v3658, %v3657
        %v3666 = vpack.c.bf16 %v3660, %v3659
        %v3667 = vpack.c.bf16 %v3662, %v3661
        %v3668 = vpack.c.bf16 %v3664, %v3663
        %3669 = vmatprep.subr.bf16.mxu0 0
        %3670 = vmatpush1.bf16.xpose.msra.mxu0 %v3151
        %3671 = vmatprep.subr.bf16.mxu0 0
        %3672 = vmatpush1.bf16.xpose.msra.mxu0 0
        %3673 = vmatprep.subr.bf16.mxu0 0
        %3674 = vmatpush1.bf16.xpose.msra.mxu0 0
        %3675 = vmatprep.subr.bf16.mxu0 0
        %3676 = vmatpush1.bf16.xpose.msra.mxu0 0
        %3677 = vmatprep.subr.bf16.mxu0 0
        %3678 = vmatpush1.bf16.xpose.msra.mxu0 0
        %3679 = vmatprep.subr.bf16.mxu0 0
        %3680 = vmatpush1.bf16.xpose.msra.mxu0 0
        %3681 = vmatprep.subr.bf16.mxu0 0
        %3682 = vmatpush1.bf16.xpose.msra.mxu0 0
        %3683 = vmatprep.subr.bf16.mxu0 0
        %3684 = vmatpush1.bf16.xpose.msra.mxu0 0
        %3685 = vmatprep.subr.bf16.mxu0 0
        %3686 = vmatpush1.bf16.xpose.msra.mxu0 0
        %3687 = vmatprep.subr.bf16.mxu0 0
        %3688 = vmatpush1.bf16.xpose.msra.mxu0 0
        %3689 = vmatprep.subr.bf16.mxu0 0
        %3690 = vmatpush1.bf16.xpose.msra.mxu0 0
        %3691 = vmatprep.subr.bf16.mxu0 0
        %3692 = vmatpush1.bf16.xpose.msra.mxu0 0
        %3693 = vmatprep.subr.bf16.mxu0 0
        %3694 = vmatpush1.bf16.xpose.msra.mxu0 0
        %3695 = vmatprep.subr.bf16.mxu0 0
        %3696 = vmatpush1.bf16.xpose.msra.mxu0 0
        %3697 = vmatprep.subr.bf16.mxu0 0
        %3698 = vmatpush1.bf16.xpose.msra.mxu0 0
        %3699 = vmatprep.subr.bf16.mxu0 0
        %3700 = vmatpush1.bf16.xpose.msra.mxu0 0
        %3701 = vmatprep.mubr.bf16.mxu0 0
        %3702 = vmatmul.mubr.bf16.gmra.mrb[0].mxu0 %v3665
        %v3703 = vpop.f32.mrb[0].mxu0
        %v3704 = vadd.f32 %v3156, %v3703
        %v3705 = vpop.f32.mrb[0].mxu0
        %v3706 = vpop.f32.mrb[0].mxu0
        %v3707 = vadd.f32 %v3156, %v3706
        %v3708 = vpop.f32.mrb[0].mxu0
        %3709 = vmatprep.mubr.bf16.mxu0 0
        %3710 = vmatmul.mubr.bf16.gmra.mrb[0].mxu0 %v3666
        %v3711 = vpop.f32.mrb[0].mxu0
        %v3712 = vadd.f32 %v3156, %v3711
        %v3713 = vpop.f32.mrb[0].mxu0
        %v3714 = vpop.f32.mrb[0].mxu0
        %v3715 = vadd.f32 %v3156, %v3714
        %v3716 = vpop.f32.mrb[0].mxu0
        %3717 = vmatprep.mubr.bf16.mxu0 0
        %3718 = vmatmul.mubr.bf16.gmra.mrb[0].mxu0 %v3667
        %v3719 = vpop.f32.mrb[0].mxu0
        %v3720 = vadd.f32 %v3156, %v3719
        %v3721 = vpop.f32.mrb[0].mxu0
        %v3722 = vpop.f32.mrb[0].mxu0
        %v3723 = vadd.f32 %v3156, %v3722
        %v3724 = vpop.f32.mrb[0].mxu0
        %3725 = vmatprep.mubr.bf16.mxu0 0
        %3726 = vmatmul.mubr.bf16.gmra.mrb[0].mxu0 %v3668
        %v3727 = vpop.f32.mrb[0].mxu0
        %v3728 = vadd.f32 %v3156, %v3727
        %v3729 = vpop.f32.mrb[0].mxu0
        %v3730 = vpop.f32.mrb[0].mxu0
        %v3731 = vadd.f32 %v3156, %v3730
        %v3732 = vpop.f32.mrb[0].mxu0
        %3733 = vdwg.mxu0
        %v3734 = vsel %vm3235, %v3704, -inf
        %3735 = vmax.xlane.f32.xlu0 %v3734
        %v3736 = vpop.xlane.xlu0 %3735
        %v3737 = vsel %vm3235, %v3707, -inf
        %3738 = vmax.xlane.f32.xlu0 %v3737
        %v3739 = vpop.xlane.xlu0 %3738
        %v3740 = vsel %vm3235, %v3712, -inf
        %3741 = vmax.xlane.f32.xlu0 %v3740
        %v3742 = vpop.xlane.xlu0 %3741
        %v3743 = vsel %vm3235, %v3715, -inf
        %3744 = vmax.xlane.f32.xlu0 %v3743
        %v3745 = vpop.xlane.xlu0 %3744
        %v3746 = vsel %vm3235, %v3720, -inf
        %3747 = vmax.xlane.f32.xlu0 %v3746
        %v3748 = vpop.xlane.xlu0 %3747
        %v3749 = vsel %vm3235, %v3723, -inf
        %3750 = vmax.xlane.f32.xlu0 %v3749
        %v3751 = vpop.xlane.xlu0 %3750
        %v3752 = vsel %vm3235, %v3728, -inf
        %3753 = vmax.xlane.f32.xlu0 %v3752
        %v3754 = vpop.xlane.xlu0 %3753
        %v3755 = vsel %vm3235, %v3731, -inf
        %3756 = vmax.xlane.f32.xlu0 %v3755
        %v3757 = vpop.xlane.xlu0 %3756
        %v3758 = vsub.f32 %v3704, %v3736
        %v3759 = vsub.f32 %v3707, %v3739
        %v3760 = vsub.f32 %v3712, %v3742
        %v3761 = vsub.f32 %v3715, %v3745
        %v3762 = vsub.f32 %v3720, %v3748
        %v3763 = vsub.f32 %v3723, %v3751
        %v3764 = vsub.f32 %v3728, %v3754
        %v3765 = vsub.f32 %v3731, %v3757
        %v3766 = vmul.f32 %v3758, 1.442695
        %v3767 = vpow.pop %v3766
        %v3768 = vmul.f32 %v3759, 1.442695
        %v3769 = vpow.pop %v3768
        %v3770 = vmul.f32 %v3760, 1.442695
        %v3771 = vpow.pop %v3770
        %v3772 = vmul.f32 %v3761, 1.442695
        %v3773 = vpow.pop %v3772
        %v3774 = vmul.f32 %v3762, 1.442695
        %v3775 = vpow.pop %v3774
        %v3776 = vmul.f32 %v3763, 1.442695
        %v3777 = vpow.pop %v3776
        %v3778 = vmul.f32 %v3764, 1.442695
        %v3779 = vpow.pop %v3778
        %v3780 = vmul.f32 %v3765, 1.442695
        %v3781 = vpow.pop %v3780
        %v3782 = vsel %vm3235, %v3767, 0.0
        %3783 = vadd.xlane.f32.xlu0 %v3782
        %v3784 = vpop.xlane.xlu0 %3783
        %v3785 = vsel %vm3235, %v3769, 0.0
        %3786 = vadd.xlane.f32.xlu0 %v3785
        %v3787 = vpop.xlane.xlu0 %3786
        %v3788 = vsel %vm3235, %v3771, 0.0
        %3789 = vadd.xlane.f32.xlu0 %v3788
        %v3790 = vpop.xlane.xlu0 %3789
        %v3791 = vsel %vm3235, %v3773, 0.0
        %3792 = vadd.xlane.f32.xlu0 %v3791
        %v3793 = vpop.xlane.xlu0 %3792
        %v3794 = vsel %vm3235, %v3775, 0.0
        %3795 = vadd.xlane.f32.xlu0 %v3794
        %v3796 = vpop.xlane.xlu0 %3795
        %v3797 = vsel %vm3235, %v3777, 0.0
        %3798 = vadd.xlane.f32.xlu0 %v3797
        %v3799 = vpop.xlane.xlu0 %3798
        %v3800 = vsel %vm3235, %v3779, 0.0
        %3801 = vadd.xlane.f32.xlu0 %v3800
        %v3802 = vpop.xlane.xlu0 %3801
        %v3803 = vsel %vm3235, %v3781, 0.0
        %3804 = vadd.xlane.f32.xlu0 %v3803
        %v3805 = vpop.xlane.xlu0 %3804
        %v3806 = vrcp.pop %v3784
        %v3807 = vrcp.pop %v3787
        %v3808 = vrcp.pop %v3790
        %v3809 = vrcp.pop %v3793
        %v3810 = vrcp.pop %v3796
        %v3811 = vrcp.pop %v3799
        %v3812 = vrcp.pop %v3802
        %v3813 = vrcp.pop %v3805
        %v3814 = vmul.f32 %v3767, %v3806
        %v3815 = vmul.f32 %v3769, %v3807
        %v3816 = vmul.f32 %v3771, %v3808
        %v3817 = vmul.f32 %v3773, %v3809
        %v3818 = vmul.f32 %v3775, %v3810
        %v3819 = vmul.f32 %v3777, %v3811
        %v3820 = vmul.f32 %v3779, %v3812
        %v3821 = vmul.f32 %v3781, %v3813
        %v3822 = vsel %vm1865, %v3137, 0.0
        %v3823 = vsel %vm1865, %v3140, 0.0
        %v3824 = vpack.c.bf16 %v3823, %v3822
        %v3825 = vpack.c.bf16 %v3815, %v3814
        %v3826 = vpack.c.bf16 %v3817, %v3816
        %v3827 = vpack.c.bf16 %v3819, %v3818
        %v3828 = vpack.c.bf16 %v3821, %v3820
        %v3830 = vsel %vm3235, %v3825, 0
        %v3833 = vsel %vm3235, %v3826, 0
        %v3836 = vsel %vm3235, %v3827, 0
        %v3839 = vsel %vm3235, %v3828, 0
        %3841 = vmatprep.subr.bf16.mxu0 0
        %3842 = vmatpush1.bf16.msra.mxu0 %v3824
        %3843 = vmatprep.subr.bf16.mxu0 0
        %3844 = vmatpush1.bf16.msra.mxu0 0
        %3845 = vmatprep.subr.bf16.mxu0 0
        %3846 = vmatpush1.bf16.msra.mxu0 0
        %3847 = vmatprep.subr.bf16.mxu0 0
        %3848 = vmatpush1.bf16.msra.mxu0 0
        %3849 = vmatprep.subr.bf16.mxu0 0
        %3850 = vmatpush1.bf16.msra.mxu0 0
        %3851 = vmatprep.subr.bf16.mxu0 0
        %3852 = vmatpush1.bf16.msra.mxu0 0
        %3853 = vmatprep.subr.bf16.mxu0 0
        %3854 = vmatpush1.bf16.msra.mxu0 0
        %3855 = vmatprep.subr.bf16.mxu0 0
        %3856 = vmatpush1.bf16.msra.mxu0 0
        %3857 = vmatprep.subr.bf16.mxu0 0
        %3858 = vmatpush1.bf16.msra.mxu0 0
        %3859 = vmatprep.subr.bf16.mxu0 0
        %3860 = vmatpush1.bf16.msra.mxu0 0
        %3861 = vmatprep.subr.bf16.mxu0 0
        %3862 = vmatpush1.bf16.msra.mxu0 0
        %3863 = vmatprep.subr.bf16.mxu0 0
        %3864 = vmatpush1.bf16.msra.mxu0 0
        %3865 = vmatprep.subr.bf16.mxu0 0
        %3866 = vmatpush1.bf16.msra.mxu0 0
        %3867 = vmatprep.subr.bf16.mxu0 0
        %3868 = vmatpush1.bf16.msra.mxu0 0
        %3869 = vmatprep.subr.bf16.mxu0 0
        %3870 = vmatpush1.bf16.msra.mxu0 0
        %3871 = vmatprep.subr.bf16.mxu0 0
        %3872 = vmatpush1.bf16.msra.mxu0 0
        %3873 = vmatprep.mubr.bf16.mxu0 0
        %3874 = vmatmul.mubr.bf16.gmra.mrb[0].mxu0 %v3830
        %v3875 = vpop.f32.mrb[0].mxu0
        %v3876 = vadd.f32 0.0, %v3875
        %v3877 = vpop.f32.mrb[0].mxu0
        %v3878 = vpop.f32.mrb[0].mxu0
        %v3879 = vadd.f32 0.0, %v3878
        %v3880 = vpop.f32.mrb[0].mxu0
        %3881 = vmatprep.mubr.bf16.mxu0 0
        %3882 = vmatmul.mubr.bf16.gmra.mrb[0].mxu0 %v3833
        %v3883 = vpop.f32.mrb[0].mxu0
        %v3884 = vadd.f32 0.0, %v3883
        %v3885 = vpop.f32.mrb[0].mxu0
        %v3886 = vpop.f32.mrb[0].mxu0
        %v3887 = vadd.f32 0.0, %v3886
        %v3888 = vpop.f32.mrb[0].mxu0
        %3889 = vmatprep.mubr.bf16.mxu0 0
        %3890 = vmatmul.mubr.bf16.gmra.mrb[0].mxu0 %v3836
        %v3891 = vpop.f32.mrb[0].mxu0
        %v3892 = vadd.f32 0.0, %v3891
        %v3893 = vpop.f32.mrb[0].mxu0
        %v3894 = vpop.f32.mrb[0].mxu0
        %v3895 = vadd.f32 0.0, %v3894
        %v3896 = vpop.f32.mrb[0].mxu0
        %3897 = vmatprep.mubr.bf16.mxu0 0
        %3898 = vmatmul.mubr.bf16.gmra.mrb[0].mxu0 %v3839
        %v3899 = vpop.f32.mrb[0].mxu0
        %v3900 = vadd.f32 0.0, %v3899
        %v3901 = vpop.f32.mrb[0].mxu0
        %v3902 = vpop.f32.mrb[0].mxu0
        %v3903 = vadd.f32 0.0, %v3902
        %v3904 = vpop.f32.mrb[0].mxu0
        %3905 = vdwg.mxu0
        %v3906 = vadd.f32 %v3627, %v3876
        %v3907 = vadd.f32 %v3630, %v3879
        %v3908 = vadd.f32 %v3635, %v3884
        %v3909 = vadd.f32 %v3638, %v3887
        %v3910 = vadd.f32 %v3643, %v3892
        %v3911 = vadd.f32 %v3646, %v3895
        %v3912 = vadd.f32 %v3651, %v3900
        %v3913 = vadd.f32 %v3654, %v3903
        %v3914 = vsel %vm2136, %v3143, 0.0
        %v3915 = vsel %vm2136, %v3144, 0.0
        %v3916 = vsel %vm2136, %v3145, 0.0
        %v3917 = vsel %vm2136, %v3146, 0.0
        %v3918 = vsel %vm2136, %v3147, 0.0
        %v3919 = vsel %vm2136, %v3148, 0.0
        %v3920 = vsel %vm2136, %v3149, 0.0
        %v3921 = vsel %vm2136, %v3150, 0.0
        %v3922 = vpack.c.bf16 %v3915, %v3914
        %v3923 = vpack.c.bf16 %v3917, %v3916
        %v3924 = vpack.c.bf16 %v3919, %v3918
        %v3925 = vpack.c.bf16 %v3921, %v3920
        %3926 = vmatprep.subr.bf16.mxu0 0
        %3927 = vmatpush1.bf16.xpose.msra.mxu0 %v3151
        %3928 = vmatprep.subr.bf16.mxu0 0
        %3929 = vmatpush1.bf16.xpose.msra.mxu0 0
        %3930 = vmatprep.subr.bf16.mxu0 0
        %3931 = vmatpush1.bf16.xpose.msra.mxu0 0
        %3932 = vmatprep.subr.bf16.mxu0 0
        %3933 = vmatpush1.bf16.xpose.msra.mxu0 0
        %3934 = vmatprep.subr.bf16.mxu0 0
        %3935 = vmatpush1.bf16.xpose.msra.mxu0 0
        %3936 = vmatprep.subr.bf16.mxu0 0
        %3937 = vmatpush1.bf16.xpose.msra.mxu0 0
        %3938 = vmatprep.subr.bf16.mxu0 0
        %3939 = vmatpush1.bf16.xpose.msra.mxu0 0
        %3940 = vmatprep.subr.bf16.mxu0 0
        %3941 = vmatpush1.bf16.xpose.msra.mxu0 0
        %3942 = vmatprep.subr.bf16.mxu0 0
        %3943 = vmatpush1.bf16.xpose.msra.mxu0 0
        %3944 = vmatprep.subr.bf16.mxu0 0
        %3945 = vmatpush1.bf16.xpose.msra.mxu0 0
        %3946 = vmatprep.subr.bf16.mxu0 0
        %3947 = vmatpush1.bf16.xpose.msra.mxu0 0
        %3948 = vmatprep.subr.bf16.mxu0 0
        %3949 = vmatpush1.bf16.xpose.msra.mxu0 0
        %3950 = vmatprep.subr.bf16.mxu0 0
        %3951 = vmatpush1.bf16.xpose.msra.mxu0 0
        %3952 = vmatprep.subr.bf16.mxu0 0
        %3953 = vmatpush1.bf16.xpose.msra.mxu0 0
        %3954 = vmatprep.subr.bf16.mxu0 0
        %3955 = vmatpush1.bf16.xpose.msra.mxu0 0
        %3956 = vmatprep.subr.bf16.mxu0 0
        %3957 = vmatpush1.bf16.xpose.msra.mxu0 0
        %3958 = vmatprep.mubr.bf16.mxu0 0
        %3959 = vmatmul.mubr.bf16.gmra.mrb[0].mxu0 %v3922
        %v3960 = vpop.f32.mrb[0].mxu0
        %v3961 = vadd.f32 %v3156, %v3960
        %v3962 = vpop.f32.mrb[0].mxu0
        %v3963 = vpop.f32.mrb[0].mxu0
        %v3964 = vadd.f32 %v3156, %v3963
        %v3965 = vpop.f32.mrb[0].mxu0
        %3966 = vmatprep.mubr.bf16.mxu0 0
        %3967 = vmatmul.mubr.bf16.gmra.mrb[0].mxu0 %v3923
        %v3968 = vpop.f32.mrb[0].mxu0
        %v3969 = vadd.f32 %v3156, %v3968
        %v3970 = vpop.f32.mrb[0].mxu0
        %v3971 = vpop.f32.mrb[0].mxu0
        %v3972 = vadd.f32 %v3156, %v3971
        %v3973 = vpop.f32.mrb[0].mxu0
        %3974 = vmatprep.mubr.bf16.mxu0 0
        %3975 = vmatmul.mubr.bf16.gmra.mrb[0].mxu0 %v3924
        %v3976 = vpop.f32.mrb[0].mxu0
        %v3977 = vadd.f32 %v3156, %v3976
        %v3978 = vpop.f32.mrb[0].mxu0
        %v3979 = vpop.f32.mrb[0].mxu0
        %v3980 = vadd.f32 %v3156, %v3979
        %v3981 = vpop.f32.mrb[0].mxu0
        %3982 = vmatprep.mubr.bf16.mxu0 0
        %3983 = vmatmul.mubr.bf16.gmra.mrb[0].mxu0 %v3925
        %v3984 = vpop.f32.mrb[0].mxu0
        %v3985 = vadd.f32 %v3156, %v3984
        %v3986 = vpop.f32.mrb[0].mxu0
        %v3987 = vpop.f32.mrb[0].mxu0
        %v3988 = vadd.f32 %v3156, %v3987
        %v3989 = vpop.f32.mrb[0].mxu0
        %3990 = vdwg.mxu0
        %v3991 = vsel %vm3235, %v3961, -inf
        %3992 = vmax.xlane.f32.xlu0 %v3991
        %v3993 = vpop.xlane.xlu0 %3992
        %v3994 = vsel %vm3235, %v3964, -inf
        %3995 = vmax.xlane.f32.xlu0 %v3994
        %v3996 = vpop.xlane.xlu0 %3995
        %v3997 = vsel %vm3235, %v3969, -inf
        %3998 = vmax.xlane.f32.xlu0 %v3997
        %v3999 = vpop.xlane.xlu0 %3998
        %v4000 = vsel %vm3235, %v3972, -inf
        %4001 = vmax.xlane.f32.xlu0 %v4000
        %v4002 = vpop.xlane.xlu0 %4001
        %v4003 = vsel %vm3235, %v3977, -inf
        %4004 = vmax.xlane.f32.xlu0 %v4003
        %v4005 = vpop.xlane.xlu0 %4004
        %v4006 = vsel %vm3235, %v3980, -inf
        %4007 = vmax.xlane.f32.xlu0 %v4006
        %v4008 = vpop.xlane.xlu0 %4007
        %v4009 = vsel %vm3235, %v3985, -inf
        %4010 = vmax.xlane.f32.xlu0 %v4009
        %v4011 = vpop.xlane.xlu0 %4010
        %v4012 = vsel %vm3235, %v3988, -inf
        %4013 = vmax.xlane.f32.xlu0 %v4012
        %v4014 = vpop.xlane.xlu0 %4013
        %v4015 = vsub.f32 %v3961, %v3993
        %v4016 = vsub.f32 %v3964, %v3996
        %v4017 = vsub.f32 %v3969, %v3999
        %v4018 = vsub.f32 %v3972, %v4002
        %v4019 = vsub.f32 %v3977, %v4005
        %v4020 = vsub.f32 %v3980, %v4008
        %v4021 = vsub.f32 %v3985, %v4011
        %v4022 = vsub.f32 %v3988, %v4014
        %v4023 = vmul.f32 %v4015, 1.442695
        %v4024 = vpow.pop %v4023
        %v4025 = vmul.f32 %v4016, 1.442695
        %v4026 = vpow.pop %v4025
        %v4027 = vmul.f32 %v4017, 1.442695
        %v4028 = vpow.pop %v4027
        %v4029 = vmul.f32 %v4018, 1.442695
        %v4030 = vpow.pop %v4029
        %v4031 = vmul.f32 %v4019, 1.442695
        %v4032 = vpow.pop %v4031
        %v4033 = vmul.f32 %v4020, 1.442695
        %v4034 = vpow.pop %v4033
        %v4035 = vmul.f32 %v4021, 1.442695
        %v4036 = vpow.pop %v4035
        %v4037 = vmul.f32 %v4022, 1.442695
        %v4038 = vpow.pop %v4037
        %v4039 = vsel %vm3235, %v4024, 0.0
        %4040 = vadd.xlane.f32.xlu0 %v4039
        %v4041 = vpop.xlane.xlu0 %4040
        %v4042 = vsel %vm3235, %v4026, 0.0
        %4043 = vadd.xlane.f32.xlu0 %v4042
        %v4044 = vpop.xlane.xlu0 %4043
        %v4045 = vsel %vm3235, %v4028, 0.0
        %4046 = vadd.xlane.f32.xlu0 %v4045
        %v4047 = vpop.xlane.xlu0 %4046
        %v4048 = vsel %vm3235, %v4030, 0.0
        %4049 = vadd.xlane.f32.xlu0 %v4048
        %v4050 = vpop.xlane.xlu0 %4049
        %v4051 = vsel %vm3235, %v4032, 0.0
        %4052 = vadd.xlane.f32.xlu0 %v4051
        %v4053 = vpop.xlane.xlu0 %4052
        %v4054 = vsel %vm3235, %v4034, 0.0
        %4055 = vadd.xlane.f32.xlu0 %v4054
        %v4056 = vpop.xlane.xlu0 %4055
        %v4057 = vsel %vm3235, %v4036, 0.0
        %4058 = vadd.xlane.f32.xlu0 %v4057
        %v4059 = vpop.xlane.xlu0 %4058
        %v4060 = vsel %vm3235, %v4038, 0.0
        %4061 = vadd.xlane.f32.xlu0 %v4060
        %v4062 = vpop.xlane.xlu0 %4061
        %v4063 = vrcp.pop %v4041
        %v4064 = vrcp.pop %v4044
        %v4065 = vrcp.pop %v4047
        %v4066 = vrcp.pop %v4050
        %v4067 = vrcp.pop %v4053
        %v4068 = vrcp.pop %v4056
        %v4069 = vrcp.pop %v4059
        %v4070 = vrcp.pop %v4062
        %v4071 = vmul.f32 %v4024, %v4063
        %v4072 = vmul.f32 %v4026, %v4064
        %v4073 = vmul.f32 %v4028, %v4065
        %v4074 = vmul.f32 %v4030, %v4066
        %v4075 = vmul.f32 %v4032, %v4067
        %v4076 = vmul.f32 %v4034, %v4068
        %v4077 = vmul.f32 %v4036, %v4069
        %v4078 = vmul.f32 %v4038, %v4070
        %v4079 = vsel %vm2136, %v3137, 0.0
        %v4080 = vsel %vm2136, %v3140, 0.0
        %v4081 = vpack.c.bf16 %v4080, %v4079
        %v4082 = vpack.c.bf16 %v4072, %v4071
        %v4083 = vpack.c.bf16 %v4074, %v4073
        %v4084 = vpack.c.bf16 %v4076, %v4075
        %v4085 = vpack.c.bf16 %v4078, %v4077
        %v4087 = vsel %vm3235, %v4082, 0
        %v4090 = vsel %vm3235, %v4083, 0
        %v4093 = vsel %vm3235, %v4084, 0
        %v4096 = vsel %vm3235, %v4085, 0
        %4098 = vmatprep.subr.bf16.mxu0 0
        %4099 = vmatpush1.bf16.msra.mxu0 %v4081
        %4100 = vmatprep.subr.bf16.mxu0 0
        %4101 = vmatpush1.bf16.msra.mxu0 0
        %4102 = vmatprep.subr.bf16.mxu0 0
        %4103 = vmatpush1.bf16.msra.mxu0 0
        %4104 = vmatprep.subr.bf16.mxu0 0
        %4105 = vmatpush1.bf16.msra.mxu0 0
        %4106 = vmatprep.subr.bf16.mxu0 0
        %4107 = vmatpush1.bf16.msra.mxu0 0
        %4108 = vmatprep.subr.bf16.mxu0 0
        %4109 = vmatpush1.bf16.msra.mxu0 0
        %4110 = vmatprep.subr.bf16.mxu0 0
        %4111 = vmatpush1.bf16.msra.mxu0 0
        %4112 = vmatprep.subr.bf16.mxu0 0
        %4113 = vmatpush1.bf16.msra.mxu0 0
        %4114 = vmatprep.subr.bf16.mxu0 0
        %4115 = vmatpush1.bf16.msra.mxu0 0
        %4116 = vmatprep.subr.bf16.mxu0 0
        %4117 = vmatpush1.bf16.msra.mxu0 0
        %4118 = vmatprep.subr.bf16.mxu0 0
        %4119 = vmatpush1.bf16.msra.mxu0 0
        %4120 = vmatprep.subr.bf16.mxu0 0
        %4121 = vmatpush1.bf16.msra.mxu0 0
        %4122 = vmatprep.subr.bf16.mxu0 0
        %4123 = vmatpush1.bf16.msra.mxu0 0
        %4124 = vmatprep.subr.bf16.mxu0 0
        %4125 = vmatpush1.bf16.msra.mxu0 0
        %4126 = vmatprep.subr.bf16.mxu0 0
        %4127 = vmatpush1.bf16.msra.mxu0 0
        %4128 = vmatprep.subr.bf16.mxu0 0
        %4129 = vmatpush1.bf16.msra.mxu0 0
        %4130 = vmatprep.mubr.bf16.mxu0 0
        %4131 = vmatmul.mubr.bf16.gmra.mrb[0].mxu0 %v4087
        %v4132 = vpop.f32.mrb[0].mxu0
        %v4133 = vadd.f32 0.0, %v4132
        %v4134 = vpop.f32.mrb[0].mxu0
        %v4135 = vpop.f32.mrb[0].mxu0
        %v4136 = vadd.f32 0.0, %v4135
        %v4137 = vpop.f32.mrb[0].mxu0
        %4138 = vmatprep.mubr.bf16.mxu0 0
        %4139 = vmatmul.mubr.bf16.gmra.mrb[0].mxu0 %v4090
        %v4140 = vpop.f32.mrb[0].mxu0
        %v4141 = vadd.f32 0.0, %v4140
        %v4142 = vpop.f32.mrb[0].mxu0
        %v4143 = vpop.f32.mrb[0].mxu0
        %v4144 = vadd.f32 0.0, %v4143
        %v4145 = vpop.f32.mrb[0].mxu0
        %4146 = vmatprep.mubr.bf16.mxu0 0
        %4147 = vmatmul.mubr.bf16.gmra.mrb[0].mxu0 %v4093
        %v4148 = vpop.f32.mrb[0].mxu0
        %v4149 = vadd.f32 0.0, %v4148
        %v4150 = vpop.f32.mrb[0].mxu0
        %v4151 = vpop.f32.mrb[0].mxu0
        %v4152 = vadd.f32 0.0, %v4151
        %v4153 = vpop.f32.mrb[0].mxu0
        %4154 = vmatprep.mubr.bf16.mxu0 0
        %4155 = vmatmul.mubr.bf16.gmra.mrb[0].mxu0 %v4096
        %v4156 = vpop.f32.mrb[0].mxu0
        %v4157 = vadd.f32 0.0, %v4156
        %v4158 = vpop.f32.mrb[0].mxu0
        %v4159 = vpop.f32.mrb[0].mxu0
        %v4160 = vadd.f32 0.0, %v4159
        %v4161 = vpop.f32.mrb[0].mxu0
        %4162 = vdwg.mxu0
        %v4163 = vadd.f32 %v3906, %v4133
        %v4164 = vadd.f32 %v3907, %v4136
        %v4165 = vadd.f32 %v3908, %v4141
        %v4166 = vadd.f32 %v3909, %v4144
        %v4167 = vadd.f32 %v3910, %v4149
        %v4168 = vadd.f32 %v3911, %v4152
        %v4169 = vadd.f32 %v3912, %v4157
        %v4170 = vadd.f32 %v3913, %v4160
        %v4171 = vpack.c.bf16 %v4164, %v4163
        %v4172 = vpack.c.bf16 %v4166, %v4165
        %v4173 = vpack.c.bf16 %v4168, %v4167
        %v4174 = vpack.c.bf16 %v4170, %v4169
        %s4175 = scalar_lea.vmem %s738, 448
        %v4176 = vld [vmem:[%s4175] sm:$0xf]
        %v4177 = vld [vmem:[%s4175 + $0x4] sm:$0xf]
        %v4178 = vld [vmem:[%s4175 + $0x8] sm:$0xf]
        %v4179 = vld [vmem:[%s4175 + $0xc] sm:$0xf]
        %v4180 = vld [vmem:[%s4175 + $0x10] sm:$0xf]
        %v4181 = vld [vmem:[%s4175 + $0x14] sm:$0xf]
        %v4182 = vld [vmem:[%s4175 + $0x18] sm:$0xf]
        %v4183 = vld [vmem:[%s4175 + $0x1c] sm:$0xf]
        %v4184 = vld [vmem:[%s4175 + $0x20] sm:$0xf]
        %v4185 = vld [vmem:[%s4175 + $0x24] sm:$0xf]
        %v4186 = vld [vmem:[%s4175 + $0x28] sm:$0xf]
        %v4187 = vld [vmem:[%s4175 + $0x2c] sm:$0xf]
        %v4188 = vld [vmem:[%s4175 + $0x30] sm:$0xf]
        %v4189 = vld [vmem:[%s4175 + $0x34] sm:$0xf]
        %v4190 = vld [vmem:[%s4175 + $0x38] sm:$0xf]
        %v4191 = vld [vmem:[%s4175 + $0x3c] sm:$0xf]
        %v4192 = vlaneseq
        %v4193 = vshrl.u32 %v4192, 7
        %v4194 = vsub.s32 7, %v4193
        %v4195 = vrot.slane %v788, %v4194
        %v4212 = vunpack.c.l.b16 %v4176
        %v4213 = vunpack.c.l.b16 %v4177
        %v4214 = vunpack.c.l.b16 %v4178
        %v4215 = vunpack.c.l.b16 %v4179
        %v4216 = vunpack.c.l.b16 %v4180
        %v4217 = vunpack.c.l.b16 %v4181
        %v4218 = vunpack.c.l.b16 %v4182
        %v4219 = vunpack.c.l.b16 %v4183
        %v4220 = vunpack.c.l.b16 %v4184
        %v4221 = vunpack.c.l.b16 %v4185
        %v4222 = vunpack.c.l.b16 %v4186
        %v4223 = vunpack.c.l.b16 %v4187
        %v4224 = vunpack.c.l.b16 %v4188
        %v4225 = vunpack.c.l.b16 %v4189
        %v4226 = vunpack.c.l.b16 %v4190
        %v4227 = vunpack.c.l.b16 %v4191
        %v4228 = vpack.c.b16 %v4213, %v4212
        %v4229 = vpack.c.b16 %v4215, %v4214
        %v4230 = vpack.c.b16 %v4217, %v4216
        %v4231 = vpack.c.b16 %v4219, %v4218
        %v4232 = vpack.c.b16 %v4221, %v4220
        %v4233 = vpack.c.b16 %v4223, %v4222
        %v4234 = vpack.c.b16 %v4225, %v4224
        %v4235 = vpack.c.b16 %v4227, %v4226
        %4244 = vmatprep.subr.bf16.mxu0 0
        %4245 = vmatpush1.bf16.msra.mxu0 %v4228
        %4246 = vmatprep.subr.bf16.mxu0 0
        %4247 = vmatpush1.bf16.msra.mxu0 %v4229
        %4248 = vmatprep.subr.bf16.mxu0 0
        %4249 = vmatpush1.bf16.msra.mxu0 %v4230
        %4250 = vmatprep.subr.bf16.mxu0 0
        %4251 = vmatpush1.bf16.msra.mxu0 %v4231
        %4252 = vmatprep.subr.bf16.mxu0 0
        %4253 = vmatpush1.bf16.msra.mxu0 %v4232
        %4254 = vmatprep.subr.bf16.mxu0 0
        %4255 = vmatpush1.bf16.msra.mxu0 %v4233
        %4256 = vmatprep.subr.bf16.mxu0 0
        %4257 = vmatpush1.bf16.msra.mxu0 %v4234
        %4258 = vmatprep.subr.bf16.mxu0 0
        %4259 = vmatpush1.bf16.msra.mxu0 %v4235
        %4260 = vmatprep.subr.bf16.mxu0 0
        %4261 = vmatpush1.bf16.msra.mxu0 0
        %4262 = vmatprep.subr.bf16.mxu0 0
        %4263 = vmatpush1.bf16.msra.mxu0 0
        %4264 = vmatprep.subr.bf16.mxu0 0
        %4265 = vmatpush1.bf16.msra.mxu0 0
        %4266 = vmatprep.subr.bf16.mxu0 0
        %4267 = vmatpush1.bf16.msra.mxu0 0
        %4268 = vmatprep.subr.bf16.mxu0 0
        %4269 = vmatpush1.bf16.msra.mxu0 0
        %4270 = vmatprep.subr.bf16.mxu0 0
        %4271 = vmatpush1.bf16.msra.mxu0 0
        %4272 = vmatprep.subr.bf16.mxu0 0
        %4273 = vmatpush1.bf16.msra.mxu0 0
        %4274 = vmatprep.subr.bf16.mxu0 0
        %4275 = vmatpush1.bf16.msra.mxu0 0
        %4276 = vmatprep.mubr.bf16.mxu0 0
        %4277 = vmatmul.mubr.bf16.gmra.mrb[0].mxu0 %v4171
        %v4278 = vpop.f32.mrb[0].mxu0
        %v4279 = vadd.f32 %v4195, %v4278
        %v4280 = vpop.f32.mrb[0].mxu0
        %v4281 = vpop.f32.mrb[0].mxu0
        %v4282 = vadd.f32 %v4195, %v4281
        %v4283 = vpop.f32.mrb[0].mxu0
        %4284 = vmatprep.mubr.bf16.mxu0 0
        %4285 = vmatmul.mubr.bf16.gmra.mrb[0].mxu0 %v4172
        %v4286 = vpop.f32.mrb[0].mxu0
        %v4287 = vadd.f32 %v4195, %v4286
        %v4288 = vpop.f32.mrb[0].mxu0
        %v4289 = vpop.f32.mrb[0].mxu0
        %v4290 = vadd.f32 %v4195, %v4289
        %v4291 = vpop.f32.mrb[0].mxu0
        %4292 = vmatprep.mubr.bf16.mxu0 0
        %4293 = vmatmul.mubr.bf16.gmra.mrb[0].mxu0 %v4173
        %v4294 = vpop.f32.mrb[0].mxu0
        %v4295 = vadd.f32 %v4195, %v4294
        %v4296 = vpop.f32.mrb[0].mxu0
        %v4297 = vpop.f32.mrb[0].mxu0
        %v4298 = vadd.f32 %v4195, %v4297
        %v4299 = vpop.f32.mrb[0].mxu0
        %4300 = vmatprep.mubr.bf16.mxu0 0
        %4301 = vmatmul.mubr.bf16.gmra.mrb[0].mxu0 %v4174
        %v4302 = vpop.f32.mrb[0].mxu0
        %v4303 = vadd.f32 %v4195, %v4302
        %v4304 = vpop.f32.mrb[0].mxu0
        %v4305 = vpop.f32.mrb[0].mxu0
        %v4306 = vadd.f32 %v4195, %v4305
        %v4307 = vpop.f32.mrb[0].mxu0
        %4308 = vdwg.mxu0
        %4309 = vadd.xlane.f32.xlu0 %v4279
        %v4310 = vpop.xlane.xlu0 %4309
        %4311 = vadd.xlane.f32.xlu0 %v4282
        %v4312 = vpop.xlane.xlu0 %4311
        %4313 = vadd.xlane.f32.xlu0 %v4287
        %v4314 = vpop.xlane.xlu0 %4313
        %4315 = vadd.xlane.f32.xlu0 %v4290
        %v4316 = vpop.xlane.xlu0 %4315
        %4317 = vadd.xlane.f32.xlu0 %v4295
        %v4318 = vpop.xlane.xlu0 %4317
        %4319 = vadd.xlane.f32.xlu0 %v4298
        %v4320 = vpop.xlane.xlu0 %4319
        %4321 = vadd.xlane.f32.xlu0 %v4303
        %v4322 = vpop.xlane.xlu0 %4321
        %4323 = vadd.xlane.f32.xlu0 %v4306
        %v4324 = vpop.xlane.xlu0 %4323
        %v4325 = vmul.f32 %v4310, %v806
        %v4326 = vmul.f32 %v4312, %v806
        %v4327 = vmul.f32 %v4314, %v806
        %v4328 = vmul.f32 %v4316, %v806
        %v4329 = vmul.f32 %v4318, %v806
        %v4330 = vmul.f32 %v4320, %v806
        %v4331 = vmul.f32 %v4322, %v806
        %v4332 = vmul.f32 %v4324, %v806
        %v4333 = vsub.f32 %v4279, %v4325
        %v4334 = vsub.f32 %v4282, %v4326
        %v4335 = vsub.f32 %v4287, %v4327
        %v4336 = vsub.f32 %v4290, %v4328
        %v4337 = vsub.f32 %v4295, %v4329
        %v4338 = vsub.f32 %v4298, %v4330
        %v4339 = vsub.f32 %v4303, %v4331
        %v4340 = vsub.f32 %v4306, %v4332
        %v4341 = vmul.f32 %v4333, %v4333
        %v4342 = vmul.f32 %v4334, %v4334
        %v4343 = vmul.f32 %v4335, %v4335
        %v4344 = vmul.f32 %v4336, %v4336
        %v4345 = vmul.f32 %v4337, %v4337
        %v4346 = vmul.f32 %v4338, %v4338
        %v4347 = vmul.f32 %v4339, %v4339
        %v4348 = vmul.f32 %v4340, %v4340
        %4349 = vadd.xlane.f32.xlu0 %v4341
        %v4350 = vpop.xlane.xlu0 %4349
        %4351 = vadd.xlane.f32.xlu0 %v4342
        %v4352 = vpop.xlane.xlu0 %4351
        %4353 = vadd.xlane.f32.xlu0 %v4343
        %v4354 = vpop.xlane.xlu0 %4353
        %4355 = vadd.xlane.f32.xlu0 %v4344
        %v4356 = vpop.xlane.xlu0 %4355
        %4357 = vadd.xlane.f32.xlu0 %v4345
        %v4358 = vpop.xlane.xlu0 %4357
        %4359 = vadd.xlane.f32.xlu0 %v4346
        %v4360 = vpop.xlane.xlu0 %4359
        %4361 = vadd.xlane.f32.xlu0 %v4347
        %v4362 = vpop.xlane.xlu0 %4361
        %4363 = vadd.xlane.f32.xlu0 %v4348
        %v4364 = vpop.xlane.xlu0 %4363
        %v4365 = vmul.f32 %v4350, %v806
        %v4366 = vmul.f32 %v4352, %v806
        %v4367 = vmul.f32 %v4354, %v806
        %v4368 = vmul.f32 %v4356, %v806
        %v4369 = vmul.f32 %v4358, %v806
        %v4370 = vmul.f32 %v4360, %v806
        %v4371 = vmul.f32 %v4362, %v806
        %v4372 = vmul.f32 %v4364, %v806
        %v4373 = vadd.f32 %v4365, 1e-05
        %v4374 = vadd.f32 %v4366, 1e-05
        %v4375 = vadd.f32 %v4367, 1e-05
        %v4376 = vadd.f32 %v4368, 1e-05
        %v4377 = vadd.f32 %v4369, 1e-05
        %v4378 = vadd.f32 %v4370, 1e-05
        %v4379 = vadd.f32 %v4371, 1e-05
        %v4380 = vadd.f32 %v4372, 1e-05
        %v4381 = vrsqrt.pop %v4373
        %v4382 = vrsqrt.pop %v4374
        %v4383 = vrsqrt.pop %v4375
        %v4384 = vrsqrt.pop %v4376
        %v4385 = vrsqrt.pop %v4377
        %v4386 = vrsqrt.pop %v4378
        %v4387 = vrsqrt.pop %v4379
        %v4388 = vrsqrt.pop %v4380
        %v4389 = vmul.f32 %v4333, %v4381
        %v4390 = vmul.f32 %v4334, %v4382
        %v4391 = vmul.f32 %v4335, %v4383
        %v4392 = vmul.f32 %v4336, %v4384
        %v4393 = vmul.f32 %v4337, %v4385
        %v4394 = vmul.f32 %v4338, %v4386
        %v4395 = vmul.f32 %v4339, %v4387
        %v4396 = vmul.f32 %v4340, %v4388
        %v4397 = vlaneseq
        %v4398 = vshrl.u32 %v4397, 7
        %v4399 = vsub.s32 6, %v4398
        %v4400 = vrot.slane %v786, %v4399
        %v4401 = vmul.f32 %v4389, %v4400
        %v4402 = vmul.f32 %v4390, %v4400
        %v4403 = vmul.f32 %v4391, %v4400
        %v4404 = vmul.f32 %v4392, %v4400
        %v4405 = vmul.f32 %v4393, %v4400
        %v4406 = vmul.f32 %v4394, %v4400
        %v4407 = vmul.f32 %v4395, %v4400
        %v4408 = vmul.f32 %v4396, %v4400
        %v4409 = vlaneseq
        %v4410 = vshrl.u32 %v4409, 7
        %v4411 = vsub.s32 7, %v4410
        %v4412 = vrot.slane %v786, %v4411
        %v4413 = vadd.f32 %v4401, %v4412
        %v4414 = vadd.f32 %v4402, %v4412
        %v4415 = vadd.f32 %v4403, %v4412
        %v4416 = vadd.f32 %v4404, %v4412
        %v4417 = vadd.f32 %v4405, %v4412
        %v4418 = vadd.f32 %v4406, %v4412
        %v4419 = vadd.f32 %v4407, %v4412
        %v4420 = vadd.f32 %v4408, %v4412
        %v4421 = vadd.f32 %v2653, %v4413
        %v4422 = vadd.f32 %v2654, %v4414
        %v4423 = vadd.f32 %v2655, %v4415
        %v4424 = vadd.f32 %v2656, %v4416
        %v4425 = vadd.f32 %v2657, %v4417
        %v4426 = vadd.f32 %v2658, %v4418
        %v4427 = vadd.f32 %v2659, %v4419
        %v4428 = vadd.f32 %v2660, %v4420
        %4429 = vadd.xlane.f32.xlu0 %v4421
        %v4430 = vpop.xlane.xlu0 %4429
        %4431 = vadd.xlane.f32.xlu0 %v4422
        %v4432 = vpop.xlane.xlu0 %4431
        %4433 = vadd.xlane.f32.xlu0 %v4423
        %v4434 = vpop.xlane.xlu0 %4433
        %4435 = vadd.xlane.f32.xlu0 %v4424
        %v4436 = vpop.xlane.xlu0 %4435
        %4437 = vadd.xlane.f32.xlu0 %v4425
        %v4438 = vpop.xlane.xlu0 %4437
        %4439 = vadd.xlane.f32.xlu0 %v4426
        %v4440 = vpop.xlane.xlu0 %4439
        %4441 = vadd.xlane.f32.xlu0 %v4427
        %v4442 = vpop.xlane.xlu0 %4441
        %4443 = vadd.xlane.f32.xlu0 %v4428
        %v4444 = vpop.xlane.xlu0 %4443
        %v4445 = vmul.f32 %v4430, %v806
        %v4446 = vmul.f32 %v4432, %v806
        %v4447 = vmul.f32 %v4434, %v806
        %v4448 = vmul.f32 %v4436, %v806
        %v4449 = vmul.f32 %v4438, %v806
        %v4450 = vmul.f32 %v4440, %v806
        %v4451 = vmul.f32 %v4442, %v806
        %v4452 = vmul.f32 %v4444, %v806
        %v4453 = vsub.f32 %v4421, %v4445
        %v4454 = vsub.f32 %v4422, %v4446
        %v4455 = vsub.f32 %v4423, %v4447
        %v4456 = vsub.f32 %v4424, %v4448
        %v4457 = vsub.f32 %v4425, %v4449
        %v4458 = vsub.f32 %v4426, %v4450
        %v4459 = vsub.f32 %v4427, %v4451
        %v4460 = vsub.f32 %v4428, %v4452
        %v4461 = vmul.f32 %v4453, %v4453
        %v4462 = vmul.f32 %v4454, %v4454
        %v4463 = vmul.f32 %v4455, %v4455
        %v4464 = vmul.f32 %v4456, %v4456
        %v4465 = vmul.f32 %v4457, %v4457
        %v4466 = vmul.f32 %v4458, %v4458
        %v4467 = vmul.f32 %v4459, %v4459
        %v4468 = vmul.f32 %v4460, %v4460
        %4469 = vadd.xlane.f32.xlu0 %v4461
        %v4470 = vpop.xlane.xlu0 %4469
        %4471 = vadd.xlane.f32.xlu0 %v4462
        %v4472 = vpop.xlane.xlu0 %4471
        %4473 = vadd.xlane.f32.xlu0 %v4463
        %v4474 = vpop.xlane.xlu0 %4473
        %4475 = vadd.xlane.f32.xlu0 %v4464
        %v4476 = vpop.xlane.xlu0 %4475
        %4477 = vadd.xlane.f32.xlu0 %v4465
        %v4478 = vpop.xlane.xlu0 %4477
        %4479 = vadd.xlane.f32.xlu0 %v4466
        %v4480 = vpop.xlane.xlu0 %4479
        %4481 = vadd.xlane.f32.xlu0 %v4467
        %v4482 = vpop.xlane.xlu0 %4481
        %4483 = vadd.xlane.f32.xlu0 %v4468
        %v4484 = vpop.xlane.xlu0 %4483
        %v4485 = vmul.f32 %v4470, %v806
        %v4486 = vmul.f32 %v4472, %v806
        %v4487 = vmul.f32 %v4474, %v806
        %v4488 = vmul.f32 %v4476, %v806
        %v4489 = vmul.f32 %v4478, %v806
        %v4490 = vmul.f32 %v4480, %v806
        %v4491 = vmul.f32 %v4482, %v806
        %v4492 = vmul.f32 %v4484, %v806
        %v4493 = vadd.f32 %v4485, 1e-05
        %v4494 = vadd.f32 %v4486, 1e-05
        %v4495 = vadd.f32 %v4487, 1e-05
        %v4496 = vadd.f32 %v4488, 1e-05
        %v4497 = vadd.f32 %v4489, 1e-05
        %v4498 = vadd.f32 %v4490, 1e-05
        %v4499 = vadd.f32 %v4491, 1e-05
        %v4500 = vadd.f32 %v4492, 1e-05
        %v4501 = vrsqrt.pop %v4493
        %v4502 = vrsqrt.pop %v4494
        %v4503 = vrsqrt.pop %v4495
        %v4504 = vrsqrt.pop %v4496
        %v4505 = vrsqrt.pop %v4497
        %v4506 = vrsqrt.pop %v4498
        %v4507 = vrsqrt.pop %v4499
        %v4508 = vrsqrt.pop %v4500
        %v4509 = vmul.f32 %v4453, %v4501
        %v4510 = vmul.f32 %v4454, %v4502
        %v4511 = vmul.f32 %v4455, %v4503
        %v4512 = vmul.f32 %v4456, %v4504
        %v4513 = vmul.f32 %v4457, %v4505
        %v4514 = vmul.f32 %v4458, %v4506
        %v4515 = vmul.f32 %v4459, %v4507
        %v4516 = vmul.f32 %v4460, %v4508
        %v4517 = vlaneseq
        %v4518 = vshrl.u32 %v4517, 7
        %v4519 = vsub.s32 0, %v4518
        %v4520 = vrot.slane %v787, %v4519
        %v4521 = vmul.f32 %v4509, %v4520
        %v4522 = vmul.f32 %v4510, %v4520
        %v4523 = vmul.f32 %v4511, %v4520
        %v4524 = vmul.f32 %v4512, %v4520
        %v4525 = vmul.f32 %v4513, %v4520
        %v4526 = vmul.f32 %v4514, %v4520
        %v4527 = vmul.f32 %v4515, %v4520
        %v4528 = vmul.f32 %v4516, %v4520
        %v4529 = vlaneseq
        %v4530 = vshrl.u32 %v4529, 7
        %v4531 = vsub.s32 1, %v4530
        %v4532 = vrot.slane %v787, %v4531
        %v4533 = vadd.f32 %v4521, %v4532
        %v4534 = vadd.f32 %v4522, %v4532
        %v4535 = vadd.f32 %v4523, %v4532
        %v4536 = vadd.f32 %v4524, %v4532
        %v4537 = vadd.f32 %v4525, %v4532
        %v4538 = vadd.f32 %v4526, %v4532
        %v4539 = vadd.f32 %v4527, %v4532
        %v4540 = vadd.f32 %v4528, %v4532
        %v4541 = vpack.c.bf16 %v4534, %v4533
        %v4542 = vpack.c.bf16 %v4536, %v4535
        %v4543 = vpack.c.bf16 %v4538, %v4537
        %v4544 = vpack.c.bf16 %v4540, %v4539
        %v4545 = vld [vmem:[%s617] sm:$0xff]
        %v4546 = vld [vmem:[%s617 + $0x8] sm:$0xff]
        %v4547 = vld [vmem:[%s617 + $0x10] sm:$0xff]
        %v4548 = vld [vmem:[%s617 + $0x18] sm:$0xff]
        %v4549 = vld [vmem:[%s617 + $0x20] sm:$0xff]
        %v4550 = vld [vmem:[%s617 + $0x28] sm:$0xff]
        %v4551 = vld [vmem:[%s617 + $0x30] sm:$0xff]
        %v4552 = vld [vmem:[%s617 + $0x38] sm:$0xff]
        %v4553 = vld [vmem:[%s617 + $0x40] sm:$0xff]
        %v4554 = vld [vmem:[%s617 + $0x48] sm:$0xff]
        %v4555 = vld [vmem:[%s617 + $0x50] sm:$0xff]
        %v4556 = vld [vmem:[%s617 + $0x58] sm:$0xff]
        %v4557 = vld [vmem:[%s617 + $0x60] sm:$0xff]
        %v4558 = vld [vmem:[%s617 + $0x68] sm:$0xff]
        %v4559 = vld [vmem:[%s617 + $0x70] sm:$0xff]
        %v4560 = vld [vmem:[%s617 + $0x78] sm:$0xff]
        %v4562 = vlaneseq
        %v4563 = vshrl.u32 %v4562, 7
        %v4564 = vsub.s32 0, %v4563
        %v4565 = vrot.slane %v789, %v4564
        %v4566 = vlaneseq
        %v4567 = vshrl.u32 %v4566, 7
        %v4568 = vsub.s32 4, %v4567
        %v4569 = vrot.slane %v789, %v4568
        %v4572 = vlaneseq
        %v4573 = vshrl.u32 %v4572, 7
        %v4574 = vsub.s32 0, %v4573
        %v4575 = vrot.slane %v4565, %v4574
        %v4576 = vlaneseq
        %v4577 = vshrl.u32 %v4576, 7
        %v4578 = vsub.s32 0, %v4577
        %v4579 = vrot.slane %v4569, %v4578
        %v4596 = vunpack.c.l.b16 %v4545
        %v4597 = vunpack.c.h.b16 %v4545
        %v4598 = vunpack.c.l.b16 %v4546
        %v4599 = vunpack.c.h.b16 %v4546
        %v4600 = vunpack.c.l.b16 %v4547
        %v4601 = vunpack.c.h.b16 %v4547
        %v4602 = vunpack.c.l.b16 %v4548
        %v4603 = vunpack.c.h.b16 %v4548
        %v4604 = vunpack.c.l.b16 %v4549
        %v4605 = vunpack.c.h.b16 %v4549
        %v4606 = vunpack.c.l.b16 %v4550
        %v4607 = vunpack.c.h.b16 %v4550
        %v4608 = vunpack.c.l.b16 %v4551
        %v4609 = vunpack.c.h.b16 %v4551
        %v4610 = vunpack.c.l.b16 %v4552
        %v4611 = vunpack.c.h.b16 %v4552
        %v4612 = vunpack.c.l.b16 %v4553
        %v4613 = vunpack.c.h.b16 %v4553
        %v4614 = vunpack.c.l.b16 %v4554
        %v4615 = vunpack.c.h.b16 %v4554
        %v4616 = vunpack.c.l.b16 %v4555
        %v4617 = vunpack.c.h.b16 %v4555
        %v4618 = vunpack.c.l.b16 %v4556
        %v4619 = vunpack.c.h.b16 %v4556
        %v4620 = vunpack.c.l.b16 %v4557
        %v4621 = vunpack.c.h.b16 %v4557
        %v4622 = vunpack.c.l.b16 %v4558
        %v4623 = vunpack.c.h.b16 %v4558
        %v4624 = vunpack.c.l.b16 %v4559
        %v4625 = vunpack.c.h.b16 %v4559
        %v4626 = vunpack.c.l.b16 %v4560
        %v4627 = vunpack.c.h.b16 %v4560
        %v4628 = vpack.c.b16 %v4598, %v4596
        %v4629 = vpack.c.b16 %v4599, %v4597
        %v4630 = vpack.c.b16 %v4602, %v4600
        %v4631 = vpack.c.b16 %v4603, %v4601
        %v4632 = vpack.c.b16 %v4606, %v4604
        %v4633 = vpack.c.b16 %v4607, %v4605
        %v4634 = vpack.c.b16 %v4610, %v4608
        %v4635 = vpack.c.b16 %v4611, %v4609
        %v4636 = vpack.c.b16 %v4614, %v4612
        %v4637 = vpack.c.b16 %v4615, %v4613
        %v4638 = vpack.c.b16 %v4618, %v4616
        %v4639 = vpack.c.b16 %v4619, %v4617
        %v4640 = vpack.c.b16 %v4622, %v4620
        %v4641 = vpack.c.b16 %v4623, %v4621
        %v4642 = vpack.c.b16 %v4626, %v4624
        %v4643 = vpack.c.b16 %v4627, %v4625
        %4660 = vmatprep.subr.bf16.mxu0 %v4629
        %4661 = vmatpush1.bf16.msra.mxu0 %v4628
        %4662 = vmatprep.subr.bf16.mxu0 %v4631
        %4663 = vmatpush1.bf16.msra.mxu0 %v4630
        %4664 = vmatprep.subr.bf16.mxu0 %v4633
        %4665 = vmatpush1.bf16.msra.mxu0 %v4632
        %4666 = vmatprep.subr.bf16.mxu0 %v4635
        %4667 = vmatpush1.bf16.msra.mxu0 %v4634
        %4668 = vmatprep.subr.bf16.mxu0 %v4637
        %4669 = vmatpush1.bf16.msra.mxu0 %v4636
        %4670 = vmatprep.subr.bf16.mxu0 %v4639
        %4671 = vmatpush1.bf16.msra.mxu0 %v4638
        %4672 = vmatprep.subr.bf16.mxu0 %v4641
        %4673 = vmatpush1.bf16.msra.mxu0 %v4640
        %4674 = vmatprep.subr.bf16.mxu0 %v4643
        %4675 = vmatpush1.bf16.msra.mxu0 %v4642
        %4676 = vmatprep.subr.bf16.mxu0 0
        %4677 = vmatpush1.bf16.msra.mxu0 0
        %4678 = vmatprep.subr.bf16.mxu0 0
        %4679 = vmatpush1.bf16.msra.mxu0 0
        %4680 = vmatprep.subr.bf16.mxu0 0
        %4681 = vmatpush1.bf16.msra.mxu0 0
        %4682 = vmatprep.subr.bf16.mxu0 0
        %4683 = vmatpush1.bf16.msra.mxu0 0
        %4684 = vmatprep.subr.bf16.mxu0 0
        %4685 = vmatpush1.bf16.msra.mxu0 0
        %4686 = vmatprep.subr.bf16.mxu0 0
        %4687 = vmatpush1.bf16.msra.mxu0 0
        %4688 = vmatprep.subr.bf16.mxu0 0
        %4689 = vmatpush1.bf16.msra.mxu0 0
        %4690 = vmatprep.subr.bf16.mxu0 0
        %4691 = vmatpush1.bf16.msra.mxu0 0
        %4692 = vmatprep.mubr.bf16.mxu0 0
        %4693 = vmatmul.mubr.bf16.gmra.mrb[0].mxu0 %v4541
        %v4694 = vpop.f32.mrb[0].mxu0
        %v4695 = vadd.f32 %v4575, %v4694
        %v4696 = vpop.f32.mrb[0].mxu0
        %v4697 = vadd.f32 %v4579, %v4696
        %v4698 = vpop.f32.mrb[0].mxu0
        %v4699 = vadd.f32 %v4575, %v4698
        %v4700 = vpop.f32.mrb[0].mxu0
        %v4701 = vadd.f32 %v4579, %v4700
        %4702 = vmatprep.mubr.bf16.mxu0 0
        %4703 = vmatmul.mubr.bf16.gmra.mrb[0].mxu0 %v4542
        %v4704 = vpop.f32.mrb[0].mxu0
        %v4705 = vadd.f32 %v4575, %v4704
        %v4706 = vpop.f32.mrb[0].mxu0
        %v4707 = vadd.f32 %v4579, %v4706
        %v4708 = vpop.f32.mrb[0].mxu0
        %v4709 = vadd.f32 %v4575, %v4708
        %v4710 = vpop.f32.mrb[0].mxu0
        %v4711 = vadd.f32 %v4579, %v4710
        %4712 = vmatprep.mubr.bf16.mxu0 0
        %4713 = vmatmul.mubr.bf16.gmra.mrb[0].mxu0 %v4543
        %v4714 = vpop.f32.mrb[0].mxu0
        %v4715 = vadd.f32 %v4575, %v4714
        %v4716 = vpop.f32.mrb[0].mxu0
        %v4717 = vadd.f32 %v4579, %v4716
        %v4718 = vpop.f32.mrb[0].mxu0
        %v4719 = vadd.f32 %v4575, %v4718
        %v4720 = vpop.f32.mrb[0].mxu0
        %v4721 = vadd.f32 %v4579, %v4720
        %4722 = vmatprep.mubr.bf16.mxu0 0
        %4723 = vmatmul.mubr.bf16.gmra.mrb[0].mxu0 %v4544
        %v4724 = vpop.f32.mrb[0].mxu0
        %v4725 = vadd.f32 %v4575, %v4724
        %v4726 = vpop.f32.mrb[0].mxu0
        %v4727 = vadd.f32 %v4579, %v4726
        %v4728 = vpop.f32.mrb[0].mxu0
        %v4729 = vadd.f32 %v4575, %v4728
        %v4730 = vpop.f32.mrb[0].mxu0
        %v4731 = vadd.f32 %v4579, %v4730
        %4732 = vdwg.mxu0
        %v4733 = vmax.f32 %v4695, 0.0
        %v4734 = vmax.f32 %v4697, 0.0
        %v4735 = vmax.f32 %v4699, 0.0
        %v4736 = vmax.f32 %v4701, 0.0
        %v4737 = vmax.f32 %v4705, 0.0
        %v4738 = vmax.f32 %v4707, 0.0
        %v4739 = vmax.f32 %v4709, 0.0
        %v4740 = vmax.f32 %v4711, 0.0
        %v4741 = vmax.f32 %v4715, 0.0
        %v4742 = vmax.f32 %v4717, 0.0
        %v4743 = vmax.f32 %v4719, 0.0
        %v4744 = vmax.f32 %v4721, 0.0
        %v4745 = vmax.f32 %v4725, 0.0
        %v4746 = vmax.f32 %v4727, 0.0
        %v4747 = vmax.f32 %v4729, 0.0
        %v4748 = vmax.f32 %v4731, 0.0
        %v4749 = vadd.f32 %v4733, %v4734
        %4750 = vadd.xlane.f32.xlu0 %v4749
        %v4751 = vpop.xlane.xlu0 %4750
        %v4752 = vadd.f32 %v4735, %v4736
        %4753 = vadd.xlane.f32.xlu0 %v4752
        %v4754 = vpop.xlane.xlu0 %4753
        %v4755 = vadd.f32 %v4737, %v4738
        %4756 = vadd.xlane.f32.xlu0 %v4755
        %v4757 = vpop.xlane.xlu0 %4756
        %v4758 = vadd.f32 %v4739, %v4740
        %4759 = vadd.xlane.f32.xlu0 %v4758
        %v4760 = vpop.xlane.xlu0 %4759
        %v4761 = vadd.f32 %v4741, %v4742
        %4762 = vadd.xlane.f32.xlu0 %v4761
        %v4763 = vpop.xlane.xlu0 %4762
        %v4764 = vadd.f32 %v4743, %v4744
        %4765 = vadd.xlane.f32.xlu0 %v4764
        %v4766 = vpop.xlane.xlu0 %4765
        %v4767 = vadd.f32 %v4745, %v4746
        %4768 = vadd.xlane.f32.xlu0 %v4767
        %v4769 = vpop.xlane.xlu0 %4768
        %v4770 = vadd.f32 %v4747, %v4748
        %4771 = vadd.xlane.f32.xlu0 %v4770
        %v4772 = vpop.xlane.xlu0 %4771
        %v4773 = vrcp.pop 256.0
        %v4774 = vmul.f32 %v4751, %v4773
        %v4775 = vmul.f32 %v4754, %v4773
        %v4776 = vmul.f32 %v4757, %v4773
        %v4777 = vmul.f32 %v4760, %v4773
        %v4778 = vmul.f32 %v4763, %v4773
        %v4779 = vmul.f32 %v4766, %v4773
        %v4780 = vmul.f32 %v4769, %v4773
        %v4781 = vmul.f32 %v4772, %v4773
        %v4782 = vsub.f32 %v4733, %v4774
        %v4783 = vsub.f32 %v4734, %v4774
        %v4784 = vsub.f32 %v4735, %v4775
        %v4785 = vsub.f32 %v4736, %v4775
        %v4786 = vsub.f32 %v4737, %v4776
        %v4787 = vsub.f32 %v4738, %v4776
        %v4788 = vsub.f32 %v4739, %v4777
        %v4789 = vsub.f32 %v4740, %v4777
        %v4790 = vsub.f32 %v4741, %v4778
        %v4791 = vsub.f32 %v4742, %v4778
        %v4792 = vsub.f32 %v4743, %v4779
        %v4793 = vsub.f32 %v4744, %v4779
        %v4794 = vsub.f32 %v4745, %v4780
        %v4795 = vsub.f32 %v4746, %v4780
        %v4796 = vsub.f32 %v4747, %v4781
        %v4797 = vsub.f32 %v4748, %v4781
        %v4798 = vmul.f32 %v4782, %v4782
        %v4799 = vmul.f32 %v4783, %v4783
        %v4800 = vmul.f32 %v4784, %v4784
        %v4801 = vmul.f32 %v4785, %v4785
        %v4802 = vmul.f32 %v4786, %v4786
        %v4803 = vmul.f32 %v4787, %v4787
        %v4804 = vmul.f32 %v4788, %v4788
        %v4805 = vmul.f32 %v4789, %v4789
        %v4806 = vmul.f32 %v4790, %v4790
        %v4807 = vmul.f32 %v4791, %v4791
        %v4808 = vmul.f32 %v4792, %v4792
        %v4809 = vmul.f32 %v4793, %v4793
        %v4810 = vmul.f32 %v4794, %v4794
        %v4811 = vmul.f32 %v4795, %v4795
        %v4812 = vmul.f32 %v4796, %v4796
        %v4813 = vmul.f32 %v4797, %v4797
        %v4814 = vadd.f32 %v4798, %v4799
        %4815 = vadd.xlane.f32.xlu0 %v4814
        %v4816 = vpop.xlane.xlu0 %4815
        %v4817 = vadd.f32 %v4800, %v4801
        %4818 = vadd.xlane.f32.xlu0 %v4817
        %v4819 = vpop.xlane.xlu0 %4818
        %v4820 = vadd.f32 %v4802, %v4803
        %4821 = vadd.xlane.f32.xlu0 %v4820
        %v4822 = vpop.xlane.xlu0 %4821
        %v4823 = vadd.f32 %v4804, %v4805
        %4824 = vadd.xlane.f32.xlu0 %v4823
        %v4825 = vpop.xlane.xlu0 %4824
        %v4826 = vadd.f32 %v4806, %v4807
        %4827 = vadd.xlane.f32.xlu0 %v4826
        %v4828 = vpop.xlane.xlu0 %4827
        %v4829 = vadd.f32 %v4808, %v4809
        %4830 = vadd.xlane.f32.xlu0 %v4829
        %v4831 = vpop.xlane.xlu0 %4830
        %v4832 = vadd.f32 %v4810, %v4811
        %4833 = vadd.xlane.f32.xlu0 %v4832
        %v4834 = vpop.xlane.xlu0 %4833
        %v4835 = vadd.f32 %v4812, %v4813
        %4836 = vadd.xlane.f32.xlu0 %v4835
        %v4837 = vpop.xlane.xlu0 %4836
        %v4838 = vmul.f32 %v4816, %v4773
        %v4839 = vmul.f32 %v4819, %v4773
        %v4840 = vmul.f32 %v4822, %v4773
        %v4841 = vmul.f32 %v4825, %v4773
        %v4842 = vmul.f32 %v4828, %v4773
        %v4843 = vmul.f32 %v4831, %v4773
        %v4844 = vmul.f32 %v4834, %v4773
        %v4845 = vmul.f32 %v4837, %v4773
        %v4846 = vadd.f32 %v4838, 1e-05
        %v4847 = vadd.f32 %v4839, 1e-05
        %v4848 = vadd.f32 %v4840, 1e-05
        %v4849 = vadd.f32 %v4841, 1e-05
        %v4850 = vadd.f32 %v4842, 1e-05
        %v4851 = vadd.f32 %v4843, 1e-05
        %v4852 = vadd.f32 %v4844, 1e-05
        %v4853 = vadd.f32 %v4845, 1e-05
        %v4854 = vrsqrt.pop %v4846
        %v4855 = vrsqrt.pop %v4847
        %v4856 = vrsqrt.pop %v4848
        %v4857 = vrsqrt.pop %v4849
        %v4858 = vrsqrt.pop %v4850
        %v4859 = vrsqrt.pop %v4851
        %v4860 = vrsqrt.pop %v4852
        %v4861 = vrsqrt.pop %v4853
        %v4862 = vmul.f32 %v4782, %v4854
        %v4863 = vmul.f32 %v4783, %v4854
        %v4864 = vmul.f32 %v4784, %v4855
        %v4865 = vmul.f32 %v4785, %v4855
        %v4866 = vmul.f32 %v4786, %v4856
        %v4867 = vmul.f32 %v4787, %v4856
        %v4868 = vmul.f32 %v4788, %v4857
        %v4869 = vmul.f32 %v4789, %v4857
        %v4870 = vmul.f32 %v4790, %v4858
        %v4871 = vmul.f32 %v4791, %v4858
        %v4872 = vmul.f32 %v4792, %v4859
        %v4873 = vmul.f32 %v4793, %v4859
        %v4874 = vmul.f32 %v4794, %v4860
        %v4875 = vmul.f32 %v4795, %v4860
        %v4876 = vmul.f32 %v4796, %v4861
        %v4877 = vmul.f32 %v4797, %v4861
        %v4878 = vlaneseq
        %v4879 = vshrl.u32 %v4878, 7
        %v4880 = vsub.s32 1, %v4879
        %v4881 = vrot.slane %v789, %v4880
        %v4882 = vlaneseq
        %v4883 = vshrl.u32 %v4882, 7
        %v4884 = vsub.s32 5, %v4883
        %v4885 = vrot.slane %v789, %v4884
        %v4888 = vlaneseq
        %v4889 = vshrl.u32 %v4888, 7
        %v4890 = vsub.s32 1, %v4889
        %v4891 = vrot.slane %v4881, %v4890
        %v4892 = vlaneseq
        %v4893 = vshrl.u32 %v4892, 7
        %v4894 = vsub.s32 1, %v4893
        %v4895 = vrot.slane %v4885, %v4894
        %v4896 = vmul.f32 %v4862, %v4891
        %v4897 = vmul.f32 %v4863, %v4895
        %v4898 = vmul.f32 %v4864, %v4891
        %v4899 = vmul.f32 %v4865, %v4895
        %v4900 = vmul.f32 %v4866, %v4891
        %v4901 = vmul.f32 %v4867, %v4895
        %v4902 = vmul.f32 %v4868, %v4891
        %v4903 = vmul.f32 %v4869, %v4895
        %v4904 = vmul.f32 %v4870, %v4891
        %v4905 = vmul.f32 %v4871, %v4895
        %v4906 = vmul.f32 %v4872, %v4891
        %v4907 = vmul.f32 %v4873, %v4895
        %v4908 = vmul.f32 %v4874, %v4891
        %v4909 = vmul.f32 %v4875, %v4895
        %v4910 = vmul.f32 %v4876, %v4891
        %v4911 = vmul.f32 %v4877, %v4895
        %v4912 = vlaneseq
        %v4913 = vshrl.u32 %v4912, 7
        %v4914 = vsub.s32 2, %v4913
        %v4915 = vrot.slane %v789, %v4914
        %v4916 = vlaneseq
        %v4917 = vshrl.u32 %v4916, 7
        %v4918 = vsub.s32 6, %v4917
        %v4919 = vrot.slane %v789, %v4918
        %v4922 = vlaneseq
        %v4923 = vshrl.u32 %v4922, 7
        %v4924 = vsub.s32 2, %v4923
        %v4925 = vrot.slane %v4915, %v4924
        %v4926 = vlaneseq
        %v4927 = vshrl.u32 %v4926, 7
        %v4928 = vsub.s32 2, %v4927
        %v4929 = vrot.slane %v4919, %v4928
        %v4930 = vadd.f32 %v4896, %v4925
        %v4931 = vadd.f32 %v4897, %v4929
        %v4932 = vadd.f32 %v4898, %v4925
        %v4933 = vadd.f32 %v4899, %v4929
        %v4934 = vadd.f32 %v4900, %v4925
        %v4935 = vadd.f32 %v4901, %v4929
        %v4936 = vadd.f32 %v4902, %v4925
        %v4937 = vadd.f32 %v4903, %v4929
        %v4938 = vadd.f32 %v4904, %v4925
        %v4939 = vadd.f32 %v4905, %v4929
        %v4940 = vadd.f32 %v4906, %v4925
        %v4941 = vadd.f32 %v4907, %v4929
        %v4942 = vadd.f32 %v4908, %v4925
        %v4943 = vadd.f32 %v4909, %v4929
        %v4944 = vadd.f32 %v4910, %v4925
        %v4945 = vadd.f32 %v4911, %v4929
        %v4946 = vpack.c.bf16 %v4932, %v4930
        %v4947 = vpack.c.bf16 %v4933, %v4931
        %v4948 = vpack.c.bf16 %v4936, %v4934
        %v4949 = vpack.c.bf16 %v4937, %v4935
        %v4950 = vpack.c.bf16 %v4940, %v4938
        %v4951 = vpack.c.bf16 %v4941, %v4939
        %v4952 = vpack.c.bf16 %v4944, %v4942
        %v4953 = vpack.c.bf16 %v4945, %v4943
        %v4954 = vld [vmem:[%s626] sm:$0xf]
        %v4955 = vld [vmem:[%s626 + $0x4] sm:$0xf]
        %v4956 = vld [vmem:[%s626 + $0x8] sm:$0xf]
        %v4957 = vld [vmem:[%s626 + $0xc] sm:$0xf]
        %v4958 = vld [vmem:[%s626 + $0x10] sm:$0xf]
        %v4959 = vld [vmem:[%s626 + $0x14] sm:$0xf]
        %v4960 = vld [vmem:[%s626 + $0x18] sm:$0xf]
        %v4961 = vld [vmem:[%s626 + $0x1c] sm:$0xf]
        %v4962 = vld [vmem:[%s626 + $0x20] sm:$0xf]
        %v4963 = vld [vmem:[%s626 + $0x24] sm:$0xf]
        %v4964 = vld [vmem:[%s626 + $0x28] sm:$0xf]
        %v4965 = vld [vmem:[%s626 + $0x2c] sm:$0xf]
        %v4966 = vld [vmem:[%s626 + $0x30] sm:$0xf]
        %v4967 = vld [vmem:[%s626 + $0x34] sm:$0xf]
        %v4968 = vld [vmem:[%s626 + $0x38] sm:$0xf]
        %v4969 = vld [vmem:[%s626 + $0x3c] sm:$0xf]
        %v4970 = vld [vmem:[%s626 + $0x40] sm:$0xf]
        %v4971 = vld [vmem:[%s626 + $0x44] sm:$0xf]
        %v4972 = vld [vmem:[%s626 + $0x48] sm:$0xf]
        %v4973 = vld [vmem:[%s626 + $0x4c] sm:$0xf]
        %v4974 = vld [vmem:[%s626 + $0x50] sm:$0xf]
        %v4975 = vld [vmem:[%s626 + $0x54] sm:$0xf]
        %v4976 = vld [vmem:[%s626 + $0x58] sm:$0xf]
        %v4977 = vld [vmem:[%s626 + $0x5c] sm:$0xf]
        %v4978 = vld [vmem:[%s626 + $0x60] sm:$0xf]
        %v4979 = vld [vmem:[%s626 + $0x64] sm:$0xf]
        %v4980 = vld [vmem:[%s626 + $0x68] sm:$0xf]
        %v4981 = vld [vmem:[%s626 + $0x6c] sm:$0xf]
        %v4982 = vld [vmem:[%s626 + $0x70] sm:$0xf]
        %v4983 = vld [vmem:[%s626 + $0x74] sm:$0xf]
        %v4984 = vld [vmem:[%s626 + $0x78] sm:$0xf]
        %v4985 = vld [vmem:[%s626 + $0x7c] sm:$0xf]
        %v4986 = vld [vmem:[%s634] sm:$0x1]
        %v4988 = vlaneseq
        %v4989 = vshrl.u32 %v4988, 7
        %v4990 = vsub.s32 0, %v4989
        %v4991 = vrot.slane %v4986, %v4990
        %v5025 = vunpack.c.l.b16 %v4954
        %v5026 = vunpack.c.l.b16 %v4955
        %v5027 = vunpack.c.l.b16 %v4956
        %v5028 = vunpack.c.l.b16 %v4957
        %v5029 = vunpack.c.l.b16 %v4958
        %v5030 = vunpack.c.l.b16 %v4959
        %v5031 = vunpack.c.l.b16 %v4960
        %v5032 = vunpack.c.l.b16 %v4961
        %v5033 = vunpack.c.l.b16 %v4962
        %v5034 = vunpack.c.l.b16 %v4963
        %v5035 = vunpack.c.l.b16 %v4964
        %v5036 = vunpack.c.l.b16 %v4965
        %v5037 = vunpack.c.l.b16 %v4966
        %v5038 = vunpack.c.l.b16 %v4967
        %v5039 = vunpack.c.l.b16 %v4968
        %v5040 = vunpack.c.l.b16 %v4969
        %v5041 = vunpack.c.l.b16 %v4970
        %v5042 = vunpack.c.l.b16 %v4971
        %v5043 = vunpack.c.l.b16 %v4972
        %v5044 = vunpack.c.l.b16 %v4973
        %v5045 = vunpack.c.l.b16 %v4974
        %v5046 = vunpack.c.l.b16 %v4975
        %v5047 = vunpack.c.l.b16 %v4976
        %v5048 = vunpack.c.l.b16 %v4977
        %v5049 = vunpack.c.l.b16 %v4978
        %v5050 = vunpack.c.l.b16 %v4979
        %v5051 = vunpack.c.l.b16 %v4980
        %v5052 = vunpack.c.l.b16 %v4981
        %v5053 = vunpack.c.l.b16 %v4982
        %v5054 = vunpack.c.l.b16 %v4983
        %v5055 = vunpack.c.l.b16 %v4984
        %v5056 = vunpack.c.l.b16 %v4985
        %v5057 = vpack.c.b16 %v5026, %v5025
        %v5058 = vpack.c.b16 %v5028, %v5027
        %v5059 = vpack.c.b16 %v5030, %v5029
        %v5060 = vpack.c.b16 %v5032, %v5031
        %v5061 = vpack.c.b16 %v5034, %v5033
        %v5062 = vpack.c.b16 %v5036, %v5035
        %v5063 = vpack.c.b16 %v5038, %v5037
        %v5064 = vpack.c.b16 %v5040, %v5039
        %v5065 = vpack.c.b16 %v5042, %v5041
        %v5066 = vpack.c.b16 %v5044, %v5043
        %v5067 = vpack.c.b16 %v5046, %v5045
        %v5068 = vpack.c.b16 %v5048, %v5047
        %v5069 = vpack.c.b16 %v5050, %v5049
        %v5070 = vpack.c.b16 %v5052, %v5051
        %v5071 = vpack.c.b16 %v5054, %v5053
        %v5072 = vpack.c.b16 %v5056, %v5055
        %5089 = vmatprep.subr.bf16.mxu0 0
        %5090 = vmatpush1.bf16.msra.mxu0 %v5057
        %5091 = vmatprep.subr.bf16.mxu0 0
        %5092 = vmatpush1.bf16.msra.mxu0 %v5058
        %5093 = vmatprep.subr.bf16.mxu0 0
        %5094 = vmatpush1.bf16.msra.mxu0 %v5059
        %5095 = vmatprep.subr.bf16.mxu0 0
        %5096 = vmatpush1.bf16.msra.mxu0 %v5060
        %5097 = vmatprep.subr.bf16.mxu0 0
        %5098 = vmatpush1.bf16.msra.mxu0 %v5061
        %5099 = vmatprep.subr.bf16.mxu0 0
        %5100 = vmatpush1.bf16.msra.mxu0 %v5062
        %5101 = vmatprep.subr.bf16.mxu0 0
        %5102 = vmatpush1.bf16.msra.mxu0 %v5063
        %5103 = vmatprep.subr.bf16.mxu0 0
        %5104 = vmatpush1.bf16.msra.mxu0 %v5064
        %5105 = vmatprep.subr.bf16.mxu0 0
        %5106 = vmatpush1.bf16.msra.mxu0 %v5065
        %5107 = vmatprep.subr.bf16.mxu0 0
        %5108 = vmatpush1.bf16.msra.mxu0 %v5066
        %5109 = vmatprep.subr.bf16.mxu0 0
        %5110 = vmatpush1.bf16.msra.mxu0 %v5067
        %5111 = vmatprep.subr.bf16.mxu0 0
        %5112 = vmatpush1.bf16.msra.mxu0 %v5068
        %5113 = vmatprep.subr.bf16.mxu0 0
        %5114 = vmatpush1.bf16.msra.mxu0 %v5069
        %5115 = vmatprep.subr.bf16.mxu0 0
        %5116 = vmatpush1.bf16.msra.mxu0 %v5070
        %5117 = vmatprep.subr.bf16.mxu0 0
        %5118 = vmatpush1.bf16.msra.mxu0 %v5071
        %5119 = vmatprep.subr.bf16.mxu0 0
        %5120 = vmatpush1.bf16.msra.mxu0 %v5072
        %5121 = vmatprep.mubr.bf16.mxu0 %v4947
        %5122 = vmatmul.mubr.bf16.gmra.mrb[0].mxu0 %v4946
        %v5123 = vpop.f32.mrb[0].mxu0
        %v5124 = vadd.f32 %v4991, %v5123
        %v5125 = vpop.f32.mrb[0].mxu0
        %v5126 = vpop.f32.mrb[0].mxu0
        %v5127 = vadd.f32 %v4991, %v5126
        %v5128 = vpop.f32.mrb[0].mxu0
        %5129 = vmatprep.mubr.bf16.mxu0 %v4949
        %5130 = vmatmul.mubr.bf16.gmra.mrb[0].mxu0 %v4948
        %v5131 = vpop.f32.mrb[0].mxu0
        %v5132 = vadd.f32 %v4991, %v5131
        %v5133 = vpop.f32.mrb[0].mxu0
        %v5134 = vpop.f32.mrb[0].mxu0
        %v5135 = vadd.f32 %v4991, %v5134
        %v5136 = vpop.f32.mrb[0].mxu0
        %5137 = vmatprep.mubr.bf16.mxu0 %v4951
        %5138 = vmatmul.mubr.bf16.gmra.mrb[0].mxu0 %v4950
        %v5139 = vpop.f32.mrb[0].mxu0
        %v5140 = vadd.f32 %v4991, %v5139
        %v5141 = vpop.f32.mrb[0].mxu0
        %v5142 = vpop.f32.mrb[0].mxu0
        %v5143 = vadd.f32 %v4991, %v5142
        %v5144 = vpop.f32.mrb[0].mxu0
        %5145 = vmatprep.mubr.bf16.mxu0 %v4953
        %5146 = vmatmul.mubr.bf16.gmra.mrb[0].mxu0 %v4952
        %v5147 = vpop.f32.mrb[0].mxu0
        %v5148 = vadd.f32 %v4991, %v5147
        %v5149 = vpop.f32.mrb[0].mxu0
        %v5150 = vpop.f32.mrb[0].mxu0
        %v5151 = vadd.f32 %v4991, %v5150
        %v5152 = vpop.f32.mrb[0].mxu0
        %5153 = vdwg.mxu0
        %v5154 = vadd.f32 %v4421, %v5124
        %v5155 = vadd.f32 %v4422, %v5127
        %v5156 = vadd.f32 %v4423, %v5132
        %v5157 = vadd.f32 %v4424, %v5135
        %v5158 = vadd.f32 %v4425, %v5140
        %v5159 = vadd.f32 %v4426, %v5143
        %v5160 = vadd.f32 %v4427, %v5148
        %v5161 = vadd.f32 %v4428, %v5151
        %5162 = vst [vmem:[#allocation2] sm:$0xff] %v5154
        %5163 = vst [vmem:[#allocation2 + $0x8] sm:$0xff] %v5155
        %5164 = vst [vmem:[#allocation2 + $0x10] sm:$0xff] %v5156
        %5165 = vst [vmem:[#allocation2 + $0x18] sm:$0xff] %v5157
        %5166 = vst [vmem:[#allocation2 + $0x20] sm:$0xff] %v5158
        %5167 = vst [vmem:[#allocation2 + $0x28] sm:$0xff] %v5159
        %5168 = vst [vmem:[#allocation2 + $0x30] sm:$0xff] %v5160
        %5169 = vst [vmem:[#allocation2 + $0x38] sm:$0xff] %v5161
        %p5170 = scmp.eq.s32.totalorder %s37, 1
        // Predicated region
        $region105: #{transformer_decoder_forward.1} parent=75 // pred_check
          %p5171 = pneg %p5170
        $region106: #{transformer_decoder_forward.1} parent=75 // pred_check_branch
          %5173 = sbr.rel (%p5171) target = $region108
        $region107: #{transformer_decoder_forward.1} parent=75 // pred_region
          %v5174 = vld [vmem:[%s5] sm:$0x1]
          %v5175 = vld [vmem:[#allocation6] sm:$0x1]
          %5176 = vadd.xlane.f32.xlu0 %v5154
          %v5177 = vpop.xlane.xlu0 %5176
          %5178 = vadd.xlane.f32.xlu0 %v5155
          %v5179 = vpop.xlane.xlu0 %5178
          %5180 = vadd.xlane.f32.xlu0 %v5156
          %v5181 = vpop.xlane.xlu0 %5180
          %5182 = vadd.xlane.f32.xlu0 %v5157
          %v5183 = vpop.xlane.xlu0 %5182
          %5184 = vadd.xlane.f32.xlu0 %v5158
          %v5185 = vpop.xlane.xlu0 %5184
          %5186 = vadd.xlane.f32.xlu0 %v5159
          %v5187 = vpop.xlane.xlu0 %5186
          %5188 = vadd.xlane.f32.xlu0 %v5160
          %v5189 = vpop.xlane.xlu0 %5188
          %5190 = vadd.xlane.f32.xlu0 %v5161
          %v5191 = vpop.xlane.xlu0 %5190
          %v5192 = vmul.f32 %v5177, %v806
          %v5193 = vmul.f32 %v5179, %v806
          %v5194 = vmul.f32 %v5181, %v806
          %v5195 = vmul.f32 %v5183, %v806
          %v5196 = vmul.f32 %v5185, %v806
          %v5197 = vmul.f32 %v5187, %v806
          %v5198 = vmul.f32 %v5189, %v806
          %v5199 = vmul.f32 %v5191, %v806
          %v5200 = vsub.f32 %v5154, %v5192
          %v5201 = vsub.f32 %v5155, %v5193
          %v5202 = vsub.f32 %v5156, %v5194
          %v5203 = vsub.f32 %v5157, %v5195
          %v5204 = vsub.f32 %v5158, %v5196
          %v5205 = vsub.f32 %v5159, %v5197
          %v5206 = vsub.f32 %v5160, %v5198
          %v5207 = vsub.f32 %v5161, %v5199
          %v5208 = vmul.f32 %v5200, %v5200
          %v5209 = vmul.f32 %v5201, %v5201
          %v5210 = vmul.f32 %v5202, %v5202
          %v5211 = vmul.f32 %v5203, %v5203
          %v5212 = vmul.f32 %v5204, %v5204
          %v5213 = vmul.f32 %v5205, %v5205
          %v5214 = vmul.f32 %v5206, %v5206
          %v5215 = vmul.f32 %v5207, %v5207
          %5216 = vadd.xlane.f32.xlu0 %v5208
          %v5217 = vpop.xlane.xlu0 %5216
          %5218 = vadd.xlane.f32.xlu0 %v5209
          %v5219 = vpop.xlane.xlu0 %5218
          %5220 = vadd.xlane.f32.xlu0 %v5210
          %v5221 = vpop.xlane.xlu0 %5220
          %5222 = vadd.xlane.f32.xlu0 %v5211
          %v5223 = vpop.xlane.xlu0 %5222
          %5224 = vadd.xlane.f32.xlu0 %v5212
          %v5225 = vpop.xlane.xlu0 %5224
          %5226 = vadd.xlane.f32.xlu0 %v5213
          %v5227 = vpop.xlane.xlu0 %5226
          %5228 = vadd.xlane.f32.xlu0 %v5214
          %v5229 = vpop.xlane.xlu0 %5228
          %5230 = vadd.xlane.f32.xlu0 %v5215
          %v5231 = vpop.xlane.xlu0 %5230
          %v5232 = vmul.f32 %v5217, %v806
          %v5233 = vmul.f32 %v5219, %v806
          %v5234 = vmul.f32 %v5221, %v806
          %v5235 = vmul.f32 %v5223, %v806
          %v5236 = vmul.f32 %v5225, %v806
          %v5237 = vmul.f32 %v5227, %v806
          %v5238 = vmul.f32 %v5229, %v806
          %v5239 = vmul.f32 %v5231, %v806
          %v5240 = vadd.f32 %v5232, 1e-05
          %v5241 = vadd.f32 %v5233, 1e-05
          %v5242 = vadd.f32 %v5234, 1e-05
          %v5243 = vadd.f32 %v5235, 1e-05
          %v5244 = vadd.f32 %v5236, 1e-05
          %v5245 = vadd.f32 %v5237, 1e-05
          %v5246 = vadd.f32 %v5238, 1e-05
          %v5247 = vadd.f32 %v5239, 1e-05
          %v5248 = vrsqrt.pop %v5240
          %v5249 = vrsqrt.pop %v5241
          %v5250 = vrsqrt.pop %v5242
          %v5251 = vrsqrt.pop %v5243
          %v5252 = vrsqrt.pop %v5244
          %v5253 = vrsqrt.pop %v5245
          %v5254 = vrsqrt.pop %v5246
          %v5255 = vrsqrt.pop %v5247
          %v5256 = vmul.f32 %v5200, %v5248
          %v5257 = vmul.f32 %v5201, %v5249
          %v5258 = vmul.f32 %v5202, %v5250
          %v5259 = vmul.f32 %v5203, %v5251
          %v5260 = vmul.f32 %v5204, %v5252
          %v5261 = vmul.f32 %v5205, %v5253
          %v5262 = vmul.f32 %v5206, %v5254
          %v5263 = vmul.f32 %v5207, %v5255
          %v5265 = vlaneseq
          %v5266 = vshrl.u32 %v5265, 7
          %v5267 = vsub.s32 0, %v5266
          %v5268 = vrot.slane %v5174, %v5267
          %v5270 = vmul.f32 %v5256, %v5268
          %v5271 = vmul.f32 %v5257, %v5268
          %v5272 = vmul.f32 %v5258, %v5268
          %v5273 = vmul.f32 %v5259, %v5268
          %v5274 = vmul.f32 %v5260, %v5268
          %v5275 = vmul.f32 %v5261, %v5268
          %v5276 = vmul.f32 %v5262, %v5268
          %v5277 = vmul.f32 %v5263, %v5268
          %v5279 = vlaneseq
          %v5280 = vshrl.u32 %v5279, 7
          %v5281 = vsub.s32 0, %v5280
          %v5282 = vrot.slane %v5175, %v5281
          %v5284 = vadd.f32 %v5270, %v5282
          %v5285 = vadd.f32 %v5271, %v5282
          %v5286 = vadd.f32 %v5272, %v5282
          %v5287 = vadd.f32 %v5273, %v5282
          %v5288 = vadd.f32 %v5274, %v5282
          %v5289 = vadd.f32 %v5275, %v5282
          %v5290 = vadd.f32 %v5276, %v5282
          %v5291 = vadd.f32 %v5277, %v5282
          %5292 = vst [vmem:[%s720] sm:$0xff] %v5284
          %5293 = vst [vmem:[%s720 + $0x8] sm:$0xff] %v5285
          %5294 = vst [vmem:[%s720 + $0x10] sm:$0xff] %v5286
          %5295 = vst [vmem:[%s720 + $0x18] sm:$0xff] %v5287
          %5296 = vst [vmem:[%s720 + $0x20] sm:$0xff] %v5288
          %5297 = vst [vmem:[%s720 + $0x28] sm:$0xff] %v5289
          %5298 = vst [vmem:[%s720 + $0x30] sm:$0xff] %v5290
          %5299 = vst [vmem:[%s720 + $0x38] sm:$0xff] %v5291
        $region108: #{transformer_decoder_forward.1} parent=75 // pred_fallthru
          _
        %s5300 = sand.u32 %s396, 1
        %s5301 = scalar_lea.sflag [#allocation5], %s5300
        %s5302 = sand.u32 %s396, 1
        %s5303 = smul.addr %s5302, 64
        %s5304 = scalar_lea.vmem [#allocation12], %s5303
        // Predicated region
        $region109: #{transformer_decoder_forward.1} parent=75 // pred_check
          %p5305 = pneg %p406
        $region110: #{transformer_decoder_forward.1} parent=75 // pred_check_branch
          %5307 = sbr.rel (%p5305) target = $region112
        $region111: #{transformer_decoder_forward.1} parent=75 // pred_region
          %s5309 = ssub.s32 1024, 1024
          %5310 = vsyncadd %s5301, %s5309
          %s5311 = smul.addr %s36, 8
          %s5312 = smul.addr %s5311, 128
          %s5313 = scalar_lea.hbm %s14, %s5312
          %s5314 = sshll.u32 %s5304, 4
          %s5315 = int_to_ptr.vmem [resolvable:$true] %s5314
          %5320 = dma.vmem_to_hbm [thread:$0]  %s5315, 1024, %s5313, %s5301, 128, 128, 8
        $region112: #{transformer_decoder_forward.1} parent=75 // pred_fallthru
          _
      $region76: #{transformer_decoder_forward.1} parent=5 // pred_fallthru
        _
      %p5321 = scmp.le.s32.totalorder 2, %s27
      // Predicated region
      $region113: #{transformer_decoder_forward.1} parent=5 // pred_check
        %p5322 = pneg %p5321
      $region114: #{transformer_decoder_forward.1} parent=5 // pred_check_branch
        %5324 = sbr.rel (%p5322) target = $region116
      $region115: #{transformer_decoder_forward.1} parent=5 // pred_region
        %s5325 = ssub.s32 %s27, 2
        // Predicated region
        $region117: #{transformer_decoder_forward.1} parent=115 // pred_check
          %p5326 = pneg %p412
        $region118: #{transformer_decoder_forward.1} parent=115 // pred_check_branch
          %5328 = sbr.rel (%p5326) target = $region120
        $region119: #{transformer_decoder_forward.1} parent=115 // pred_region
          %s5329 = sand.u32 %s397, 1
          %s5330 = scalar_lea.sflag [#allocation5], %s5329
          %s5331 = sand.u32 %s397, 1
          %s5332 = smul.addr %s5331, 64
          %s5333 = scalar_lea.vmem [#allocation12], %s5332
          %5334 = dma.done %s5330, 1024
        $region120: #{transformer_decoder_forward.1} parent=115 // pred_fallthru
          _
      $region116: #{transformer_decoder_forward.1} parent=5 // pred_fallthru
        _
    $region6: #{transformer_decoder_forward.1} parent=1 // loop_footer
      %s31 = sadd.s32 1, %s27
    $region7: #{transformer_decoder_forward.1} parent=1 // loop_footer_branch
      %26 = sbr.rel target = $region3
    $region8: #{transformer_decoder_forward.1} parent=1 // loop_exit
      _
    %5335 = vsyncpa [#allocation4], 1
    %s5336 = scalar_lea.sflag [#allocation4], 1
    %5337 = vsyncpa %s5336, 1
    %5338 = vsyncpa [#allocation7], 1
    %5339 = vsyncpa [#allocation5], 1
    %s5340 = scalar_lea.sflag [#allocation5], 1
    %5341 = vsyncpa %s5340, 1

</llo_original>
